<compile_context>
chip_gen: v5e
topology: v5e:2x2
jax: 0.10.0
libtpu: 0.0.40
codegen_flags: <defaults>
</compile_context>

<pallas_src>
import functools

import jax
import jax.numpy as jnp
from jax.experimental import pallas as pl
from jax.experimental.pallas import tpu as pltpu


def _fused_block_kernel(x_ref, res_ref, w1_ref, b1_ref, w2_ref, b2_ref, o_ref):
    k = pl.program_id(1)

    # First reduction step: seed the resident output block with the BN2 bias.
    @pl.when(k == 0)
    def _():
        o_ref[...] = jnp.broadcast_to(b2_ref[...], o_ref.shape)

    # conv2d151 slice (1x1, BN1 scale folded into w1 columns): bf16 MXU, f32 acc
    h = jnp.dot(x_ref[...], w1_ref[...], preferred_element_type=jnp.float32)
    # batchnorm2d151 bias + residual add (bf16 -> f32) + ReLU for this C_mid slice
    h = jnp.maximum(h + b1_ref[...] + res_ref[...].astype(jnp.float32), 0.0)
    # conv2d152 partial sum over C_mid blocks (BN2 scale folded into w2 columns),
    # accumulated directly into the f32 output block.
    o_ref[...] += jnp.dot(h.astype(jnp.bfloat16), w2_ref[...],
                          preferred_element_type=jnp.float32)


def prepare_params(params, eps=1e-5):
    """One-time offline prep: fold BN scales into bf16 weights, keep f32 biases."""
    s1 = params["bn1_gamma"] / jnp.sqrt(params["bn1_var"] + eps)
    b1 = params["bn1_beta"] - params["bn1_mean"] * s1
    s2 = params["bn2_gamma"] / jnp.sqrt(params["bn2_var"] + eps)
    b2 = params["bn2_beta"] - params["bn2_mean"] * s2
    return {
        "w1": (params["w1"] * s1[None, :]).astype(jnp.bfloat16),   # (C_in, C_mid)
        "w2": (params["w2"] * s2[None, :]).astype(jnp.bfloat16),   # (C_mid, C_out)
        "b1": b1.reshape(1, -1).astype(jnp.float32),               # (1, C_mid)
        "b2": b2.reshape(1, -1).astype(jnp.float32),               # (1, C_out)
    }


def _num_cout_blocks():
    """Use 2 parallel C_out blocks only on a 2-TC (v7x) chip."""
    try:
        kind = jax.devices()[0].device_kind.lower()
        if "v7" in kind:
            return 2
    except Exception:
        pass
    return 1


@functools.partial(jax.jit, static_argnames=("tk", "cout_blocks"))
def fused_bottleneck_tail(x_nchw, res_nchw, prepared, tk=1024, cout_blocks=1):
    """x_nchw: (N, C_in, H, W), res_nchw: (N, C_mid, H, W) -> (N, C_out, H, W)."""
    N, C_in, H, W = x_nchw.shape
    C_mid = res_nchw.shape[1]
    w1, w2 = prepared["w1"], prepared["w2"]
    b1, b2 = prepared["b1"], prepared["b2"]
    C_out = w2.shape[1]

    M = N * H * W
    M_pad = ((M + 15) // 16) * 16     # 49 -> 64: unmasked bf16 (16,128) tiles

    # NCHW -> (M, C) channels-last; bf16 activations + bf16 residual stream.
    x = jnp.transpose(x_nchw, (0, 2, 3, 1)).reshape(M, C_in).astype(jnp.bfloat16)
    res = jnp.transpose(res_nchw, (0, 2, 3, 1)).reshape(M, C_mid).astype(jnp.bfloat16)
    if M_pad != M:
        x = jnp.pad(x, ((0, M_pad - M), (0, 0)))
        res = jnp.pad(res, ((0, M_pad - M), (0, 0)))

    assert C_mid % tk == 0
    assert C_out % cout_blocks == 0
    tn = C_out // cout_blocks
    assert tn % 128 == 0
    grid = (cout_blocks, C_mid // tk)   # reduction (k) axis last

    cost = pl.CostEstimate(
        flops=2 * M_pad * C_in * C_mid + 2 * M_pad * C_mid * C_out,
        transcendentals=0,
        bytes_accessed=(w1.size * 2 + w2.size * 2       # bf16 weights
                        + x.size * 2 + res.size * 2     # bf16 activations
                        + b1.size * 4 + b2.size * 4
                        + M_pad * C_out * 4),            # f32 output
    )

    out = pl.pallas_call(
        _fused_block_kernel,
        out_shape=jax.ShapeDtypeStruct((M_pad, C_out), jnp.float32),
        grid_spec=pltpu.PrefetchScalarGridSpec(
            num_scalar_prefetch=0,
            grid=grid,
            in_specs=[
                pl.BlockSpec((M_pad, C_in), lambda i, k: (0, 0)),   # x (resident)
                pl.BlockSpec((M_pad, tk), lambda i, k: (0, k)),     # residual slice
                pl.BlockSpec((C_in, tk), lambda i, k: (0, k)),      # w1 column block
                pl.BlockSpec((1, tk), lambda i, k: (0, k)),         # b1 slice
                pl.BlockSpec((tk, tn), lambda i, k: (k, i)),        # w2 row/col block
                pl.BlockSpec((1, tn), lambda i, k: (0, i)),         # b2 column block
            ],
            out_specs=pl.BlockSpec((M_pad, tn), lambda i, k: (0, i)),
        ),
        compiler_params=pltpu.CompilerParams(
            dimension_semantics=("parallel", "arbitrary"),
            vmem_limit_bytes=24 << 20,   # ample; valid on v7x (64 MiB physical)
        ),
        cost_estimate=cost,
    )(x, res, w1, b1, w2, b2)

    # strip padding, (M, C_out) -> NCHW
    out = out[:M]
    return jnp.transpose(out.reshape(N, H, W, C_out), (0, 3, 1, 2))


def reference(x_nchw, res_nchw, prepared):
    """Pure-JAX reference on the same prepared weights, f32 residual add."""
    N, C_in, H, W = x_nchw.shape
    M = N * H * W
    x = jnp.transpose(x_nchw, (0, 2, 3, 1)).reshape(M, C_in).astype(jnp.bfloat16)
    res = jnp.transpose(res_nchw, (0, 2, 3, 1)).reshape(M, -1).astype(jnp.float32)
    h = jnp.dot(x, prepared["w1"], preferred_element_type=jnp.float32)
    h = jnp.maximum(h + prepared["b1"] + res, 0.0)
    y = jnp.dot(h.astype(jnp.bfloat16), prepared["w2"],
                preferred_element_type=jnp.float32) + prepared["b2"]
    C_out = y.shape[1]
    return jnp.transpose(y.reshape(N, H, W, C_out), (0, 3, 1, 2))


def init_params(key, c_in=512, c_mid=2048):
    c_out = c_in
    ks = jax.random.split(key, 10)
    return {
        # conv weights stored pre-transposed as (C_in, C_out) for the matmul
        "w1": 0.02 * jax.random.normal(ks[0], (c_in, c_mid), jnp.float32),
        "w2": 0.02 * jax.random.normal(ks[1], (c_mid, c_out), jnp.float32),
        # BatchNorm2d(2048)
        "bn1_gamma": jax.random.uniform(ks[2], (c_mid,), jnp.float32, 0.5, 1.5),
        "bn1_beta": 0.1 * jax.random.normal(ks[3], (c_mid,), jnp.float32),
        "bn1_mean": 0.1 * jax.random.normal(ks[4], (c_mid,), jnp.float32),
        "bn1_var": jax.random.uniform(ks[5], (c_mid,), jnp.float32, 0.5, 1.5),
        # BatchNorm2d(512)
        "bn2_gamma": jax.random.uniform(ks[6], (c_out,), jnp.float32, 0.5, 1.5),
        "bn2_beta": 0.1 * jax.random.normal(ks[7], (c_out,), jnp.float32),
        "bn2_mean": 0.1 * jax.random.normal(ks[8], (c_out,), jnp.float32),
        "bn2_var": jax.random.uniform(ks[9], (c_out,), jnp.float32, 0.5, 1.5),
    }


if __name__ == "__main__":
    key = jax.random.PRNGKey(0)
    k_x, k_r, k_p = jax.random.split(key, 3)

    # Shapes implied by the module: x498 = (1, 512, 7, 7), x492 = (1, 2048, 7, 7)
    N, C_in, C_mid, H, W = 1, 512, 2048, 7, 7
    x498 = jax.random.normal(k_x, (N, C_in, H, W), jnp.float32)
    x492 = jax.random.normal(k_r, (N, C_mid, H, W), jnp.float32)

    params = init_params(k_p, c_in=C_in, c_mid=C_mid)
    prepared = prepare_params(params)          # offline: BN-fold + bf16 cast (once)

    out = fused_bottleneck_tail(x498, x492, prepared,
                                tk=1024, cout_blocks=_num_cout_blocks())
    out = jax.block_until_ready(out)
    assert out.shape == (N, C_in, H, W), out.shape

    ref = jax.block_until_ready(reference(x498, x492, prepared))
    err = float(jnp.max(jnp.abs(out - ref)))
    assert err < 5e-2, f"max abs diff vs reference: {err}"

    print("KERNEL_OK")
</pallas_src>

<mosaic_0001>
module attributes {stable_mosaic.version = 11 : i64} {
  func.func @_fused_block_kernel(%arg0: i32, %arg1: i32, %arg2: memref<64x512xbf16, #tpu.memory_space<vmem>>, %arg3: memref<64x1024xbf16, #tpu.memory_space<vmem>>, %arg4: memref<512x1024xbf16, #tpu.memory_space<vmem>>, %arg5: memref<1x1024xf32, #tpu.memory_space<vmem>>, %arg6: memref<1024x512xbf16, #tpu.memory_space<vmem>>, %arg7: memref<1x512xf32, #tpu.memory_space<vmem>>, %arg8: memref<64x512xf32, #tpu.memory_space<vmem>>) attributes {dimension_semantics = [#tpu.dimension_semantics<parallel>, #tpu.dimension_semantics<arbitrary>], iteration_bounds = array<i64: 1, 2>, scalar_prefetch = 0 : i64, scratch_operands = 0 : i64, tpu.core_type = #tpu.core_type<tc>, window_params = [{pipeline_mode = #tpu.pipeline_mode<synchronous>, transform_indices = @transform_0, window_bounds = array<i64: 64, 512>}, {transform_indices = @transform_1, window_bounds = array<i64: 64, 1024>}, {transform_indices = @transform_2, window_bounds = array<i64: 512, 1024>}, {transform_indices = @transform_3, window_bounds = array<i64: 1, 1024>}, {transform_indices = @transform_4, window_bounds = array<i64: 1024, 512>}, {transform_indices = @transform_5, window_bounds = array<i64: 1, 512>}, {transform_indices = @transform_6, window_bounds = array<i64: 64, 512>}]} {
    %c0_i32 = arith.constant 0 : i32
    %0 = arith.cmpi eq, %arg1, %c0_i32 : i32
    %1 = arith.extui %0 : i1 to i32
    %c0_i32_0 = arith.constant 0 : i32
    %2 = arith.cmpi ne, %1, %c0_i32_0 : i32
    scf.if %2 {
      %c0_16 = arith.constant 0 : index
      %c0_17 = arith.constant 0 : index
      %20 = vector.load %arg7[%c0_16, %c0_17] : memref<1x512xf32, #tpu.memory_space<vmem>>, vector<1x512xf32>
      %21 = vector.shape_cast %20 : vector<1x512xf32> to vector<1x512xf32>
      %22 = vector.broadcast %21 : vector<1x512xf32> to vector<64x512xf32>
      %c0_18 = arith.constant 0 : index
      %c0_19 = arith.constant 0 : index
      %23 = vector.load %arg8[%c0_18, %c0_19] : memref<64x512xf32, #tpu.memory_space<vmem>>, vector<64x512xf32>
      tpu.vector_store %arg8[%c0_18, %c0_19], %22 {strides = array<i32>} : memref<64x512xf32, #tpu.memory_space<vmem>>, vector<64x512xf32>,
    } else {
    }
    %c0 = arith.constant 0 : index
    %c0_1 = arith.constant 0 : index
    %3 = vector.load %arg2[%c0, %c0_1] : memref<64x512xbf16, #tpu.memory_space<vmem>>, vector<64x512xbf16>
    %c0_2 = arith.constant 0 : index
    %c0_3 = arith.constant 0 : index
    %4 = vector.load %arg4[%c0_2, %c0_3] : memref<512x1024xbf16, #tpu.memory_space<vmem>>, vector<512x1024xbf16>
    %cst = arith.constant dense<0.000000e+00> : vector<64x1024xf32>
    %5 = tpu.matmul %3, %4, %cst {dimension_numbers = #tpu.dot_dimension_numbers<[1], [0], [0], [1], [0, 0, 1, 1], [], []>} : vector<64x512xbf16>, vector<512x1024xbf16>, vector<64x1024xf32> -> vector<64x1024xf32>
    %c0_4 = arith.constant 0 : index
    %c0_5 = arith.constant 0 : index
    %6 = vector.load %arg5[%c0_4, %c0_5] : memref<1x1024xf32, #tpu.memory_space<vmem>>, vector<1x1024xf32>
    %7 = vector.broadcast %6 : vector<1x1024xf32> to vector<64x1024xf32>
    %8 = arith.addf %5, %7 : vector<64x1024xf32>
    %c0_6 = arith.constant 0 : index
    %c0_7 = arith.constant 0 : index
    %9 = vector.load %arg3[%c0_6, %c0_7] : memref<64x1024xbf16, #tpu.memory_space<vmem>>, vector<64x1024xbf16>
    %10 = arith.extf %9 : vector<64x1024xbf16> to vector<64x1024xf32>
    %11 = arith.addf %8, %10 : vector<64x1024xf32>
    %cst_8 = arith.constant 0.000000e+00 : f32
    %12 = vector.broadcast %cst_8 : f32 to vector<64x1024xf32>
    %13 = arith.maximumf %11, %12 : vector<64x1024xf32>
    %c0_9 = arith.constant 0 : index
    %c0_10 = arith.constant 0 : index
    %14 = vector.load %arg8[%c0_9, %c0_10] : memref<64x512xf32, #tpu.memory_space<vmem>>, vector<64x512xf32>
    %15 = arith.truncf %13 : vector<64x1024xf32> to vector<64x1024xbf16>
    %c0_11 = arith.constant 0 : index
    %c0_12 = arith.constant 0 : index
    %16 = vector.load %arg6[%c0_11, %c0_12] : memref<1024x512xbf16, #tpu.memory_space<vmem>>, vector<1024x512xbf16>
    %cst_13 = arith.constant dense<0.000000e+00> : vector<64x512xf32>
    %17 = tpu.matmul %15, %16, %cst_13 {dimension_numbers = #tpu.dot_dimension_numbers<[1], [0], [0], [1], [0, 0, 1, 1], [], []>} : vector<64x1024xbf16>, vector<1024x512xbf16>, vector<64x512xf32> -> vector<64x512xf32>
    %18 = arith.addf %14, %17 : vector<64x512xf32>
    %c0_14 = arith.constant 0 : index
    %c0_15 = arith.constant 0 : index
    %19 = vector.load %arg8[%c0_14, %c0_15] : memref<64x512xf32, #tpu.memory_space<vmem>>, vector<64x512xf32>
    tpu.vector_store %arg8[%c0_14, %c0_15], %18 {strides = array<i32>} : memref<64x512xf32, #tpu.memory_space<vmem>>, vector<64x512xf32>,
    return
  }
  func.func @transform_0(%arg0: i32, %arg1: i32) -> (i32, i32) {
    %c0_i32 = arith.constant 0 : i32
    %c0_i32_0 = arith.constant 0 : i32
    %c0_i32_1 = arith.constant 0 : i32
    return %c0_i32, %c0_i32_0 : i32, i32
  }
  func.func @transform_1(%arg0: i32, %arg1: i32) -> (i32, i32) {
    %c0_i32 = arith.constant 0 : i32
    %c0_i32_0 = arith.constant 0 : i32
    return %c0_i32, %arg1 : i32, i32
  }
  func.func @transform_2(%arg0: i32, %arg1: i32) -> (i32, i32) {
    %c0_i32 = arith.constant 0 : i32
    %c0_i32_0 = arith.constant 0 : i32
    return %c0_i32, %arg1 : i32, i32
  }
  func.func @transform_3(%arg0: i32, %arg1: i32) -> (i32, i32) {
    %c0_i32 = arith.constant 0 : i32
    %c0_i32_0 = arith.constant 0 : i32
    return %c0_i32, %arg1 : i32, i32
  }
  func.func @transform_4(%arg0: i32, %arg1: i32) -> (i32, i32) {
    %c0_i32 = arith.constant 0 : i32
    return %arg1, %arg0 : i32, i32
  }
  func.func @transform_5(%arg0: i32, %arg1: i32) -> (i32, i32) {
    %c0_i32 = arith.constant 0 : i32
    %c0_i32_0 = arith.constant 0 : i32
    return %c0_i32, %arg0 : i32, i32
  }
  func.func @transform_6(%arg0: i32, %arg1: i32) -> (i32, i32) {
    %c0_i32 = arith.constant 0 : i32
    %c0_i32_0 = arith.constant 0 : i32
    return %c0_i32, %arg0 : i32, i32
  }
}

</mosaic_0001>

<llo_original>
// kernel: fused_bottleneck_tail.1
$region0: #{fused_bottleneck_tail.1}
  #allocation0 [shape = 'u32[]', space=smem, size = 0x4, offset = 0x4, fixed_abs, tag = 'smem constant byte address 0x4 - core index']
  #allocation1 [shape = 'u32[72,128]{1,0:T(1,128)}', space=vmem, size = 0x9000, scoped, tag = 'internal scratch']
  %s0 = inlined_call_operand.vmem [shape: bf16[64,512], index: 0, kind: input, shape index: {}]
  %s1 = inlined_call_operand.vmem [shape: bf16[64,2048], index: 1, kind: input, shape index: {}]
  %s2 = inlined_call_operand.hbm [shape: bf16[512,2048], index: 2, kind: input, shape index: {}]
  %s3 = inlined_call_operand.hbm [shape: f32[1,2048], index: 3, kind: input, shape index: {}]
  %s4 = inlined_call_operand.hbm [shape: bf16[2048,512], index: 4, kind: input, shape index: {}]
  %s5 = inlined_call_operand.hbm [shape: f32[1,512], index: 5, kind: input, shape index: {}]
  %s6 = inlined_call_operand.vmem [shape: f32[64,512], index: 6, kind: output, shape index: {}]
  %s7 = sld [smem:[#allocation0]]
  $region100: #{fused_bottleneck_tail.1} parent=0
    _
  %s9 = ssub.s32 1, %s7
  %s10 = scalar_select 0, %s9, %s7
  $region1: #{fused_bottleneck_tail.1} parent=0
    #allocation2 [shape = 'u8[262144]{0}', space=vmem, size = 0x40000, scoped, tag = 'input window, operand 1']
    #allocation3 [shape = 'u8[2097152]{0}', space=vmem, size = 0x200000, scoped, tag = 'input window, operand 2']
    #allocation4 [shape = 's32[2]{0}', space=sflag, size = 0x8, scoped, tag = 'scoped memory for fused_bottleneck_tail.1']
    #allocation5 [shape = 'u8[8192]{0}', space=vmem, size = 0x2000, scoped, tag = 'input window, operand 3']
    #allocation6 [shape = 's32[2]{0}', space=sflag, size = 0x8, scoped, tag = 'scoped memory for fused_bottleneck_tail.1']
    #allocation7 [shape = 'u8[2097152]{0}', space=vmem, size = 0x200000, scoped, tag = 'input window, operand 4']
    #allocation8 [shape = 'u8[2048]{0}', space=vmem, size = 0x800, scoped, tag = 'input window, operand 5, single buffered']
    #allocation9 [shape = 's32[1]{0}', space=sflag, size = 0x4, scoped, tag = 'scoped memory for fused_bottleneck_tail.1']
    %11 = vsyncpa [#allocation4], 0
    %s12 = scalar_lea.sflag [#allocation4], 1
    %13 = vsyncpa %s12, 0
    %14 = vsyncpa [#allocation6], 0
    %s15 = scalar_lea.sflag [#allocation6], 1
    %16 = vsyncpa %s15, 0
    %17 = vsyncpa [#allocation9], 0
    loop: start=0, step=1, limit=4
    $region2: #{fused_bottleneck_tail.1} parent=1 // loop_pre_header
      _
    $region3: #{fused_bottleneck_tail.1} parent=1 // loop_header
      %s19 = sphi 0, %s23
      %p20 = scmp.ge.s32.totalorder %s19, 4
      %s26 = sphi 0, %s38
      %s27 = sphi 0, %s34
      %s28 = sphi 0, %s26
      %s29 = sphi 0, %s27
      %s30 = sphi 0, %s28
      %s31 = sphi 0, %s29
      %s39 = sphi 0, %s39
      %s41 = sphi 0, %s39
      %s42 = sphi 0, %s41
      %s56 = sphi 0, %s42
      %s62 = sphi 0, %s64
      %s65 = sphi 0, %s62
      %s66 = sphi 0, %s65
      %s82 = sphi 0, %s66
      %s88 = sphi 0, %s90
      %s91 = sphi 0, %s88
      %s92 = sphi 0, %s91
      %s108 = sphi 0, %s92
      %s114 = sphi 0, %s116
      %s117 = sphi 0, %s114
      %s118 = sphi 0, %s117
      %s134 = sphi 0, %s118
      %s142 = sphi 0, %s144
      %s145 = sphi 0, %s142
      %s146 = sphi 0, %s145
      %s162 = sphi 0, %s146
      %s168 = sphi 0, %s170
      %s171 = sphi 0, %s168
      %s172 = sphi 0, %s171
      %s188 = sphi 0, %s172
      %s194 = sphi 0, %s196
      %s197 = sphi 0, %s194
      %s198 = sphi 0, %s197
      %s214 = sphi 0, %s198
    $region4: #{fused_bottleneck_tail.1} parent=1 // loop_header_branch
      %22 = sbr.rel (%p20) target = $region8
    $region5: #{fused_bottleneck_tail.1} parent=1 // loop_body
      %s24 = ssub.s32 %s19, 1
      %s25 = ssub.s32 %s19, 2
      %s32 = sadd.s32 1, %s27
      %p33 = scmp.ge.s32.totalorder %s32, 2
      %s34 = scalar_select %p33, 0, %s32
      %s35 = sadd.s32 1, %s26
      %s36 = scalar_select %p33, %s35, %s26
      %p37 = scmp.ge.s32.totalorder %s36, 1
      %s38 = scalar_select %p37, 0, %s36
      %s40 = sadd.s32 %s39, 1
      %p43 = scmp.eq.s32.totalorder %s19, 1
      %p44 = scmp.ne.s32.totalorder %s39, %s41
      %p45 = scmp.eq.s32.totalorder %s19, 0
      %p46 = por %p44, %p45
      %p47 = scmp.ne.s32.totalorder %s39, %s41
      %p48 = scmp.eq.s32.totalorder %s24, 1
      %p49 = por %p47, %p48
      %p50 = scmp.ne.s32.totalorder %s41, %s42
      %p51 = scmp.eq.s32.totalorder %s24, 0
      %p52 = por %p50, %p51
      %p53 = scmp.ne.s32.totalorder %s41, %s42
      %p54 = scmp.eq.s32.totalorder %s25, 1
      %p55 = por %p53, %p54
      %p57 = scmp.ne.s32.totalorder %s42, %s56
      %p58 = scmp.eq.s32.totalorder %s25, 0
      %p59 = por %p57, %p58
      %s60 = ssub.s32 %s27, %s34
      %p61 = scmp.eq.s32.totalorder %s60, 0
      %s63 = sadd.s32 %s62, 1
      %s64 = scalar_select %p61, %s62, %s63
      %p67 = pneg %p61
      %p68 = scmp.eq.s32.totalorder %s19, 1
      %p69 = por %p67, %p68
      %p70 = scmp.ne.s32.totalorder %s62, %s65
      %p71 = scmp.eq.s32.totalorder %s19, 0
      %p72 = por %p70, %p71
      %p73 = scmp.ne.s32.totalorder %s62, %s65
      %p74 = scmp.eq.s32.totalorder %s24, 1
      %p75 = por %p73, %p74
      %p76 = scmp.ne.s32.totalorder %s65, %s66
      %p77 = scmp.eq.s32.totalorder %s24, 0
      %p78 = por %p76, %p77
      %p79 = scmp.ne.s32.totalorder %s65, %s66
      %p80 = scmp.eq.s32.totalorder %s25, 1
      %p81 = por %p79, %p80
      %p83 = scmp.ne.s32.totalorder %s66, %s82
      %p84 = scmp.eq.s32.totalorder %s25, 0
      %p85 = por %p83, %p84
      %s86 = ssub.s32 %s27, %s34
      %p87 = scmp.eq.s32.totalorder %s86, 0
      %s89 = sadd.s32 %s88, 1
      %s90 = scalar_select %p87, %s88, %s89
      %p93 = pneg %p87
      %p94 = scmp.eq.s32.totalorder %s19, 1
      %p95 = por %p93, %p94
      %p96 = scmp.ne.s32.totalorder %s88, %s91
      %p97 = scmp.eq.s32.totalorder %s19, 0
      %p98 = por %p96, %p97
      %p99 = scmp.ne.s32.totalorder %s88, %s91
      %p100 = scmp.eq.s32.totalorder %s24, 1
      %p101 = por %p99, %p100
      %p102 = scmp.ne.s32.totalorder %s91, %s92
      %p103 = scmp.eq.s32.totalorder %s24, 0
      %p104 = por %p102, %p103
      %p105 = scmp.ne.s32.totalorder %s91, %s92
      %p106 = scmp.eq.s32.totalorder %s25, 1
      %p107 = por %p105, %p106
      %p109 = scmp.ne.s32.totalorder %s92, %s108
      %p110 = scmp.eq.s32.totalorder %s25, 0
      %p111 = por %p109, %p110
      %s112 = ssub.s32 %s27, %s34
      %p113 = scmp.eq.s32.totalorder %s112, 0
      %s115 = sadd.s32 %s114, 1
      %s116 = scalar_select %p113, %s114, %s115
      %p119 = pneg %p113
      %p120 = scmp.eq.s32.totalorder %s19, 1
      %p121 = por %p119, %p120
      %p122 = scmp.ne.s32.totalorder %s114, %s117
      %p123 = scmp.eq.s32.totalorder %s19, 0
      %p124 = por %p122, %p123
      %p125 = scmp.ne.s32.totalorder %s114, %s117
      %p126 = scmp.eq.s32.totalorder %s24, 1
      %p127 = por %p125, %p126
      %p128 = scmp.ne.s32.totalorder %s117, %s118
      %p129 = scmp.eq.s32.totalorder %s24, 0
      %p130 = por %p128, %p129
      %p131 = scmp.ne.s32.totalorder %s117, %s118
      %p132 = scmp.eq.s32.totalorder %s25, 1
      %p133 = por %p131, %p132
      %p135 = scmp.ne.s32.totalorder %s118, %s134
      %p136 = scmp.eq.s32.totalorder %s25, 0
      %p137 = por %p135, %p136
      %s138 = ssub.s32 %s27, %s34
      %s139 = ssub.s32 %s26, %s38
      %s140 = sor.u32 %s138, %s139
      %p141 = scmp.eq.s32.totalorder %s140, 0
      %s143 = sadd.s32 %s142, 1
      %s144 = scalar_select %p141, %s142, %s143
      %p147 = pneg %p141
      %p148 = scmp.eq.s32.totalorder %s19, 1
      %p149 = por %p147, %p148
      %p150 = scmp.ne.s32.totalorder %s142, %s145
      %p151 = scmp.eq.s32.totalorder %s19, 0
      %p152 = por %p150, %p151
      %p153 = scmp.ne.s32.totalorder %s142, %s145
      %p154 = scmp.eq.s32.totalorder %s24, 1
      %p155 = por %p153, %p154
      %p156 = scmp.ne.s32.totalorder %s145, %s146
      %p157 = scmp.eq.s32.totalorder %s24, 0
      %p158 = por %p156, %p157
      %p159 = scmp.ne.s32.totalorder %s145, %s146
      %p160 = scmp.eq.s32.totalorder %s25, 1
      %p161 = por %p159, %p160
      %p163 = scmp.ne.s32.totalorder %s146, %s162
      %p164 = scmp.eq.s32.totalorder %s25, 0
      %p165 = por %p163, %p164
      %s166 = ssub.s32 %s26, %s38
      %p167 = scmp.eq.s32.totalorder %s166, 0
      %s169 = sadd.s32 %s168, 1
      %s170 = scalar_select %p167, %s168, %s169
      %p173 = pneg %p167
      %p174 = scmp.eq.s32.totalorder %s19, 1
      %p175 = por %p173, %p174
      %p176 = scmp.ne.s32.totalorder %s168, %s171
      %p177 = scmp.eq.s32.totalorder %s19, 0
      %p178 = por %p176, %p177
      %p179 = scmp.ne.s32.totalorder %s168, %s171
      %p180 = scmp.eq.s32.totalorder %s24, 1
      %p181 = por %p179, %p180
      %p182 = scmp.ne.s32.totalorder %s171, %s172
      %p183 = scmp.eq.s32.totalorder %s24, 0
      %p184 = por %p182, %p183
      %p185 = scmp.ne.s32.totalorder %s171, %s172
      %p186 = scmp.eq.s32.totalorder %s25, 1
      %p187 = por %p185, %p186
      %p189 = scmp.ne.s32.totalorder %s172, %s188
      %p190 = scmp.eq.s32.totalorder %s25, 0
      %p191 = por %p189, %p190
      %s192 = ssub.s32 %s26, %s38
      %p193 = scmp.eq.s32.totalorder %s192, 0
      %s195 = sadd.s32 %s194, 1
      %s196 = scalar_select %p193, %s194, %s195
      %p199 = pneg %p193
      %p200 = scmp.eq.s32.totalorder %s19, 1
      %p201 = por %p199, %p200
      %p202 = scmp.ne.s32.totalorder %s194, %s197
      %p203 = scmp.eq.s32.totalorder %s19, 0
      %p204 = por %p202, %p203
      %p205 = scmp.ne.s32.totalorder %s194, %s197
      %p206 = scmp.eq.s32.totalorder %s24, 1
      %p207 = por %p205, %p206
      %p208 = scmp.ne.s32.totalorder %s197, %s198
      %p209 = scmp.eq.s32.totalorder %s24, 0
      %p210 = por %p208, %p209
      %p211 = scmp.ne.s32.totalorder %s197, %s198
      %p212 = scmp.eq.s32.totalorder %s25, 1
      %p213 = por %p211, %p212
      %p215 = scmp.ne.s32.totalorder %s198, %s214
      %p216 = scmp.eq.s32.totalorder %s25, 0
      %p217 = por %p215, %p216
      %p218 = scmp.le.s32.totalorder 1, %s19
      %p219 = scmp.lt.s32.totalorder %s19, 3
      %p220 = pnand %p218, %p219
      %p221 = pneg %p220
      // Predicated region
      $region9: #{fused_bottleneck_tail.1} parent=5 // pred_check
        _
      $region10: #{fused_bottleneck_tail.1} parent=5 // pred_check_branch
        %223 = sbr.rel (%p220) target = $region12
      $region11: #{fused_bottleneck_tail.1} parent=5 // pred_region
        %s224 = ssub.s32 %s19, 1
        // Predicated region
        $region13: #{fused_bottleneck_tail.1} parent=11 // pred_check
          %p225 = pneg %p52
        $region14: #{fused_bottleneck_tail.1} parent=11 // pred_check_branch
          %227 = sbr.rel (%p225) target = $region16
        $region15: #{fused_bottleneck_tail.1} parent=11 // pred_region
          _
        $region16: #{fused_bottleneck_tail.1} parent=11 // pred_fallthru
          _
        // Predicated region
        $region17: #{fused_bottleneck_tail.1} parent=11 // pred_check
          %p228 = pneg %p184
        $region18: #{fused_bottleneck_tail.1} parent=11 // pred_check_branch
          %230 = sbr.rel (%p228) target = $region20
        $region19: #{fused_bottleneck_tail.1} parent=11 // pred_region
          %s231 = smul.u32 4, %s28
          %233 = vsyncadd [#allocation9], 0
          %s234 = scalar_lea.hbm %s5, %s231
          %s236 = sshll.u32 %s234, 4
          %s237 = int_to_ptr.hbm [resolvable:$true] %s236
          %s238 = sshll.u32 [#allocation8], 4
          %s239 = int_to_ptr.vmem [resolvable:$true] %s238
          %241 = dma.hbm_to_vmem [thread:$0]  %s237, 64, %s239, [#allocation9]
        $region20: #{fused_bottleneck_tail.1} parent=11 // pred_fallthru
          _
      $region12: #{fused_bottleneck_tail.1} parent=5 // pred_fallthru
        _
      %p242 = scmp.lt.s32.totalorder %s19, 2
      // Predicated region
      $region21: #{fused_bottleneck_tail.1} parent=5 // pred_check
        %p243 = pneg %p242
      $region22: #{fused_bottleneck_tail.1} parent=5 // pred_check_branch
        %245 = sbr.rel (%p243) target = $region24
      $region23: #{fused_bottleneck_tail.1} parent=5 // pred_region
        // Predicated region
        $region25: #{fused_bottleneck_tail.1} parent=23 // pred_check
          %p246 = pneg %p72
        $region26: #{fused_bottleneck_tail.1} parent=23 // pred_check_branch
          %248 = sbr.rel (%p246) target = $region28
        $region27: #{fused_bottleneck_tail.1} parent=23 // pred_region
          %s249 = sand.u32 %s62, 1
          %s250 = sand.u32 %s62, 1
          %s251 = smul.addr %s250, 256
          %s252 = scalar_lea.vmem [#allocation2], %s251
          %s253 = smul.u32 8, %s27
          %s254 = smul.addr %s253, 4
          %s255 = scalar_lea.vmem %s1, %s254
          // Predicated region
          $region29: #{fused_bottleneck_tail.1} parent=27 // pred_check
            _
          $region30: #{fused_bottleneck_tail.1} parent=27 // pred_check_branch
            %257 = sbr.rel (0) target = $region32
          $region31: #{fused_bottleneck_tail.1} parent=27 // pred_region
            // Predicated region
            $region33: #{fused_bottleneck_tail.1} parent=31 // pred_check
              _
            $region34: #{fused_bottleneck_tail.1} parent=31 // pred_check_branch
              %259 = sbr.rel (0) target = $region36
            $region35: #{fused_bottleneck_tail.1} parent=31 // pred_region
              loop: start=0, step=1, limit=1
              $region37: #{fused_bottleneck_tail.1} parent=35 // loop_pre_header
                _
              $region38: #{fused_bottleneck_tail.1} parent=35 // loop_header
                %s261 = sphi 0, %s265
                %p262 = scmp.ge.s32.totalorder %s261, 1
                %s266 = sphi %s255, %s255
                %s267 = sphi %s252, %s252
              $region39: #{fused_bottleneck_tail.1} parent=35 // loop_header_branch
                %264 = sbr.rel (%p262) target = $region43
              $region40: #{fused_bottleneck_tail.1} parent=35 // loop_body
                %v268 = vld [vmem:[%s266] sm:$0xff]
                %269 = vst [vmem:[%s267] sm:$0xff] %v268
                %v270 = vld [vmem:[%s266 + $0x8] sm:$0xff]
                %271 = vst [vmem:[%s267 + $0x8] sm:$0xff] %v270
                %v272 = vld [vmem:[%s266 + $0x10] sm:$0xff]
                %273 = vst [vmem:[%s267 + $0x10] sm:$0xff] %v272
                %v274 = vld [vmem:[%s266 + $0x18] sm:$0xff]
                %275 = vst [vmem:[%s267 + $0x18] sm:$0xff] %v274
                %v276 = vld [vmem:[%s266 + $0x40] sm:$0xff]
                %277 = vst [vmem:[%s267 + $0x20] sm:$0xff] %v276
                %v278 = vld [vmem:[%s266 + $0x48] sm:$0xff]
                %279 = vst [vmem:[%s267 + $0x28] sm:$0xff] %v278
                %v280 = vld [vmem:[%s266 + $0x50] sm:$0xff]
                %281 = vst [vmem:[%s267 + $0x30] sm:$0xff] %v280
                %v282 = vld [vmem:[%s266 + $0x58] sm:$0xff]
                %283 = vst [vmem:[%s267 + $0x38] sm:$0xff] %v282
                %v284 = vld [vmem:[%s266 + $0x80] sm:$0xff]
                %285 = vst [vmem:[%s267 + $0x40] sm:$0xff] %v284
                %v286 = vld [vmem:[%s266 + $0x88] sm:$0xff]
                %287 = vst [vmem:[%s267 + $0x48] sm:$0xff] %v286
                %v288 = vld [vmem:[%s266 + $0x90] sm:$0xff]
                %289 = vst [vmem:[%s267 + $0x50] sm:$0xff] %v288
                %v290 = vld [vmem:[%s266 + $0x98] sm:$0xff]
                %291 = vst [vmem:[%s267 + $0x58] sm:$0xff] %v290
                %v292 = vld [vmem:[%s266 + $0xc0] sm:$0xff]
                %293 = vst [vmem:[%s267 + $0x60] sm:$0xff] %v292
                %v294 = vld [vmem:[%s266 + $0xc8] sm:$0xff]
                %295 = vst [vmem:[%s267 + $0x68] sm:$0xff] %v294
                %v296 = vld [vmem:[%s266 + $0xd0] sm:$0xff]
                %297 = vst [vmem:[%s267 + $0x70] sm:$0xff] %v296
                %v298 = vld [vmem:[%s266 + $0xd8] sm:$0xff]
                %299 = vst [vmem:[%s267 + $0x78] sm:$0xff] %v298
                %v300 = vld [vmem:[%s266 + $0x100] sm:$0xff]
                %301 = vst [vmem:[%s267 + $0x80] sm:$0xff] %v300
                %v302 = vld [vmem:[%s266 + $0x108] sm:$0xff]
                %303 = vst [vmem:[%s267 + $0x88] sm:$0xff] %v302
                %v304 = vld [vmem:[%s266 + $0x110] sm:$0xff]
                %305 = vst [vmem:[%s267 + $0x90] sm:$0xff] %v304
                %v306 = vld [vmem:[%s266 + $0x118] sm:$0xff]
                %307 = vst [vmem:[%s267 + $0x98] sm:$0xff] %v306
                %v308 = vld [vmem:[%s266 + $0x140] sm:$0xff]
                %309 = vst [vmem:[%s267 + $0xa0] sm:$0xff] %v308
                %v310 = vld [vmem:[%s266 + $0x148] sm:$0xff]
                %311 = vst [vmem:[%s267 + $0xa8] sm:$0xff] %v310
                %v312 = vld [vmem:[%s266 + $0x150] sm:$0xff]
                %313 = vst [vmem:[%s267 + $0xb0] sm:$0xff] %v312
                %v314 = vld [vmem:[%s266 + $0x158] sm:$0xff]
                %315 = vst [vmem:[%s267 + $0xb8] sm:$0xff] %v314
                %v316 = vld [vmem:[%s266 + $0x180] sm:$0xff]
                %317 = vst [vmem:[%s267 + $0xc0] sm:$0xff] %v316
                %v318 = vld [vmem:[%s266 + $0x188] sm:$0xff]
                %319 = vst [vmem:[%s267 + $0xc8] sm:$0xff] %v318
                %v320 = vld [vmem:[%s266 + $0x190] sm:$0xff]
                %321 = vst [vmem:[%s267 + $0xd0] sm:$0xff] %v320
                %v322 = vld [vmem:[%s266 + $0x198] sm:$0xff]
                %323 = vst [vmem:[%s267 + $0xd8] sm:$0xff] %v322
                %v324 = vld [vmem:[%s266 + $0x1c0] sm:$0xff]
                %325 = vst [vmem:[%s267 + $0xe0] sm:$0xff] %v324
                %v326 = vld [vmem:[%s266 + $0x1c8] sm:$0xff]
                %327 = vst [vmem:[%s267 + $0xe8] sm:$0xff] %v326
                %v328 = vld [vmem:[%s266 + $0x1d0] sm:$0xff]
                %329 = vst [vmem:[%s267 + $0xf0] sm:$0xff] %v328
                %v330 = vld [vmem:[%s266 + $0x1d8] sm:$0xff]
                %331 = vst [vmem:[%s267 + $0xf8] sm:$0xff] %v330
              $region41: #{fused_bottleneck_tail.1} parent=35 // loop_footer
                %s265 = sadd.s32 1, %s261
              $region42: #{fused_bottleneck_tail.1} parent=35 // loop_footer_branch
                %260 = sbr.rel target = $region38
              $region43: #{fused_bottleneck_tail.1} parent=35 // loop_exit
                _
            $region36: #{fused_bottleneck_tail.1} parent=31 // pred_fallthru
              _
            // Predicated region
            $region44: #{fused_bottleneck_tail.1} parent=31 // pred_check
              _
            $region45: #{fused_bottleneck_tail.1} parent=31 // pred_check_branch
              %333 = sbr.rel target = $region47
            $region46: #{fused_bottleneck_tail.1} parent=31 // pred_region
              _
            $region47: #{fused_bottleneck_tail.1} parent=31 // pred_fallthru
              _
          $region32: #{fused_bottleneck_tail.1} parent=27 // pred_fallthru
            _
          %334 = vnop
        $region28: #{fused_bottleneck_tail.1} parent=23 // pred_fallthru
          _
        // Predicated region
        $region48: #{fused_bottleneck_tail.1} parent=23 // pred_check
          %p335 = pneg %p98
        $region49: #{fused_bottleneck_tail.1} parent=23 // pred_check_branch
          %337 = sbr.rel (%p335) target = $region51
        $region50: #{fused_bottleneck_tail.1} parent=23 // pred_region
          %s338 = sand.u32 %s88, 1
          %s339 = scalar_lea.sflag [#allocation4], %s338
          %s340 = sand.u32 %s88, 1
          %s341 = smul.addr %s340, 2048
          %s342 = scalar_lea.vmem [#allocation3], %s341
          %s343 = smul.u32 8, %s27
          %345 = vsyncadd %s339, 0
          %s346 = smul.addr %s343, 4
          %s347 = scalar_lea.hbm %s2, %s346
          %s348 = sshll.u32 %s347, 4
          %s349 = int_to_ptr.hbm [resolvable:$true] %s348
          %s350 = sshll.u32 %s342, 4
          %s351 = int_to_ptr.vmem [resolvable:$true] %s350
          %356 = dma.hbm_to_vmem [thread:$0]  %s349, 32768, %s351, %s339, 1024, 512, 32
        $region51: #{fused_bottleneck_tail.1} parent=23 // pred_fallthru
          _
        // Predicated region
        $region52: #{fused_bottleneck_tail.1} parent=23 // pred_check
          %p357 = pneg %p124
        $region53: #{fused_bottleneck_tail.1} parent=23 // pred_check_branch
          %359 = sbr.rel (%p357) target = $region55
        $region54: #{fused_bottleneck_tail.1} parent=23 // pred_region
          %s360 = sand.u32 %s19, 1
          %s361 = scalar_lea.sflag [#allocation6], %s360
          %s362 = sand.u32 %s114, 1
          %s363 = smul.addr %s362, 8
          %s364 = scalar_lea.vmem [#allocation5], %s363
          %s365 = smul.u32 8, %s27
          %367 = vsyncadd %s361, 0
          %s368 = scalar_lea.hbm %s3, %s365
          %s370 = sshll.u32 %s368, 4
          %s371 = int_to_ptr.hbm [resolvable:$true] %s370
          %s372 = sshll.u32 %s364, 4
          %s373 = int_to_ptr.vmem [resolvable:$true] %s372
          %375 = dma.hbm_to_vmem [thread:$0]  %s371, 128, %s373, %s361
        $region55: #{fused_bottleneck_tail.1} parent=23 // pred_fallthru
          _
        // Predicated region
        $region56: #{fused_bottleneck_tail.1} parent=23 // pred_check
          %p376 = pneg %p152
        $region57: #{fused_bottleneck_tail.1} parent=23 // pred_check_branch
          %378 = sbr.rel (%p376) target = $region59
        $region58: #{fused_bottleneck_tail.1} parent=23 // pred_region
          %s379 = sand.u32 %s19, 1
          %s380 = scalar_lea.sflag [#allocation6], %s379
          %s381 = sand.u32 %s142, 1
          %s382 = smul.addr %s381, 2048
          %s383 = scalar_lea.vmem [#allocation7], %s382
          %s384 = smul.u32 128, %s27
          %s385 = smul.u32 4, %s26
          %387 = vsyncadd %s380, 0
          %s388 = smul.addr %s384, 4
          %s389 = sadd.s32 %s385, %s388
          %s390 = smul.addr %s389, 4
          %s391 = scalar_lea.hbm %s4, %s390
          %s392 = sshll.u32 %s391, 4
          %s393 = int_to_ptr.hbm [resolvable:$true] %s392
          %s394 = sshll.u32 %s383, 4
          %s395 = int_to_ptr.vmem [resolvable:$true] %s394
          %400 = dma.hbm_to_vmem [thread:$0]  %s393, 32768, %s395, %s380, 256, 256, 16
        $region59: #{fused_bottleneck_tail.1} parent=23 // pred_fallthru
          _
      $region24: #{fused_bottleneck_tail.1} parent=5 // pred_fallthru
        _
      %p401 = scmp.le.s32.totalorder 1, %s19
      %p402 = scmp.lt.s32.totalorder %s19, 3
      %p403 = pnand %p401, %p402
      %p404 = pneg %p403
      // Predicated region
      $region60: #{fused_bottleneck_tail.1} parent=5 // pred_check
        _
      $region61: #{fused_bottleneck_tail.1} parent=5 // pred_check_branch
        %406 = sbr.rel (%p403) target = $region63
      $region62: #{fused_bottleneck_tail.1} parent=5 // pred_region
        %s407 = ssub.s32 %s19, 1
        %s408 = sand.u32 %s65, 1
        %s409 = sand.u32 %s65, 1
        %s410 = smul.addr %s409, 256
        %s411 = scalar_lea.vmem [#allocation2], %s410
        // Predicated region
        $region64: #{fused_bottleneck_tail.1} parent=62 // pred_check
          %p412 = pneg %p78
        $region65: #{fused_bottleneck_tail.1} parent=62 // pred_check_branch
          %414 = sbr.rel (%p412) target = $region67
        $region66: #{fused_bottleneck_tail.1} parent=62 // pred_region
          _
        $region67: #{fused_bottleneck_tail.1} parent=62 // pred_fallthru
          _
        %s415 = sand.u32 %s91, 1
        %s416 = scalar_lea.sflag [#allocation4], %s415
        %s417 = sand.u32 %s91, 1
        %s418 = smul.addr %s417, 2048
        %s419 = scalar_lea.vmem [#allocation3], %s418
        // Predicated region
        $region68: #{fused_bottleneck_tail.1} parent=62 // pred_check
          %p420 = pneg %p104
        $region69: #{fused_bottleneck_tail.1} parent=62 // pred_check_branch
          %422 = sbr.rel (%p420) target = $region71
        $region70: #{fused_bottleneck_tail.1} parent=62 // pred_region
          %424 = dma.done %s416, 32768
        $region71: #{fused_bottleneck_tail.1} parent=62 // pred_fallthru
          _
        %s425 = sand.u32 %s24, 1
        %s426 = scalar_lea.sflag [#allocation6], %s425
        %s427 = sand.u32 %s117, 1
        %s428 = smul.addr %s427, 8
        %s429 = scalar_lea.vmem [#allocation5], %s428
        // Predicated region
        $region72: #{fused_bottleneck_tail.1} parent=62 // pred_check
          %p430 = pneg %p130
        $region73: #{fused_bottleneck_tail.1} parent=62 // pred_check_branch
          %432 = sbr.rel (%p430) target = $region75
        $region74: #{fused_bottleneck_tail.1} parent=62 // pred_region
          %434 = dma.done %s426, 128
        $region75: #{fused_bottleneck_tail.1} parent=62 // pred_fallthru
          _
        %s435 = sand.u32 %s24, 1
        %s436 = scalar_lea.sflag [#allocation6], %s435
        %s437 = sand.u32 %s145, 1
        %s438 = smul.addr %s437, 2048
        %s439 = scalar_lea.vmem [#allocation7], %s438
        // Predicated region
        $region76: #{fused_bottleneck_tail.1} parent=62 // pred_check
          %p440 = pneg %p158
        $region77: #{fused_bottleneck_tail.1} parent=62 // pred_check_branch
          %442 = sbr.rel (%p440) target = $region79
        $region78: #{fused_bottleneck_tail.1} parent=62 // pred_region
          %444 = dma.done %s436, 32768
        $region79: #{fused_bottleneck_tail.1} parent=62 // pred_fallthru
          _
        // Predicated region
        $region80: #{fused_bottleneck_tail.1} parent=62 // pred_check
          %p445 = pneg %p184
        $region81: #{fused_bottleneck_tail.1} parent=62 // pred_check_branch
          %447 = sbr.rel (%p445) target = $region83
        $region82: #{fused_bottleneck_tail.1} parent=62 // pred_region
          %449 = dma.done [#allocation9], 64
        $region83: #{fused_bottleneck_tail.1} parent=62 // pred_fallthru
          _
        %p450 = pneg %p52
        %p451 = pneg %p49
        %s452 = sand.u32 %s65, 1
        %s453 = sand.u32 %s65, 1
        %s454 = smul.addr %s453, 256
        %s455 = scalar_lea.vmem [#allocation2], %s454
        %p456 = pneg %p78
        %p457 = pneg %p75
        %s458 = sand.u32 %s91, 1
        %s459 = scalar_lea.sflag [#allocation4], %s458
        %s460 = sand.u32 %s91, 1
        %s461 = smul.addr %s460, 2048
        %s462 = scalar_lea.vmem [#allocation3], %s461
        %p463 = pneg %p104
        %p464 = pneg %p101
        %s465 = sand.u32 %s24, 1
        %s466 = scalar_lea.sflag [#allocation6], %s465
        %s467 = sand.u32 %s117, 1
        %s468 = smul.addr %s467, 8
        %s469 = scalar_lea.vmem [#allocation5], %s468
        %p470 = pneg %p130
        %p471 = pneg %p127
        %s472 = sand.u32 %s24, 1
        %s473 = scalar_lea.sflag [#allocation6], %s472
        %s474 = sand.u32 %s145, 1
        %s475 = smul.addr %s474, 2048
        %s476 = scalar_lea.vmem [#allocation7], %s475
        %p477 = pneg %p158
        %p478 = pneg %p155
        %p479 = pneg %p184
        %p480 = pneg %p181
        %p481 = pneg %p210
        %p482 = pneg %p207
        %s483 = smul.u32 4, %s28
        %p484 = scmp.lt.s32.totalorder %s483, 3
        %s485 = scalar_select %p484, %s483, 3
        %s486 = smul.addr %s485, 8
        %s487 = scalar_lea.vmem %s6, %s486
        %s488 = smul.u32 8, %s29
        %s489 = smul.u32 8, %s29
        %s490 = smul.u32 8, %s29
        %s491 = smul.u32 128, %s29
        %s492 = smul.u32 4, %s28
        %s493 = smul.u32 4, %s28
        %s494 = smul.u32 4, %s28
        %p495 = scmp.lt.s32.totalorder %s494, 3
        %s496 = scalar_select %p495, %s494, 3
        %s497 = smul.addr %s496, 8
        %s498 = scalar_lea.vmem %s6, %s497
        %s499 = smul.u32 4, %s28
        %p500 = scmp.eq.s32.totalorder %s29, 0
        // Predicated region
        $region84: #{fused_bottleneck_tail.1} parent=62 // pred_check
          %p501 = pneg %p500
        $region85: #{fused_bottleneck_tail.1} parent=62 // pred_check_branch
          %503 = sbr.rel (%p501) target = $region87
        $region86: #{fused_bottleneck_tail.1} parent=62 // pred_region
          %v504 = vld [vmem:[#allocation8] sm:$0xf]
          %v506 = vperm.slane %v504, 0
          %v507 = vperm.slane %v504, 1
          %v508 = vperm.slane %v504, 2
          %v509 = vperm.slane %v504, 3
          %514 = vst [vmem:[%s498] sm:$0xff] %v506
          %515 = vst [vmem:[%s498 + $0x8] sm:$0xff] %v507
          %516 = vst [vmem:[%s498 + $0x10] sm:$0xff] %v508
          %517 = vst [vmem:[%s498 + $0x18] sm:$0xff] %v509
          %518 = vst [vmem:[%s498 + $0x20] sm:$0xff] %v506
          %519 = vst [vmem:[%s498 + $0x28] sm:$0xff] %v507
          %520 = vst [vmem:[%s498 + $0x30] sm:$0xff] %v508
          %521 = vst [vmem:[%s498 + $0x38] sm:$0xff] %v509
          %522 = vst [vmem:[%s498 + $0x40] sm:$0xff] %v506
          %523 = vst [vmem:[%s498 + $0x48] sm:$0xff] %v507
          %524 = vst [vmem:[%s498 + $0x50] sm:$0xff] %v508
          %525 = vst [vmem:[%s498 + $0x58] sm:$0xff] %v509
          %526 = vst [vmem:[%s498 + $0x60] sm:$0xff] %v506
          %527 = vst [vmem:[%s498 + $0x68] sm:$0xff] %v507
          %528 = vst [vmem:[%s498 + $0x70] sm:$0xff] %v508
          %529 = vst [vmem:[%s498 + $0x78] sm:$0xff] %v509
          %530 = vst [vmem:[%s498 + $0x80] sm:$0xff] %v506
          %531 = vst [vmem:[%s498 + $0x88] sm:$0xff] %v507
          %532 = vst [vmem:[%s498 + $0x90] sm:$0xff] %v508
          %533 = vst [vmem:[%s498 + $0x98] sm:$0xff] %v509
          %534 = vst [vmem:[%s498 + $0xa0] sm:$0xff] %v506
          %535 = vst [vmem:[%s498 + $0xa8] sm:$0xff] %v507
          %536 = vst [vmem:[%s498 + $0xb0] sm:$0xff] %v508
          %537 = vst [vmem:[%s498 + $0xb8] sm:$0xff] %v509
          %538 = vst [vmem:[%s498 + $0xc0] sm:$0xff] %v506
          %539 = vst [vmem:[%s498 + $0xc8] sm:$0xff] %v507
          %540 = vst [vmem:[%s498 + $0xd0] sm:$0xff] %v508
          %541 = vst [vmem:[%s498 + $0xd8] sm:$0xff] %v509
          %542 = vst [vmem:[%s498 + $0xe0] sm:$0xff] %v506
          %543 = vst [vmem:[%s498 + $0xe8] sm:$0xff] %v507
          %544 = vst [vmem:[%s498 + $0xf0] sm:$0xff] %v508
          %545 = vst [vmem:[%s498 + $0xf8] sm:$0xff] %v509
        $region87: #{fused_bottleneck_tail.1} parent=62 // pred_fallthru
          _
        %v546 = vld [vmem:[%s0] sm:$0xff]
        %v547 = vld [vmem:[%s0 + $0x8] sm:$0xff]
        %v548 = vld [vmem:[%s0 + $0x10] sm:$0xff]
        %v549 = vld [vmem:[%s0 + $0x18] sm:$0xff]
        %v550 = vld [vmem:[%s0 + $0x20] sm:$0xff]
        %v551 = vld [vmem:[%s0 + $0x28] sm:$0xff]
        %v552 = vld [vmem:[%s0 + $0x30] sm:$0xff]
        %v553 = vld [vmem:[%s0 + $0x38] sm:$0xff]
        %v554 = vld [vmem:[%s0 + $0x40] sm:$0xff]
        %v555 = vld [vmem:[%s0 + $0x48] sm:$0xff]
        %v556 = vld [vmem:[%s0 + $0x50] sm:$0xff]
        %v557 = vld [vmem:[%s0 + $0x58] sm:$0xff]
        %v558 = vld [vmem:[%s0 + $0x60] sm:$0xff]
        %v559 = vld [vmem:[%s0 + $0x68] sm:$0xff]
        %v560 = vld [vmem:[%s0 + $0x70] sm:$0xff]
        %v561 = vld [vmem:[%s0 + $0x78] sm:$0xff]
        %v562 = vld [vmem:[%s419] sm:$0xff]
        %v563 = vld [vmem:[%s419 + $0x8] sm:$0xff]
        %v564 = vld [vmem:[%s419 + $0x10] sm:$0xff]
        %v565 = vld [vmem:[%s419 + $0x18] sm:$0xff]
        %v566 = vld [vmem:[%s419 + $0x20] sm:$0xff]
        %v567 = vld [vmem:[%s419 + $0x28] sm:$0xff]
        %v568 = vld [vmem:[%s419 + $0x30] sm:$0xff]
        %v569 = vld [vmem:[%s419 + $0x38] sm:$0xff]
        %v570 = vld [vmem:[%s419 + $0x40] sm:$0xff]
        %v571 = vld [vmem:[%s419 + $0x48] sm:$0xff]
        %v572 = vld [vmem:[%s419 + $0x50] sm:$0xff]
        %v573 = vld [vmem:[%s419 + $0x58] sm:$0xff]
        %v574 = vld [vmem:[%s419 + $0x60] sm:$0xff]
        %v575 = vld [vmem:[%s419 + $0x68] sm:$0xff]
        %v576 = vld [vmem:[%s419 + $0x70] sm:$0xff]
        %v577 = vld [vmem:[%s419 + $0x78] sm:$0xff]
        %v578 = vld [vmem:[%s419 + $0x80] sm:$0xff]
        %v579 = vld [vmem:[%s419 + $0x88] sm:$0xff]
        %v580 = vld [vmem:[%s419 + $0x90] sm:$0xff]
        %v581 = vld [vmem:[%s419 + $0x98] sm:$0xff]
        %v582 = vld [vmem:[%s419 + $0xa0] sm:$0xff]
        %v583 = vld [vmem:[%s419 + $0xa8] sm:$0xff]
        %v584 = vld [vmem:[%s419 + $0xb0] sm:$0xff]
        %v585 = vld [vmem:[%s419 + $0xb8] sm:$0xff]
        %v586 = vld [vmem:[%s419 + $0xc0] sm:$0xff]
        %v587 = vld [vmem:[%s419 + $0xc8] sm:$0xff]
        %v588 = vld [vmem:[%s419 + $0xd0] sm:$0xff]
        %v589 = vld [vmem:[%s419 + $0xd8] sm:$0xff]
        %v590 = vld [vmem:[%s419 + $0xe0] sm:$0xff]
        %v591 = vld [vmem:[%s419 + $0xe8] sm:$0xff]
        %v592 = vld [vmem:[%s419 + $0xf0] sm:$0xff]
        %v593 = vld [vmem:[%s419 + $0xf8] sm:$0xff]
        %v594 = vld [vmem:[%s419 + $0x100] sm:$0xff]
        %v595 = vld [vmem:[%s419 + $0x108] sm:$0xff]
        %v596 = vld [vmem:[%s419 + $0x110] sm:$0xff]
        %v597 = vld [vmem:[%s419 + $0x118] sm:$0xff]
        %v598 = vld [vmem:[%s419 + $0x120] sm:$0xff]
        %v599 = vld [vmem:[%s419 + $0x128] sm:$0xff]
        %v600 = vld [vmem:[%s419 + $0x130] sm:$0xff]
        %v601 = vld [vmem:[%s419 + $0x138] sm:$0xff]
        %v602 = vld [vmem:[%s419 + $0x140] sm:$0xff]
        %v603 = vld [vmem:[%s419 + $0x148] sm:$0xff]
        %v604 = vld [vmem:[%s419 + $0x150] sm:$0xff]
        %v605 = vld [vmem:[%s419 + $0x158] sm:$0xff]
        %v606 = vld [vmem:[%s419 + $0x160] sm:$0xff]
        %v607 = vld [vmem:[%s419 + $0x168] sm:$0xff]
        %v608 = vld [vmem:[%s419 + $0x170] sm:$0xff]
        %v609 = vld [vmem:[%s419 + $0x178] sm:$0xff]
        %v610 = vld [vmem:[%s419 + $0x180] sm:$0xff]
        %v611 = vld [vmem:[%s419 + $0x188] sm:$0xff]
        %v612 = vld [vmem:[%s419 + $0x190] sm:$0xff]
        %v613 = vld [vmem:[%s419 + $0x198] sm:$0xff]
        %v614 = vld [vmem:[%s419 + $0x1a0] sm:$0xff]
        %v615 = vld [vmem:[%s419 + $0x1a8] sm:$0xff]
        %v616 = vld [vmem:[%s419 + $0x1b0] sm:$0xff]
        %v617 = vld [vmem:[%s419 + $0x1b8] sm:$0xff]
        %v618 = vld [vmem:[%s419 + $0x1c0] sm:$0xff]
        %v619 = vld [vmem:[%s419 + $0x1c8] sm:$0xff]
        %v620 = vld [vmem:[%s419 + $0x1d0] sm:$0xff]
        %v621 = vld [vmem:[%s419 + $0x1d8] sm:$0xff]
        %v622 = vld [vmem:[%s419 + $0x1e0] sm:$0xff]
        %v623 = vld [vmem:[%s419 + $0x1e8] sm:$0xff]
        %v624 = vld [vmem:[%s419 + $0x1f0] sm:$0xff]
        %v625 = vld [vmem:[%s419 + $0x1f8] sm:$0xff]
        %v626 = vld [vmem:[%s419 + $0x200] sm:$0xff]
        %v627 = vld [vmem:[%s419 + $0x208] sm:$0xff]
        %v628 = vld [vmem:[%s419 + $0x210] sm:$0xff]
        %v629 = vld [vmem:[%s419 + $0x218] sm:$0xff]
        %v630 = vld [vmem:[%s419 + $0x220] sm:$0xff]
        %v631 = vld [vmem:[%s419 + $0x228] sm:$0xff]
        %v632 = vld [vmem:[%s419 + $0x230] sm:$0xff]
        %v633 = vld [vmem:[%s419 + $0x238] sm:$0xff]
        %v634 = vld [vmem:[%s419 + $0x240] sm:$0xff]
        %v635 = vld [vmem:[%s419 + $0x248] sm:$0xff]
        %v636 = vld [vmem:[%s419 + $0x250] sm:$0xff]
        %v637 = vld [vmem:[%s419 + $0x258] sm:$0xff]
        %v638 = vld [vmem:[%s419 + $0x260] sm:$0xff]
        %v639 = vld [vmem:[%s419 + $0x268] sm:$0xff]
        %v640 = vld [vmem:[%s419 + $0x270] sm:$0xff]
        %v641 = vld [vmem:[%s419 + $0x278] sm:$0xff]
        %v642 = vld [vmem:[%s419 + $0x280] sm:$0xff]
        %v643 = vld [vmem:[%s419 + $0x288] sm:$0xff]
        %v644 = vld [vmem:[%s419 + $0x290] sm:$0xff]
        %v645 = vld [vmem:[%s419 + $0x298] sm:$0xff]
        %v646 = vld [vmem:[%s419 + $0x2a0] sm:$0xff]
        %v647 = vld [vmem:[%s419 + $0x2a8] sm:$0xff]
        %v648 = vld [vmem:[%s419 + $0x2b0] sm:$0xff]
        %v649 = vld [vmem:[%s419 + $0x2b8] sm:$0xff]
        %v650 = vld [vmem:[%s419 + $0x2c0] sm:$0xff]
        %v651 = vld [vmem:[%s419 + $0x2c8] sm:$0xff]
        %v652 = vld [vmem:[%s419 + $0x2d0] sm:$0xff]
        %v653 = vld [vmem:[%s419 + $0x2d8] sm:$0xff]
        %v654 = vld [vmem:[%s419 + $0x2e0] sm:$0xff]
        %v655 = vld [vmem:[%s419 + $0x2e8] sm:$0xff]
        %v656 = vld [vmem:[%s419 + $0x2f0] sm:$0xff]
        %v657 = vld [vmem:[%s419 + $0x2f8] sm:$0xff]
        %v658 = vld [vmem:[%s419 + $0x300] sm:$0xff]
        %v659 = vld [vmem:[%s419 + $0x308] sm:$0xff]
        %v660 = vld [vmem:[%s419 + $0x310] sm:$0xff]
        %v661 = vld [vmem:[%s419 + $0x318] sm:$0xff]
        %v662 = vld [vmem:[%s419 + $0x320] sm:$0xff]
        %v663 = vld [vmem:[%s419 + $0x328] sm:$0xff]
        %v664 = vld [vmem:[%s419 + $0x330] sm:$0xff]
        %v665 = vld [vmem:[%s419 + $0x338] sm:$0xff]
        %v666 = vld [vmem:[%s419 + $0x340] sm:$0xff]
        %v667 = vld [vmem:[%s419 + $0x348] sm:$0xff]
        %v668 = vld [vmem:[%s419 + $0x350] sm:$0xff]
        %v669 = vld [vmem:[%s419 + $0x358] sm:$0xff]
        %v670 = vld [vmem:[%s419 + $0x360] sm:$0xff]
        %v671 = vld [vmem:[%s419 + $0x368] sm:$0xff]
        %v672 = vld [vmem:[%s419 + $0x370] sm:$0xff]
        %v673 = vld [vmem:[%s419 + $0x378] sm:$0xff]
        %v674 = vld [vmem:[%s419 + $0x380] sm:$0xff]
        %v675 = vld [vmem:[%s419 + $0x388] sm:$0xff]
        %v676 = vld [vmem:[%s419 + $0x390] sm:$0xff]
        %v677 = vld [vmem:[%s419 + $0x398] sm:$0xff]
        %v678 = vld [vmem:[%s419 + $0x3a0] sm:$0xff]
        %v679 = vld [vmem:[%s419 + $0x3a8] sm:$0xff]
        %v680 = vld [vmem:[%s419 + $0x3b0] sm:$0xff]
        %v681 = vld [vmem:[%s419 + $0x3b8] sm:$0xff]
        %v682 = vld [vmem:[%s419 + $0x3c0] sm:$0xff]
        %v683 = vld [vmem:[%s419 + $0x3c8] sm:$0xff]
        %v684 = vld [vmem:[%s419 + $0x3d0] sm:$0xff]
        %v685 = vld [vmem:[%s419 + $0x3d8] sm:$0xff]
        %v686 = vld [vmem:[%s419 + $0x3e0] sm:$0xff]
        %v687 = vld [vmem:[%s419 + $0x3e8] sm:$0xff]
        %v688 = vld [vmem:[%s419 + $0x3f0] sm:$0xff]
        %v689 = vld [vmem:[%s419 + $0x3f8] sm:$0xff]
        %v690 = vld [vmem:[%s419 + $0x400] sm:$0xff]
        %v691 = vld [vmem:[%s419 + $0x408] sm:$0xff]
        %v692 = vld [vmem:[%s419 + $0x410] sm:$0xff]
        %v693 = vld [vmem:[%s419 + $0x418] sm:$0xff]
        %v694 = vld [vmem:[%s419 + $0x420] sm:$0xff]
        %v695 = vld [vmem:[%s419 + $0x428] sm:$0xff]
        %v696 = vld [vmem:[%s419 + $0x430] sm:$0xff]
        %v697 = vld [vmem:[%s419 + $0x438] sm:$0xff]
        %v698 = vld [vmem:[%s419 + $0x440] sm:$0xff]
        %v699 = vld [vmem:[%s419 + $0x448] sm:$0xff]
        %v700 = vld [vmem:[%s419 + $0x450] sm:$0xff]
        %v701 = vld [vmem:[%s419 + $0x458] sm:$0xff]
        %v702 = vld [vmem:[%s419 + $0x460] sm:$0xff]
        %v703 = vld [vmem:[%s419 + $0x468] sm:$0xff]
        %v704 = vld [vmem:[%s419 + $0x470] sm:$0xff]
        %v705 = vld [vmem:[%s419 + $0x478] sm:$0xff]
        %v706 = vld [vmem:[%s419 + $0x480] sm:$0xff]
        %v707 = vld [vmem:[%s419 + $0x488] sm:$0xff]
        %v708 = vld [vmem:[%s419 + $0x490] sm:$0xff]
        %v709 = vld [vmem:[%s419 + $0x498] sm:$0xff]
        %v710 = vld [vmem:[%s419 + $0x4a0] sm:$0xff]
        %v711 = vld [vmem:[%s419 + $0x4a8] sm:$0xff]
        %v712 = vld [vmem:[%s419 + $0x4b0] sm:$0xff]
        %v713 = vld [vmem:[%s419 + $0x4b8] sm:$0xff]
        %v714 = vld [vmem:[%s419 + $0x4c0] sm:$0xff]
        %v715 = vld [vmem:[%s419 + $0x4c8] sm:$0xff]
        %v716 = vld [vmem:[%s419 + $0x4d0] sm:$0xff]
        %v717 = vld [vmem:[%s419 + $0x4d8] sm:$0xff]
        %v718 = vld [vmem:[%s419 + $0x4e0] sm:$0xff]
        %v719 = vld [vmem:[%s419 + $0x4e8] sm:$0xff]
        %v720 = vld [vmem:[%s419 + $0x4f0] sm:$0xff]
        %v721 = vld [vmem:[%s419 + $0x4f8] sm:$0xff]
        %v722 = vld [vmem:[%s419 + $0x500] sm:$0xff]
        %v723 = vld [vmem:[%s419 + $0x508] sm:$0xff]
        %v724 = vld [vmem:[%s419 + $0x510] sm:$0xff]
        %v725 = vld [vmem:[%s419 + $0x518] sm:$0xff]
        %v726 = vld [vmem:[%s419 + $0x520] sm:$0xff]
        %v727 = vld [vmem:[%s419 + $0x528] sm:$0xff]
        %v728 = vld [vmem:[%s419 + $0x530] sm:$0xff]
        %v729 = vld [vmem:[%s419 + $0x538] sm:$0xff]
        %v730 = vld [vmem:[%s419 + $0x540] sm:$0xff]
        %v731 = vld [vmem:[%s419 + $0x548] sm:$0xff]
        %v732 = vld [vmem:[%s419 + $0x550] sm:$0xff]
        %v733 = vld [vmem:[%s419 + $0x558] sm:$0xff]
        %v734 = vld [vmem:[%s419 + $0x560] sm:$0xff]
        %v735 = vld [vmem:[%s419 + $0x568] sm:$0xff]
        %v736 = vld [vmem:[%s419 + $0x570] sm:$0xff]
        %v737 = vld [vmem:[%s419 + $0x578] sm:$0xff]
        %v738 = vld [vmem:[%s419 + $0x580] sm:$0xff]
        %v739 = vld [vmem:[%s419 + $0x588] sm:$0xff]
        %v740 = vld [vmem:[%s419 + $0x590] sm:$0xff]
        %v741 = vld [vmem:[%s419 + $0x598] sm:$0xff]
        %v742 = vld [vmem:[%s419 + $0x5a0] sm:$0xff]
        %v743 = vld [vmem:[%s419 + $0x5a8] sm:$0xff]
        %v744 = vld [vmem:[%s419 + $0x5b0] sm:$0xff]
        %v745 = vld [vmem:[%s419 + $0x5b8] sm:$0xff]
        %v746 = vld [vmem:[%s419 + $0x5c0] sm:$0xff]
        %v747 = vld [vmem:[%s419 + $0x5c8] sm:$0xff]
        %v748 = vld [vmem:[%s419 + $0x5d0] sm:$0xff]
        %v749 = vld [vmem:[%s419 + $0x5d8] sm:$0xff]
        %v750 = vld [vmem:[%s419 + $0x5e0] sm:$0xff]
        %v751 = vld [vmem:[%s419 + $0x5e8] sm:$0xff]
        %v752 = vld [vmem:[%s419 + $0x5f0] sm:$0xff]
        %v753 = vld [vmem:[%s419 + $0x5f8] sm:$0xff]
        %v754 = vld [vmem:[%s419 + $0x600] sm:$0xff]
        %v755 = vld [vmem:[%s419 + $0x608] sm:$0xff]
        %v756 = vld [vmem:[%s419 + $0x610] sm:$0xff]
        %v757 = vld [vmem:[%s419 + $0x618] sm:$0xff]
        %v758 = vld [vmem:[%s419 + $0x620] sm:$0xff]
        %v759 = vld [vmem:[%s419 + $0x628] sm:$0xff]
        %v760 = vld [vmem:[%s419 + $0x630] sm:$0xff]
        %v761 = vld [vmem:[%s419 + $0x638] sm:$0xff]
        %v762 = vld [vmem:[%s419 + $0x640] sm:$0xff]
        %v763 = vld [vmem:[%s419 + $0x648] sm:$0xff]
        %v764 = vld [vmem:[%s419 + $0x650] sm:$0xff]
        %v765 = vld [vmem:[%s419 + $0x658] sm:$0xff]
        %v766 = vld [vmem:[%s419 + $0x660] sm:$0xff]
        %v767 = vld [vmem:[%s419 + $0x668] sm:$0xff]
        %v768 = vld [vmem:[%s419 + $0x670] sm:$0xff]
        %v769 = vld [vmem:[%s419 + $0x678] sm:$0xff]
        %v770 = vld [vmem:[%s419 + $0x680] sm:$0xff]
        %v771 = vld [vmem:[%s419 + $0x688] sm:$0xff]
        %v772 = vld [vmem:[%s419 + $0x690] sm:$0xff]
        %v773 = vld [vmem:[%s419 + $0x698] sm:$0xff]
        %v774 = vld [vmem:[%s419 + $0x6a0] sm:$0xff]
        %v775 = vld [vmem:[%s419 + $0x6a8] sm:$0xff]
        %v776 = vld [vmem:[%s419 + $0x6b0] sm:$0xff]
        %v777 = vld [vmem:[%s419 + $0x6b8] sm:$0xff]
        %v778 = vld [vmem:[%s419 + $0x6c0] sm:$0xff]
        %v779 = vld [vmem:[%s419 + $0x6c8] sm:$0xff]
        %v780 = vld [vmem:[%s419 + $0x6d0] sm:$0xff]
        %v781 = vld [vmem:[%s419 + $0x6d8] sm:$0xff]
        %v782 = vld [vmem:[%s419 + $0x6e0] sm:$0xff]
        %v783 = vld [vmem:[%s419 + $0x6e8] sm:$0xff]
        %v784 = vld [vmem:[%s419 + $0x6f0] sm:$0xff]
        %v785 = vld [vmem:[%s419 + $0x6f8] sm:$0xff]
        %v786 = vld [vmem:[%s419 + $0x700] sm:$0xff]
        %v787 = vld [vmem:[%s419 + $0x708] sm:$0xff]
        %v788 = vld [vmem:[%s419 + $0x710] sm:$0xff]
        %v789 = vld [vmem:[%s419 + $0x718] sm:$0xff]
        %v790 = vld [vmem:[%s419 + $0x720] sm:$0xff]
        %v791 = vld [vmem:[%s419 + $0x728] sm:$0xff]
        %v792 = vld [vmem:[%s419 + $0x730] sm:$0xff]
        %v793 = vld [vmem:[%s419 + $0x738] sm:$0xff]
        %v794 = vld [vmem:[%s419 + $0x740] sm:$0xff]
        %v795 = vld [vmem:[%s419 + $0x748] sm:$0xff]
        %v796 = vld [vmem:[%s419 + $0x750] sm:$0xff]
        %v797 = vld [vmem:[%s419 + $0x758] sm:$0xff]
        %v798 = vld [vmem:[%s419 + $0x760] sm:$0xff]
        %v799 = vld [vmem:[%s419 + $0x768] sm:$0xff]
        %v800 = vld [vmem:[%s419 + $0x770] sm:$0xff]
        %v801 = vld [vmem:[%s419 + $0x778] sm:$0xff]
        %v802 = vld [vmem:[%s419 + $0x780] sm:$0xff]
        %v803 = vld [vmem:[%s419 + $0x788] sm:$0xff]
        %v804 = vld [vmem:[%s419 + $0x790] sm:$0xff]
        %v805 = vld [vmem:[%s419 + $0x798] sm:$0xff]
        %v806 = vld [vmem:[%s419 + $0x7a0] sm:$0xff]
        %v807 = vld [vmem:[%s419 + $0x7a8] sm:$0xff]
        %v808 = vld [vmem:[%s419 + $0x7b0] sm:$0xff]
        %v809 = vld [vmem:[%s419 + $0x7b8] sm:$0xff]
        %v810 = vld [vmem:[%s419 + $0x7c0] sm:$0xff]
        %v811 = vld [vmem:[%s419 + $0x7c8] sm:$0xff]
        %v812 = vld [vmem:[%s419 + $0x7d0] sm:$0xff]
        %v813 = vld [vmem:[%s419 + $0x7d8] sm:$0xff]
        %v814 = vld [vmem:[%s419 + $0x7e0] sm:$0xff]
        %v815 = vld [vmem:[%s419 + $0x7e8] sm:$0xff]
        %v816 = vld [vmem:[%s419 + $0x7f0] sm:$0xff]
        %v817 = vld [vmem:[%s419 + $0x7f8] sm:$0xff]
        %v818 = vld [vmem:[%s429] sm:$0xff]
        %v820 = vperm.slane %v818, 0
        %v821 = vperm.slane %v818, 1
        %v822 = vperm.slane %v818, 2
        %v823 = vperm.slane %v818, 3
        %v824 = vperm.slane %v818, 4
        %v825 = vperm.slane %v818, 5
        %v826 = vperm.slane %v818, 6
        %v827 = vperm.slane %v818, 7
        %v852 = vunpack.c.l.b16 %v546
        %v853 = vunpack.c.h.b16 %v546
        %v854 = vunpack.c.l.b16 %v547
        %v855 = vunpack.c.h.b16 %v547
        %v856 = vunpack.c.l.b16 %v548
        %v857 = vunpack.c.h.b16 %v548
        %v858 = vunpack.c.l.b16 %v549
        %v859 = vunpack.c.h.b16 %v549
        %v860 = vunpack.c.l.b16 %v550
        %v861 = vunpack.c.h.b16 %v550
        %v862 = vunpack.c.l.b16 %v551
        %v863 = vunpack.c.h.b16 %v551
        %v864 = vunpack.c.l.b16 %v552
        %v865 = vunpack.c.h.b16 %v552
        %v866 = vunpack.c.l.b16 %v553
        %v867 = vunpack.c.h.b16 %v553
        %v868 = vunpack.c.l.b16 %v554
        %v869 = vunpack.c.h.b16 %v554
        %v870 = vunpack.c.l.b16 %v555
        %v871 = vunpack.c.h.b16 %v555
        %v872 = vunpack.c.l.b16 %v556
        %v873 = vunpack.c.h.b16 %v556
        %v874 = vunpack.c.l.b16 %v557
        %v875 = vunpack.c.h.b16 %v557
        %v876 = vunpack.c.l.b16 %v558
        %v877 = vunpack.c.h.b16 %v558
        %v878 = vunpack.c.l.b16 %v559
        %v879 = vunpack.c.h.b16 %v559
        %v880 = vunpack.c.l.b16 %v560
        %v881 = vunpack.c.h.b16 %v560
        %v882 = vunpack.c.l.b16 %v561
        %v883 = vunpack.c.h.b16 %v561
        %v884 = vpack.c.b16 %v856, %v852
        %v885 = vpack.c.b16 %v857, %v853
        %v886 = vpack.c.b16 %v858, %v854
        %v887 = vpack.c.b16 %v859, %v855
        %v888 = vpack.c.b16 %v864, %v860
        %v889 = vpack.c.b16 %v865, %v861
        %v890 = vpack.c.b16 %v866, %v862
        %v891 = vpack.c.b16 %v867, %v863
        %v892 = vpack.c.b16 %v872, %v868
        %v893 = vpack.c.b16 %v873, %v869
        %v894 = vpack.c.b16 %v874, %v870
        %v895 = vpack.c.b16 %v875, %v871
        %v896 = vpack.c.b16 %v880, %v876
        %v897 = vpack.c.b16 %v881, %v877
        %v898 = vpack.c.b16 %v882, %v878
        %v899 = vpack.c.b16 %v883, %v879
        %v1172 = vunpack.c.l.b16 %v562
        %v1173 = vunpack.c.h.b16 %v562
        %v1174 = vunpack.c.l.b16 %v563
        %v1175 = vunpack.c.h.b16 %v563
        %v1176 = vunpack.c.l.b16 %v564
        %v1177 = vunpack.c.h.b16 %v564
        %v1178 = vunpack.c.l.b16 %v565
        %v1179 = vunpack.c.h.b16 %v565
        %v1180 = vunpack.c.l.b16 %v566
        %v1181 = vunpack.c.h.b16 %v566
        %v1182 = vunpack.c.l.b16 %v567
        %v1183 = vunpack.c.h.b16 %v567
        %v1184 = vunpack.c.l.b16 %v568
        %v1185 = vunpack.c.h.b16 %v568
        %v1186 = vunpack.c.l.b16 %v569
        %v1187 = vunpack.c.h.b16 %v569
        %v1188 = vunpack.c.l.b16 %v570
        %v1189 = vunpack.c.h.b16 %v570
        %v1190 = vunpack.c.l.b16 %v571
        %v1191 = vunpack.c.h.b16 %v571
        %v1192 = vunpack.c.l.b16 %v572
        %v1193 = vunpack.c.h.b16 %v572
        %v1194 = vunpack.c.l.b16 %v573
        %v1195 = vunpack.c.h.b16 %v573
        %v1196 = vunpack.c.l.b16 %v574
        %v1197 = vunpack.c.h.b16 %v574
        %v1198 = vunpack.c.l.b16 %v575
        %v1199 = vunpack.c.h.b16 %v575
        %v1200 = vunpack.c.l.b16 %v576
        %v1201 = vunpack.c.h.b16 %v576
        %v1202 = vunpack.c.l.b16 %v577
        %v1203 = vunpack.c.h.b16 %v577
        %v1204 = vunpack.c.l.b16 %v578
        %v1205 = vunpack.c.h.b16 %v578
        %v1206 = vunpack.c.l.b16 %v579
        %v1207 = vunpack.c.h.b16 %v579
        %v1208 = vunpack.c.l.b16 %v580
        %v1209 = vunpack.c.h.b16 %v580
        %v1210 = vunpack.c.l.b16 %v581
        %v1211 = vunpack.c.h.b16 %v581
        %v1212 = vunpack.c.l.b16 %v582
        %v1213 = vunpack.c.h.b16 %v582
        %v1214 = vunpack.c.l.b16 %v583
        %v1215 = vunpack.c.h.b16 %v583
        %v1216 = vunpack.c.l.b16 %v584
        %v1217 = vunpack.c.h.b16 %v584
        %v1218 = vunpack.c.l.b16 %v585
        %v1219 = vunpack.c.h.b16 %v585
        %v1220 = vunpack.c.l.b16 %v586
        %v1221 = vunpack.c.h.b16 %v586
        %v1222 = vunpack.c.l.b16 %v587
        %v1223 = vunpack.c.h.b16 %v587
        %v1224 = vunpack.c.l.b16 %v588
        %v1225 = vunpack.c.h.b16 %v588
        %v1226 = vunpack.c.l.b16 %v589
        %v1227 = vunpack.c.h.b16 %v589
        %v1228 = vunpack.c.l.b16 %v590
        %v1229 = vunpack.c.h.b16 %v590
        %v1230 = vunpack.c.l.b16 %v591
        %v1231 = vunpack.c.h.b16 %v591
        %v1232 = vunpack.c.l.b16 %v592
        %v1233 = vunpack.c.h.b16 %v592
        %v1234 = vunpack.c.l.b16 %v593
        %v1235 = vunpack.c.h.b16 %v593
        %v1236 = vunpack.c.l.b16 %v594
        %v1237 = vunpack.c.h.b16 %v594
        %v1238 = vunpack.c.l.b16 %v595
        %v1239 = vunpack.c.h.b16 %v595
        %v1240 = vunpack.c.l.b16 %v596
        %v1241 = vunpack.c.h.b16 %v596
        %v1242 = vunpack.c.l.b16 %v597
        %v1243 = vunpack.c.h.b16 %v597
        %v1244 = vunpack.c.l.b16 %v598
        %v1245 = vunpack.c.h.b16 %v598
        %v1246 = vunpack.c.l.b16 %v599
        %v1247 = vunpack.c.h.b16 %v599
        %v1248 = vunpack.c.l.b16 %v600
        %v1249 = vunpack.c.h.b16 %v600
        %v1250 = vunpack.c.l.b16 %v601
        %v1251 = vunpack.c.h.b16 %v601
        %v1252 = vunpack.c.l.b16 %v602
        %v1253 = vunpack.c.h.b16 %v602
        %v1254 = vunpack.c.l.b16 %v603
        %v1255 = vunpack.c.h.b16 %v603
        %v1256 = vunpack.c.l.b16 %v604
        %v1257 = vunpack.c.h.b16 %v604
        %v1258 = vunpack.c.l.b16 %v605
        %v1259 = vunpack.c.h.b16 %v605
        %v1260 = vunpack.c.l.b16 %v606
        %v1261 = vunpack.c.h.b16 %v606
        %v1262 = vunpack.c.l.b16 %v607
        %v1263 = vunpack.c.h.b16 %v607
        %v1264 = vunpack.c.l.b16 %v608
        %v1265 = vunpack.c.h.b16 %v608
        %v1266 = vunpack.c.l.b16 %v609
        %v1267 = vunpack.c.h.b16 %v609
        %v1268 = vunpack.c.l.b16 %v610
        %v1269 = vunpack.c.h.b16 %v610
        %v1270 = vunpack.c.l.b16 %v611
        %v1271 = vunpack.c.h.b16 %v611
        %v1272 = vunpack.c.l.b16 %v612
        %v1273 = vunpack.c.h.b16 %v612
        %v1274 = vunpack.c.l.b16 %v613
        %v1275 = vunpack.c.h.b16 %v613
        %v1276 = vunpack.c.l.b16 %v614
        %v1277 = vunpack.c.h.b16 %v614
        %v1278 = vunpack.c.l.b16 %v615
        %v1279 = vunpack.c.h.b16 %v615
        %v1280 = vunpack.c.l.b16 %v616
        %v1281 = vunpack.c.h.b16 %v616
        %v1282 = vunpack.c.l.b16 %v617
        %v1283 = vunpack.c.h.b16 %v617
        %v1284 = vunpack.c.l.b16 %v618
        %v1285 = vunpack.c.h.b16 %v618
        %v1286 = vunpack.c.l.b16 %v619
        %v1287 = vunpack.c.h.b16 %v619
        %v1288 = vunpack.c.l.b16 %v620
        %v1289 = vunpack.c.h.b16 %v620
        %v1290 = vunpack.c.l.b16 %v621
        %v1291 = vunpack.c.h.b16 %v621
        %v1292 = vunpack.c.l.b16 %v622
        %v1293 = vunpack.c.h.b16 %v622
        %v1294 = vunpack.c.l.b16 %v623
        %v1295 = vunpack.c.h.b16 %v623
        %v1296 = vunpack.c.l.b16 %v624
        %v1297 = vunpack.c.h.b16 %v624
        %v1298 = vunpack.c.l.b16 %v625
        %v1299 = vunpack.c.h.b16 %v625
        %v1300 = vunpack.c.l.b16 %v626
        %v1301 = vunpack.c.h.b16 %v626
        %v1302 = vunpack.c.l.b16 %v627
        %v1303 = vunpack.c.h.b16 %v627
        %v1304 = vunpack.c.l.b16 %v628
        %v1305 = vunpack.c.h.b16 %v628
        %v1306 = vunpack.c.l.b16 %v629
        %v1307 = vunpack.c.h.b16 %v629
        %v1308 = vunpack.c.l.b16 %v630
        %v1309 = vunpack.c.h.b16 %v630
        %v1310 = vunpack.c.l.b16 %v631
        %v1311 = vunpack.c.h.b16 %v631
        %v1312 = vunpack.c.l.b16 %v632
        %v1313 = vunpack.c.h.b16 %v632
        %v1314 = vunpack.c.l.b16 %v633
        %v1315 = vunpack.c.h.b16 %v633
        %v1316 = vunpack.c.l.b16 %v634
        %v1317 = vunpack.c.h.b16 %v634
        %v1318 = vunpack.c.l.b16 %v635
        %v1319 = vunpack.c.h.b16 %v635
        %v1320 = vunpack.c.l.b16 %v636
        %v1321 = vunpack.c.h.b16 %v636
        %v1322 = vunpack.c.l.b16 %v637
        %v1323 = vunpack.c.h.b16 %v637
        %v1324 = vunpack.c.l.b16 %v638
        %v1325 = vunpack.c.h.b16 %v638
        %v1326 = vunpack.c.l.b16 %v639
        %v1327 = vunpack.c.h.b16 %v639
        %v1328 = vunpack.c.l.b16 %v640
        %v1329 = vunpack.c.h.b16 %v640
        %v1330 = vunpack.c.l.b16 %v641
        %v1331 = vunpack.c.h.b16 %v641
        %v1332 = vunpack.c.l.b16 %v642
        %v1333 = vunpack.c.h.b16 %v642
        %v1334 = vunpack.c.l.b16 %v643
        %v1335 = vunpack.c.h.b16 %v643
        %v1336 = vunpack.c.l.b16 %v644
        %v1337 = vunpack.c.h.b16 %v644
        %v1338 = vunpack.c.l.b16 %v645
        %v1339 = vunpack.c.h.b16 %v645
        %v1340 = vunpack.c.l.b16 %v646
        %v1341 = vunpack.c.h.b16 %v646
        %v1342 = vunpack.c.l.b16 %v647
        %v1343 = vunpack.c.h.b16 %v647
        %v1344 = vunpack.c.l.b16 %v648
        %v1345 = vunpack.c.h.b16 %v648
        %v1346 = vunpack.c.l.b16 %v649
        %v1347 = vunpack.c.h.b16 %v649
        %v1348 = vunpack.c.l.b16 %v650
        %v1349 = vunpack.c.h.b16 %v650
        %v1350 = vunpack.c.l.b16 %v651
        %v1351 = vunpack.c.h.b16 %v651
        %v1352 = vunpack.c.l.b16 %v652
        %v1353 = vunpack.c.h.b16 %v652
        %v1354 = vunpack.c.l.b16 %v653
        %v1355 = vunpack.c.h.b16 %v653
        %v1356 = vunpack.c.l.b16 %v654
        %v1357 = vunpack.c.h.b16 %v654
        %v1358 = vunpack.c.l.b16 %v655
        %v1359 = vunpack.c.h.b16 %v655
        %v1360 = vunpack.c.l.b16 %v656
        %v1361 = vunpack.c.h.b16 %v656
        %v1362 = vunpack.c.l.b16 %v657
        %v1363 = vunpack.c.h.b16 %v657
        %v1364 = vunpack.c.l.b16 %v658
        %v1365 = vunpack.c.h.b16 %v658
        %v1366 = vunpack.c.l.b16 %v659
        %v1367 = vunpack.c.h.b16 %v659
        %v1368 = vunpack.c.l.b16 %v660
        %v1369 = vunpack.c.h.b16 %v660
        %v1370 = vunpack.c.l.b16 %v661
        %v1371 = vunpack.c.h.b16 %v661
        %v1372 = vunpack.c.l.b16 %v662
        %v1373 = vunpack.c.h.b16 %v662
        %v1374 = vunpack.c.l.b16 %v663
        %v1375 = vunpack.c.h.b16 %v663
        %v1376 = vunpack.c.l.b16 %v664
        %v1377 = vunpack.c.h.b16 %v664
        %v1378 = vunpack.c.l.b16 %v665
        %v1379 = vunpack.c.h.b16 %v665
        %v1380 = vunpack.c.l.b16 %v666
        %v1381 = vunpack.c.h.b16 %v666
        %v1382 = vunpack.c.l.b16 %v667
        %v1383 = vunpack.c.h.b16 %v667
        %v1384 = vunpack.c.l.b16 %v668
        %v1385 = vunpack.c.h.b16 %v668
        %v1386 = vunpack.c.l.b16 %v669
        %v1387 = vunpack.c.h.b16 %v669
        %v1388 = vunpack.c.l.b16 %v670
        %v1389 = vunpack.c.h.b16 %v670
        %v1390 = vunpack.c.l.b16 %v671
        %v1391 = vunpack.c.h.b16 %v671
        %v1392 = vunpack.c.l.b16 %v672
        %v1393 = vunpack.c.h.b16 %v672
        %v1394 = vunpack.c.l.b16 %v673
        %v1395 = vunpack.c.h.b16 %v673
        %v1396 = vunpack.c.l.b16 %v674
        %v1397 = vunpack.c.h.b16 %v674
        %v1398 = vunpack.c.l.b16 %v675
        %v1399 = vunpack.c.h.b16 %v675
        %v1400 = vunpack.c.l.b16 %v676
        %v1401 = vunpack.c.h.b16 %v676
        %v1402 = vunpack.c.l.b16 %v677
        %v1403 = vunpack.c.h.b16 %v677
        %v1404 = vunpack.c.l.b16 %v678
        %v1405 = vunpack.c.h.b16 %v678
        %v1406 = vunpack.c.l.b16 %v679
        %v1407 = vunpack.c.h.b16 %v679
        %v1408 = vunpack.c.l.b16 %v680
        %v1409 = vunpack.c.h.b16 %v680
        %v1410 = vunpack.c.l.b16 %v681
        %v1411 = vunpack.c.h.b16 %v681
        %v1412 = vunpack.c.l.b16 %v682
        %v1413 = vunpack.c.h.b16 %v682
        %v1414 = vunpack.c.l.b16 %v683
        %v1415 = vunpack.c.h.b16 %v683
        %v1416 = vunpack.c.l.b16 %v684
        %v1417 = vunpack.c.h.b16 %v684
        %v1418 = vunpack.c.l.b16 %v685
        %v1419 = vunpack.c.h.b16 %v685
        %v1420 = vunpack.c.l.b16 %v686
        %v1421 = vunpack.c.h.b16 %v686
        %v1422 = vunpack.c.l.b16 %v687
        %v1423 = vunpack.c.h.b16 %v687
        %v1424 = vunpack.c.l.b16 %v688
        %v1425 = vunpack.c.h.b16 %v688
        %v1426 = vunpack.c.l.b16 %v689
        %v1427 = vunpack.c.h.b16 %v689
        %v1428 = vunpack.c.l.b16 %v690
        %v1429 = vunpack.c.h.b16 %v690
        %v1430 = vunpack.c.l.b16 %v691
        %v1431 = vunpack.c.h.b16 %v691
        %v1432 = vunpack.c.l.b16 %v692
        %v1433 = vunpack.c.h.b16 %v692
        %v1434 = vunpack.c.l.b16 %v693
        %v1435 = vunpack.c.h.b16 %v693
        %v1436 = vunpack.c.l.b16 %v694
        %v1437 = vunpack.c.h.b16 %v694
        %v1438 = vunpack.c.l.b16 %v695
        %v1439 = vunpack.c.h.b16 %v695
        %v1440 = vunpack.c.l.b16 %v696
        %v1441 = vunpack.c.h.b16 %v696
        %v1442 = vunpack.c.l.b16 %v697
        %v1443 = vunpack.c.h.b16 %v697
        %v1444 = vunpack.c.l.b16 %v698
        %v1445 = vunpack.c.h.b16 %v698
        %v1446 = vunpack.c.l.b16 %v699
        %v1447 = vunpack.c.h.b16 %v699
        %v1448 = vunpack.c.l.b16 %v700
        %v1449 = vunpack.c.h.b16 %v700
        %v1450 = vunpack.c.l.b16 %v701
        %v1451 = vunpack.c.h.b16 %v701
        %v1452 = vunpack.c.l.b16 %v702
        %v1453 = vunpack.c.h.b16 %v702
        %v1454 = vunpack.c.l.b16 %v703
        %v1455 = vunpack.c.h.b16 %v703
        %v1456 = vunpack.c.l.b16 %v704
        %v1457 = vunpack.c.h.b16 %v704
        %v1458 = vunpack.c.l.b16 %v705
        %v1459 = vunpack.c.h.b16 %v705
        %v1460 = vunpack.c.l.b16 %v706
        %v1461 = vunpack.c.h.b16 %v706
        %v1462 = vunpack.c.l.b16 %v707
        %v1463 = vunpack.c.h.b16 %v707
        %v1464 = vunpack.c.l.b16 %v708
        %v1465 = vunpack.c.h.b16 %v708
        %v1466 = vunpack.c.l.b16 %v709
        %v1467 = vunpack.c.h.b16 %v709
        %v1468 = vunpack.c.l.b16 %v710
        %v1469 = vunpack.c.h.b16 %v710
        %v1470 = vunpack.c.l.b16 %v711
        %v1471 = vunpack.c.h.b16 %v711
        %v1472 = vunpack.c.l.b16 %v712
        %v1473 = vunpack.c.h.b16 %v712
        %v1474 = vunpack.c.l.b16 %v713
        %v1475 = vunpack.c.h.b16 %v713
        %v1476 = vunpack.c.l.b16 %v714
        %v1477 = vunpack.c.h.b16 %v714
        %v1478 = vunpack.c.l.b16 %v715
        %v1479 = vunpack.c.h.b16 %v715
        %v1480 = vunpack.c.l.b16 %v716
        %v1481 = vunpack.c.h.b16 %v716
        %v1482 = vunpack.c.l.b16 %v717
        %v1483 = vunpack.c.h.b16 %v717
        %v1484 = vunpack.c.l.b16 %v718
        %v1485 = vunpack.c.h.b16 %v718
        %v1486 = vunpack.c.l.b16 %v719
        %v1487 = vunpack.c.h.b16 %v719
        %v1488 = vunpack.c.l.b16 %v720
        %v1489 = vunpack.c.h.b16 %v720
        %v1490 = vunpack.c.l.b16 %v721
        %v1491 = vunpack.c.h.b16 %v721
        %v1492 = vunpack.c.l.b16 %v722
        %v1493 = vunpack.c.h.b16 %v722
        %v1494 = vunpack.c.l.b16 %v723
        %v1495 = vunpack.c.h.b16 %v723
        %v1496 = vunpack.c.l.b16 %v724
        %v1497 = vunpack.c.h.b16 %v724
        %v1498 = vunpack.c.l.b16 %v725
        %v1499 = vunpack.c.h.b16 %v725
        %v1500 = vunpack.c.l.b16 %v726
        %v1501 = vunpack.c.h.b16 %v726
        %v1502 = vunpack.c.l.b16 %v727
        %v1503 = vunpack.c.h.b16 %v727
        %v1504 = vunpack.c.l.b16 %v728
        %v1505 = vunpack.c.h.b16 %v728
        %v1506 = vunpack.c.l.b16 %v729
        %v1507 = vunpack.c.h.b16 %v729
        %v1508 = vunpack.c.l.b16 %v730
        %v1509 = vunpack.c.h.b16 %v730
        %v1510 = vunpack.c.l.b16 %v731
        %v1511 = vunpack.c.h.b16 %v731
        %v1512 = vunpack.c.l.b16 %v732
        %v1513 = vunpack.c.h.b16 %v732
        %v1514 = vunpack.c.l.b16 %v733
        %v1515 = vunpack.c.h.b16 %v733
        %v1516 = vunpack.c.l.b16 %v734
        %v1517 = vunpack.c.h.b16 %v734
        %v1518 = vunpack.c.l.b16 %v735
        %v1519 = vunpack.c.h.b16 %v735
        %v1520 = vunpack.c.l.b16 %v736
        %v1521 = vunpack.c.h.b16 %v736
        %v1522 = vunpack.c.l.b16 %v737
        %v1523 = vunpack.c.h.b16 %v737
        %v1524 = vunpack.c.l.b16 %v738
        %v1525 = vunpack.c.h.b16 %v738
        %v1526 = vunpack.c.l.b16 %v739
        %v1527 = vunpack.c.h.b16 %v739
        %v1528 = vunpack.c.l.b16 %v740
        %v1529 = vunpack.c.h.b16 %v740
        %v1530 = vunpack.c.l.b16 %v741
        %v1531 = vunpack.c.h.b16 %v741
        %v1532 = vunpack.c.l.b16 %v742
        %v1533 = vunpack.c.h.b16 %v742
        %v1534 = vunpack.c.l.b16 %v743
        %v1535 = vunpack.c.h.b16 %v743
        %v1536 = vunpack.c.l.b16 %v744
        %v1537 = vunpack.c.h.b16 %v744
        %v1538 = vunpack.c.l.b16 %v745
        %v1539 = vunpack.c.h.b16 %v745
        %v1540 = vunpack.c.l.b16 %v746
        %v1541 = vunpack.c.h.b16 %v746
        %v1542 = vunpack.c.l.b16 %v747
        %v1543 = vunpack.c.h.b16 %v747
        %v1544 = vunpack.c.l.b16 %v748
        %v1545 = vunpack.c.h.b16 %v748
        %v1546 = vunpack.c.l.b16 %v749
        %v1547 = vunpack.c.h.b16 %v749
        %v1548 = vunpack.c.l.b16 %v750
        %v1549 = vunpack.c.h.b16 %v750
        %v1550 = vunpack.c.l.b16 %v751
        %v1551 = vunpack.c.h.b16 %v751
        %v1552 = vunpack.c.l.b16 %v752
        %v1553 = vunpack.c.h.b16 %v752
        %v1554 = vunpack.c.l.b16 %v753
        %v1555 = vunpack.c.h.b16 %v753
        %v1556 = vunpack.c.l.b16 %v754
        %v1557 = vunpack.c.h.b16 %v754
        %v1558 = vunpack.c.l.b16 %v755
        %v1559 = vunpack.c.h.b16 %v755
        %v1560 = vunpack.c.l.b16 %v756
        %v1561 = vunpack.c.h.b16 %v756
        %v1562 = vunpack.c.l.b16 %v757
        %v1563 = vunpack.c.h.b16 %v757
        %v1564 = vunpack.c.l.b16 %v758
        %v1565 = vunpack.c.h.b16 %v758
        %v1566 = vunpack.c.l.b16 %v759
        %v1567 = vunpack.c.h.b16 %v759
        %v1568 = vunpack.c.l.b16 %v760
        %v1569 = vunpack.c.h.b16 %v760
        %v1570 = vunpack.c.l.b16 %v761
        %v1571 = vunpack.c.h.b16 %v761
        %v1572 = vunpack.c.l.b16 %v762
        %v1573 = vunpack.c.h.b16 %v762
        %v1574 = vunpack.c.l.b16 %v763
        %v1575 = vunpack.c.h.b16 %v763
        %v1576 = vunpack.c.l.b16 %v764
        %v1577 = vunpack.c.h.b16 %v764
        %v1578 = vunpack.c.l.b16 %v765
        %v1579 = vunpack.c.h.b16 %v765
        %v1580 = vunpack.c.l.b16 %v766
        %v1581 = vunpack.c.h.b16 %v766
        %v1582 = vunpack.c.l.b16 %v767
        %v1583 = vunpack.c.h.b16 %v767
        %v1584 = vunpack.c.l.b16 %v768
        %v1585 = vunpack.c.h.b16 %v768
        %v1586 = vunpack.c.l.b16 %v769
        %v1587 = vunpack.c.h.b16 %v769
        %v1588 = vunpack.c.l.b16 %v770
        %v1589 = vunpack.c.h.b16 %v770
        %v1590 = vunpack.c.l.b16 %v771
        %v1591 = vunpack.c.h.b16 %v771
        %v1592 = vunpack.c.l.b16 %v772
        %v1593 = vunpack.c.h.b16 %v772
        %v1594 = vunpack.c.l.b16 %v773
        %v1595 = vunpack.c.h.b16 %v773
        %v1596 = vunpack.c.l.b16 %v774
        %v1597 = vunpack.c.h.b16 %v774
        %v1598 = vunpack.c.l.b16 %v775
        %v1599 = vunpack.c.h.b16 %v775
        %v1600 = vunpack.c.l.b16 %v776
        %v1601 = vunpack.c.h.b16 %v776
        %v1602 = vunpack.c.l.b16 %v777
        %v1603 = vunpack.c.h.b16 %v777
        %v1604 = vunpack.c.l.b16 %v778
        %v1605 = vunpack.c.h.b16 %v778
        %v1606 = vunpack.c.l.b16 %v779
        %v1607 = vunpack.c.h.b16 %v779
        %v1608 = vunpack.c.l.b16 %v780
        %v1609 = vunpack.c.h.b16 %v780
        %v1610 = vunpack.c.l.b16 %v781
        %v1611 = vunpack.c.h.b16 %v781
        %v1612 = vunpack.c.l.b16 %v782
        %v1613 = vunpack.c.h.b16 %v782
        %v1614 = vunpack.c.l.b16 %v783
        %v1615 = vunpack.c.h.b16 %v783
        %v1616 = vunpack.c.l.b16 %v784
        %v1617 = vunpack.c.h.b16 %v784
        %v1618 = vunpack.c.l.b16 %v785
        %v1619 = vunpack.c.h.b16 %v785
        %v1620 = vunpack.c.l.b16 %v786
        %v1621 = vunpack.c.h.b16 %v786
        %v1622 = vunpack.c.l.b16 %v787
        %v1623 = vunpack.c.h.b16 %v787
        %v1624 = vunpack.c.l.b16 %v788
        %v1625 = vunpack.c.h.b16 %v788
        %v1626 = vunpack.c.l.b16 %v789
        %v1627 = vunpack.c.h.b16 %v789
        %v1628 = vunpack.c.l.b16 %v790
        %v1629 = vunpack.c.h.b16 %v790
        %v1630 = vunpack.c.l.b16 %v791
        %v1631 = vunpack.c.h.b16 %v791
        %v1632 = vunpack.c.l.b16 %v792
        %v1633 = vunpack.c.h.b16 %v792
        %v1634 = vunpack.c.l.b16 %v793
        %v1635 = vunpack.c.h.b16 %v793
        %v1636 = vunpack.c.l.b16 %v794
        %v1637 = vunpack.c.h.b16 %v794
        %v1638 = vunpack.c.l.b16 %v795
        %v1639 = vunpack.c.h.b16 %v795
        %v1640 = vunpack.c.l.b16 %v796
        %v1641 = vunpack.c.h.b16 %v796
        %v1642 = vunpack.c.l.b16 %v797
        %v1643 = vunpack.c.h.b16 %v797
        %v1644 = vunpack.c.l.b16 %v798
        %v1645 = vunpack.c.h.b16 %v798
        %v1646 = vunpack.c.l.b16 %v799
        %v1647 = vunpack.c.h.b16 %v799
        %v1648 = vunpack.c.l.b16 %v800
        %v1649 = vunpack.c.h.b16 %v800
        %v1650 = vunpack.c.l.b16 %v801
        %v1651 = vunpack.c.h.b16 %v801
        %v1652 = vunpack.c.l.b16 %v802
        %v1653 = vunpack.c.h.b16 %v802
        %v1654 = vunpack.c.l.b16 %v803
        %v1655 = vunpack.c.h.b16 %v803
        %v1656 = vunpack.c.l.b16 %v804
        %v1657 = vunpack.c.h.b16 %v804
        %v1658 = vunpack.c.l.b16 %v805
        %v1659 = vunpack.c.h.b16 %v805
        %v1660 = vunpack.c.l.b16 %v806
        %v1661 = vunpack.c.h.b16 %v806
        %v1662 = vunpack.c.l.b16 %v807
        %v1663 = vunpack.c.h.b16 %v807
        %v1664 = vunpack.c.l.b16 %v808
        %v1665 = vunpack.c.h.b16 %v808
        %v1666 = vunpack.c.l.b16 %v809
        %v1667 = vunpack.c.h.b16 %v809
        %v1668 = vunpack.c.l.b16 %v810
        %v1669 = vunpack.c.h.b16 %v810
        %v1670 = vunpack.c.l.b16 %v811
        %v1671 = vunpack.c.h.b16 %v811
        %v1672 = vunpack.c.l.b16 %v812
        %v1673 = vunpack.c.h.b16 %v812
        %v1674 = vunpack.c.l.b16 %v813
        %v1675 = vunpack.c.h.b16 %v813
        %v1676 = vunpack.c.l.b16 %v814
        %v1677 = vunpack.c.h.b16 %v814
        %v1678 = vunpack.c.l.b16 %v815
        %v1679 = vunpack.c.h.b16 %v815
        %v1680 = vunpack.c.l.b16 %v816
        %v1681 = vunpack.c.h.b16 %v816
        %v1682 = vunpack.c.l.b16 %v817
        %v1683 = vunpack.c.h.b16 %v817
        %v1684 = vpack.c.b16 %v1180, %v1172
        %v1685 = vpack.c.b16 %v1181, %v1173
        %v1686 = vpack.c.b16 %v1182, %v1174
        %v1687 = vpack.c.b16 %v1183, %v1175
        %v1688 = vpack.c.b16 %v1184, %v1176
        %v1689 = vpack.c.b16 %v1185, %v1177
        %v1690 = vpack.c.b16 %v1186, %v1178
        %v1691 = vpack.c.b16 %v1187, %v1179
        %v1692 = vpack.c.b16 %v1196, %v1188
        %v1693 = vpack.c.b16 %v1197, %v1189
        %v1694 = vpack.c.b16 %v1198, %v1190
        %v1695 = vpack.c.b16 %v1199, %v1191
        %v1696 = vpack.c.b16 %v1200, %v1192
        %v1697 = vpack.c.b16 %v1201, %v1193
        %v1698 = vpack.c.b16 %v1202, %v1194
        %v1699 = vpack.c.b16 %v1203, %v1195
        %v1700 = vpack.c.b16 %v1212, %v1204
        %v1701 = vpack.c.b16 %v1213, %v1205
        %v1702 = vpack.c.b16 %v1214, %v1206
        %v1703 = vpack.c.b16 %v1215, %v1207
        %v1704 = vpack.c.b16 %v1216, %v1208
        %v1705 = vpack.c.b16 %v1217, %v1209
        %v1706 = vpack.c.b16 %v1218, %v1210
        %v1707 = vpack.c.b16 %v1219, %v1211
        %v1708 = vpack.c.b16 %v1228, %v1220
        %v1709 = vpack.c.b16 %v1229, %v1221
        %v1710 = vpack.c.b16 %v1230, %v1222
        %v1711 = vpack.c.b16 %v1231, %v1223
        %v1712 = vpack.c.b16 %v1232, %v1224
        %v1713 = vpack.c.b16 %v1233, %v1225
        %v1714 = vpack.c.b16 %v1234, %v1226
        %v1715 = vpack.c.b16 %v1235, %v1227
        %v1716 = vpack.c.b16 %v1244, %v1236
        %v1717 = vpack.c.b16 %v1245, %v1237
        %v1718 = vpack.c.b16 %v1246, %v1238
        %v1719 = vpack.c.b16 %v1247, %v1239
        %v1720 = vpack.c.b16 %v1248, %v1240
        %v1721 = vpack.c.b16 %v1249, %v1241
        %v1722 = vpack.c.b16 %v1250, %v1242
        %v1723 = vpack.c.b16 %v1251, %v1243
        %v1724 = vpack.c.b16 %v1260, %v1252
        %v1725 = vpack.c.b16 %v1261, %v1253
        %v1726 = vpack.c.b16 %v1262, %v1254
        %v1727 = vpack.c.b16 %v1263, %v1255
        %v1728 = vpack.c.b16 %v1264, %v1256
        %v1729 = vpack.c.b16 %v1265, %v1257
        %v1730 = vpack.c.b16 %v1266, %v1258
        %v1731 = vpack.c.b16 %v1267, %v1259
        %v1732 = vpack.c.b16 %v1276, %v1268
        %v1733 = vpack.c.b16 %v1277, %v1269
        %v1734 = vpack.c.b16 %v1278, %v1270
        %v1735 = vpack.c.b16 %v1279, %v1271
        %v1736 = vpack.c.b16 %v1280, %v1272
        %v1737 = vpack.c.b16 %v1281, %v1273
        %v1738 = vpack.c.b16 %v1282, %v1274
        %v1739 = vpack.c.b16 %v1283, %v1275
        %v1740 = vpack.c.b16 %v1292, %v1284
        %v1741 = vpack.c.b16 %v1293, %v1285
        %v1742 = vpack.c.b16 %v1294, %v1286
        %v1743 = vpack.c.b16 %v1295, %v1287
        %v1744 = vpack.c.b16 %v1296, %v1288
        %v1745 = vpack.c.b16 %v1297, %v1289
        %v1746 = vpack.c.b16 %v1298, %v1290
        %v1747 = vpack.c.b16 %v1299, %v1291
        %v1748 = vpack.c.b16 %v1308, %v1300
        %v1749 = vpack.c.b16 %v1309, %v1301
        %v1750 = vpack.c.b16 %v1310, %v1302
        %v1751 = vpack.c.b16 %v1311, %v1303
        %v1752 = vpack.c.b16 %v1312, %v1304
        %v1753 = vpack.c.b16 %v1313, %v1305
        %v1754 = vpack.c.b16 %v1314, %v1306
        %v1755 = vpack.c.b16 %v1315, %v1307
        %v1756 = vpack.c.b16 %v1324, %v1316
        %v1757 = vpack.c.b16 %v1325, %v1317
        %v1758 = vpack.c.b16 %v1326, %v1318
        %v1759 = vpack.c.b16 %v1327, %v1319
        %v1760 = vpack.c.b16 %v1328, %v1320
        %v1761 = vpack.c.b16 %v1329, %v1321
        %v1762 = vpack.c.b16 %v1330, %v1322
        %v1763 = vpack.c.b16 %v1331, %v1323
        %v1764 = vpack.c.b16 %v1340, %v1332
        %v1765 = vpack.c.b16 %v1341, %v1333
        %v1766 = vpack.c.b16 %v1342, %v1334
        %v1767 = vpack.c.b16 %v1343, %v1335
        %v1768 = vpack.c.b16 %v1344, %v1336
        %v1769 = vpack.c.b16 %v1345, %v1337
        %v1770 = vpack.c.b16 %v1346, %v1338
        %v1771 = vpack.c.b16 %v1347, %v1339
        %v1772 = vpack.c.b16 %v1356, %v1348
        %v1773 = vpack.c.b16 %v1357, %v1349
        %v1774 = vpack.c.b16 %v1358, %v1350
        %v1775 = vpack.c.b16 %v1359, %v1351
        %v1776 = vpack.c.b16 %v1360, %v1352
        %v1777 = vpack.c.b16 %v1361, %v1353
        %v1778 = vpack.c.b16 %v1362, %v1354
        %v1779 = vpack.c.b16 %v1363, %v1355
        %v1780 = vpack.c.b16 %v1372, %v1364
        %v1781 = vpack.c.b16 %v1373, %v1365
        %v1782 = vpack.c.b16 %v1374, %v1366
        %v1783 = vpack.c.b16 %v1375, %v1367
        %v1784 = vpack.c.b16 %v1376, %v1368
        %v1785 = vpack.c.b16 %v1377, %v1369
        %v1786 = vpack.c.b16 %v1378, %v1370
        %v1787 = vpack.c.b16 %v1379, %v1371
        %v1788 = vpack.c.b16 %v1388, %v1380
        %v1789 = vpack.c.b16 %v1389, %v1381
        %v1790 = vpack.c.b16 %v1390, %v1382
        %v1791 = vpack.c.b16 %v1391, %v1383
        %v1792 = vpack.c.b16 %v1392, %v1384
        %v1793 = vpack.c.b16 %v1393, %v1385
        %v1794 = vpack.c.b16 %v1394, %v1386
        %v1795 = vpack.c.b16 %v1395, %v1387
        %v1796 = vpack.c.b16 %v1404, %v1396
        %v1797 = vpack.c.b16 %v1405, %v1397
        %v1798 = vpack.c.b16 %v1406, %v1398
        %v1799 = vpack.c.b16 %v1407, %v1399
        %v1800 = vpack.c.b16 %v1408, %v1400
        %v1801 = vpack.c.b16 %v1409, %v1401
        %v1802 = vpack.c.b16 %v1410, %v1402
        %v1803 = vpack.c.b16 %v1411, %v1403
        %v1804 = vpack.c.b16 %v1420, %v1412
        %v1805 = vpack.c.b16 %v1421, %v1413
        %v1806 = vpack.c.b16 %v1422, %v1414
        %v1807 = vpack.c.b16 %v1423, %v1415
        %v1808 = vpack.c.b16 %v1424, %v1416
        %v1809 = vpack.c.b16 %v1425, %v1417
        %v1810 = vpack.c.b16 %v1426, %v1418
        %v1811 = vpack.c.b16 %v1427, %v1419
        %v1812 = vpack.c.b16 %v1436, %v1428
        %v1813 = vpack.c.b16 %v1437, %v1429
        %v1814 = vpack.c.b16 %v1438, %v1430
        %v1815 = vpack.c.b16 %v1439, %v1431
        %v1816 = vpack.c.b16 %v1440, %v1432
        %v1817 = vpack.c.b16 %v1441, %v1433
        %v1818 = vpack.c.b16 %v1442, %v1434
        %v1819 = vpack.c.b16 %v1443, %v1435
        %v1820 = vpack.c.b16 %v1452, %v1444
        %v1821 = vpack.c.b16 %v1453, %v1445
        %v1822 = vpack.c.b16 %v1454, %v1446
        %v1823 = vpack.c.b16 %v1455, %v1447
        %v1824 = vpack.c.b16 %v1456, %v1448
        %v1825 = vpack.c.b16 %v1457, %v1449
        %v1826 = vpack.c.b16 %v1458, %v1450
        %v1827 = vpack.c.b16 %v1459, %v1451
        %v1828 = vpack.c.b16 %v1468, %v1460
        %v1829 = vpack.c.b16 %v1469, %v1461
        %v1830 = vpack.c.b16 %v1470, %v1462
        %v1831 = vpack.c.b16 %v1471, %v1463
        %v1832 = vpack.c.b16 %v1472, %v1464
        %v1833 = vpack.c.b16 %v1473, %v1465
        %v1834 = vpack.c.b16 %v1474, %v1466
        %v1835 = vpack.c.b16 %v1475, %v1467
        %v1836 = vpack.c.b16 %v1484, %v1476
        %v1837 = vpack.c.b16 %v1485, %v1477
        %v1838 = vpack.c.b16 %v1486, %v1478
        %v1839 = vpack.c.b16 %v1487, %v1479
        %v1840 = vpack.c.b16 %v1488, %v1480
        %v1841 = vpack.c.b16 %v1489, %v1481
        %v1842 = vpack.c.b16 %v1490, %v1482
        %v1843 = vpack.c.b16 %v1491, %v1483
        %v1844 = vpack.c.b16 %v1500, %v1492
        %v1845 = vpack.c.b16 %v1501, %v1493
        %v1846 = vpack.c.b16 %v1502, %v1494
        %v1847 = vpack.c.b16 %v1503, %v1495
        %v1848 = vpack.c.b16 %v1504, %v1496
        %v1849 = vpack.c.b16 %v1505, %v1497
        %v1850 = vpack.c.b16 %v1506, %v1498
        %v1851 = vpack.c.b16 %v1507, %v1499
        %v1852 = vpack.c.b16 %v1516, %v1508
        %v1853 = vpack.c.b16 %v1517, %v1509
        %v1854 = vpack.c.b16 %v1518, %v1510
        %v1855 = vpack.c.b16 %v1519, %v1511
        %v1856 = vpack.c.b16 %v1520, %v1512
        %v1857 = vpack.c.b16 %v1521, %v1513
        %v1858 = vpack.c.b16 %v1522, %v1514
        %v1859 = vpack.c.b16 %v1523, %v1515
        %v1860 = vpack.c.b16 %v1532, %v1524
        %v1861 = vpack.c.b16 %v1533, %v1525
        %v1862 = vpack.c.b16 %v1534, %v1526
        %v1863 = vpack.c.b16 %v1535, %v1527
        %v1864 = vpack.c.b16 %v1536, %v1528
        %v1865 = vpack.c.b16 %v1537, %v1529
        %v1866 = vpack.c.b16 %v1538, %v1530
        %v1867 = vpack.c.b16 %v1539, %v1531
        %v1868 = vpack.c.b16 %v1548, %v1540
        %v1869 = vpack.c.b16 %v1549, %v1541
        %v1870 = vpack.c.b16 %v1550, %v1542
        %v1871 = vpack.c.b16 %v1551, %v1543
        %v1872 = vpack.c.b16 %v1552, %v1544
        %v1873 = vpack.c.b16 %v1553, %v1545
        %v1874 = vpack.c.b16 %v1554, %v1546
        %v1875 = vpack.c.b16 %v1555, %v1547
        %v1876 = vpack.c.b16 %v1564, %v1556
        %v1877 = vpack.c.b16 %v1565, %v1557
        %v1878 = vpack.c.b16 %v1566, %v1558
        %v1879 = vpack.c.b16 %v1567, %v1559
        %v1880 = vpack.c.b16 %v1568, %v1560
        %v1881 = vpack.c.b16 %v1569, %v1561
        %v1882 = vpack.c.b16 %v1570, %v1562
        %v1883 = vpack.c.b16 %v1571, %v1563
        %v1884 = vpack.c.b16 %v1580, %v1572
        %v1885 = vpack.c.b16 %v1581, %v1573
        %v1886 = vpack.c.b16 %v1582, %v1574
        %v1887 = vpack.c.b16 %v1583, %v1575
        %v1888 = vpack.c.b16 %v1584, %v1576
        %v1889 = vpack.c.b16 %v1585, %v1577
        %v1890 = vpack.c.b16 %v1586, %v1578
        %v1891 = vpack.c.b16 %v1587, %v1579
        %v1892 = vpack.c.b16 %v1596, %v1588
        %v1893 = vpack.c.b16 %v1597, %v1589
        %v1894 = vpack.c.b16 %v1598, %v1590
        %v1895 = vpack.c.b16 %v1599, %v1591
        %v1896 = vpack.c.b16 %v1600, %v1592
        %v1897 = vpack.c.b16 %v1601, %v1593
        %v1898 = vpack.c.b16 %v1602, %v1594
        %v1899 = vpack.c.b16 %v1603, %v1595
        %v1900 = vpack.c.b16 %v1612, %v1604
        %v1901 = vpack.c.b16 %v1613, %v1605
        %v1902 = vpack.c.b16 %v1614, %v1606
        %v1903 = vpack.c.b16 %v1615, %v1607
        %v1904 = vpack.c.b16 %v1616, %v1608
        %v1905 = vpack.c.b16 %v1617, %v1609
        %v1906 = vpack.c.b16 %v1618, %v1610
        %v1907 = vpack.c.b16 %v1619, %v1611
        %v1908 = vpack.c.b16 %v1628, %v1620
        %v1909 = vpack.c.b16 %v1629, %v1621
        %v1910 = vpack.c.b16 %v1630, %v1622
        %v1911 = vpack.c.b16 %v1631, %v1623
        %v1912 = vpack.c.b16 %v1632, %v1624
        %v1913 = vpack.c.b16 %v1633, %v1625
        %v1914 = vpack.c.b16 %v1634, %v1626
        %v1915 = vpack.c.b16 %v1635, %v1627
        %v1916 = vpack.c.b16 %v1644, %v1636
        %v1917 = vpack.c.b16 %v1645, %v1637
        %v1918 = vpack.c.b16 %v1646, %v1638
        %v1919 = vpack.c.b16 %v1647, %v1639
        %v1920 = vpack.c.b16 %v1648, %v1640
        %v1921 = vpack.c.b16 %v1649, %v1641
        %v1922 = vpack.c.b16 %v1650, %v1642
        %v1923 = vpack.c.b16 %v1651, %v1643
        %v1924 = vpack.c.b16 %v1660, %v1652
        %v1925 = vpack.c.b16 %v1661, %v1653
        %v1926 = vpack.c.b16 %v1662, %v1654
        %v1927 = vpack.c.b16 %v1663, %v1655
        %v1928 = vpack.c.b16 %v1664, %v1656
        %v1929 = vpack.c.b16 %v1665, %v1657
        %v1930 = vpack.c.b16 %v1666, %v1658
        %v1931 = vpack.c.b16 %v1667, %v1659
        %v1932 = vpack.c.b16 %v1676, %v1668
        %v1933 = vpack.c.b16 %v1677, %v1669
        %v1934 = vpack.c.b16 %v1678, %v1670
        %v1935 = vpack.c.b16 %v1679, %v1671
        %v1936 = vpack.c.b16 %v1680, %v1672
        %v1937 = vpack.c.b16 %v1681, %v1673
        %v1938 = vpack.c.b16 %v1682, %v1674
        %v1939 = vpack.c.b16 %v1683, %v1675
        %2196 = vmatpush.bf16.msra.mxu0 %v1740
        %2197 = vmatpush.bf16.msra.mxu0 %v1732
        %2198 = vmatpush.bf16.msra.mxu0 %v1724
        %2199 = vmatpush.bf16.msra.mxu0 %v1716
        %2200 = vmatpush.bf16.msra.mxu0 %v1708
        %2201 = vmatpush.bf16.msra.mxu0 %v1700
        %2202 = vmatpush.bf16.msra.mxu0 %v1692
        %2203 = vmatpush.bf16.msra.mxu0 %v1684
        %2204 = vmatmul.bf16.gmra.mxu0 %v884
        %v2205 = vpop.f32.mrf.mxu0
        %v2206 = vadd.f32 %v820, %v2205
        %v2207 = vpop.f32.mrf.mxu0
        %v2208 = vadd.f32 %v820, %v2207
        %2209 = vmatmul.bf16.gmra.mxu0 %v888
        %v2210 = vpop.f32.mrf.mxu0
        %v2211 = vadd.f32 %v820, %v2210
        %v2212 = vpop.f32.mrf.mxu0
        %v2213 = vadd.f32 %v820, %v2212
        %2214 = vmatmul.bf16.gmra.mxu0 %v892
        %v2215 = vpop.f32.mrf.mxu0
        %v2216 = vadd.f32 %v820, %v2215
        %v2217 = vpop.f32.mrf.mxu0
        %v2218 = vadd.f32 %v820, %v2217
        %2219 = vmatmul.bf16.gmra.mxu0 %v896
        %v2220 = vpop.f32.mrf.mxu0
        %v2221 = vadd.f32 %v820, %v2220
        %v2222 = vpop.f32.mrf.mxu0
        %v2223 = vadd.f32 %v820, %v2222
        %2224 = vdwg.mxu0
        %2225 = vmatpush.bf16.msra.mxu0 %v1804
        %2226 = vmatpush.bf16.msra.mxu0 %v1796
        %2227 = vmatpush.bf16.msra.mxu0 %v1788
        %2228 = vmatpush.bf16.msra.mxu0 %v1780
        %2229 = vmatpush.bf16.msra.mxu0 %v1772
        %2230 = vmatpush.bf16.msra.mxu0 %v1764
        %2231 = vmatpush.bf16.msra.mxu0 %v1756
        %2232 = vmatpush.bf16.msra.mxu0 %v1748
        %2233 = vmatmul.bf16.gmra.mxu0 %v885
        %v2234 = vpop.f32.mrf.mxu0
        %v2235 = vadd.f32 %v2206, %v2234
        %v2236 = vpop.f32.mrf.mxu0
        %v2237 = vadd.f32 %v2208, %v2236
        %2238 = vmatmul.bf16.gmra.mxu0 %v889
        %v2239 = vpop.f32.mrf.mxu0
        %v2240 = vadd.f32 %v2211, %v2239
        %v2241 = vpop.f32.mrf.mxu0
        %v2242 = vadd.f32 %v2213, %v2241
        %2243 = vmatmul.bf16.gmra.mxu0 %v893
        %v2244 = vpop.f32.mrf.mxu0
        %v2245 = vadd.f32 %v2216, %v2244
        %v2246 = vpop.f32.mrf.mxu0
        %v2247 = vadd.f32 %v2218, %v2246
        %2248 = vmatmul.bf16.gmra.mxu0 %v897
        %v2249 = vpop.f32.mrf.mxu0
        %v2250 = vadd.f32 %v2221, %v2249
        %v2251 = vpop.f32.mrf.mxu0
        %v2252 = vadd.f32 %v2223, %v2251
        %2253 = vdwg.mxu0
        %2254 = vmatpush.bf16.msra.mxu0 %v1868
        %2255 = vmatpush.bf16.msra.mxu0 %v1860
        %2256 = vmatpush.bf16.msra.mxu0 %v1852
        %2257 = vmatpush.bf16.msra.mxu0 %v1844
        %2258 = vmatpush.bf16.msra.mxu0 %v1836
        %2259 = vmatpush.bf16.msra.mxu0 %v1828
        %2260 = vmatpush.bf16.msra.mxu0 %v1820
        %2261 = vmatpush.bf16.msra.mxu0 %v1812
        %2262 = vmatmul.bf16.gmra.mxu0 %v886
        %v2263 = vpop.f32.mrf.mxu0
        %v2264 = vadd.f32 %v2235, %v2263
        %v2265 = vpop.f32.mrf.mxu0
        %v2266 = vadd.f32 %v2237, %v2265
        %2267 = vmatmul.bf16.gmra.mxu0 %v890
        %v2268 = vpop.f32.mrf.mxu0
        %v2269 = vadd.f32 %v2240, %v2268
        %v2270 = vpop.f32.mrf.mxu0
        %v2271 = vadd.f32 %v2242, %v2270
        %2272 = vmatmul.bf16.gmra.mxu0 %v894
        %v2273 = vpop.f32.mrf.mxu0
        %v2274 = vadd.f32 %v2245, %v2273
        %v2275 = vpop.f32.mrf.mxu0
        %v2276 = vadd.f32 %v2247, %v2275
        %2277 = vmatmul.bf16.gmra.mxu0 %v898
        %v2278 = vpop.f32.mrf.mxu0
        %v2279 = vadd.f32 %v2250, %v2278
        %v2280 = vpop.f32.mrf.mxu0
        %v2281 = vadd.f32 %v2252, %v2280
        %2282 = vdwg.mxu0
        %2283 = vmatpush.bf16.msra.mxu0 %v1932
        %2284 = vmatpush.bf16.msra.mxu0 %v1924
        %2285 = vmatpush.bf16.msra.mxu0 %v1916
        %2286 = vmatpush.bf16.msra.mxu0 %v1908
        %2287 = vmatpush.bf16.msra.mxu0 %v1900
        %2288 = vmatpush.bf16.msra.mxu0 %v1892
        %2289 = vmatpush.bf16.msra.mxu0 %v1884
        %2290 = vmatpush.bf16.msra.mxu0 %v1876
        %2291 = vmatmul.bf16.gmra.mxu0 %v887
        %v2292 = vpop.f32.mrf.mxu0
        %v2293 = vadd.f32 %v2264, %v2292
        %v2294 = vpop.f32.mrf.mxu0
        %v2295 = vadd.f32 %v2266, %v2294
        %2296 = vmatmul.bf16.gmra.mxu0 %v891
        %v2297 = vpop.f32.mrf.mxu0
        %v2298 = vadd.f32 %v2269, %v2297
        %v2299 = vpop.f32.mrf.mxu0
        %v2300 = vadd.f32 %v2271, %v2299
        %2301 = vmatmul.bf16.gmra.mxu0 %v895
        %v2302 = vpop.f32.mrf.mxu0
        %v2303 = vadd.f32 %v2274, %v2302
        %v2304 = vpop.f32.mrf.mxu0
        %v2305 = vadd.f32 %v2276, %v2304
        %2306 = vmatmul.bf16.gmra.mxu0 %v899
        %v2307 = vpop.f32.mrf.mxu0
        %v2308 = vadd.f32 %v2279, %v2307
        %v2309 = vpop.f32.mrf.mxu0
        %v2310 = vadd.f32 %v2281, %v2309
        %2311 = vdwg.mxu0
        %2312 = vmatpush.bf16.msra.mxu0 %v1741
        %2313 = vmatpush.bf16.msra.mxu0 %v1733
        %2314 = vmatpush.bf16.msra.mxu0 %v1725
        %2315 = vmatpush.bf16.msra.mxu0 %v1717
        %2316 = vmatpush.bf16.msra.mxu0 %v1709
        %2317 = vmatpush.bf16.msra.mxu0 %v1701
        %2318 = vmatpush.bf16.msra.mxu0 %v1693
        %2319 = vmatpush.bf16.msra.mxu0 %v1685
        %2320 = vmatmul.bf16.gmra.mxu0 %v884
        %v2321 = vpop.f32.mrf.mxu0
        %v2322 = vadd.f32 %v821, %v2321
        %v2323 = vpop.f32.mrf.mxu0
        %v2324 = vadd.f32 %v821, %v2323
        %2325 = vmatmul.bf16.gmra.mxu0 %v888
        %v2326 = vpop.f32.mrf.mxu0
        %v2327 = vadd.f32 %v821, %v2326
        %v2328 = vpop.f32.mrf.mxu0
        %v2329 = vadd.f32 %v821, %v2328
        %2330 = vmatmul.bf16.gmra.mxu0 %v892
        %v2331 = vpop.f32.mrf.mxu0
        %v2332 = vadd.f32 %v821, %v2331
        %v2333 = vpop.f32.mrf.mxu0
        %v2334 = vadd.f32 %v821, %v2333
        %2335 = vmatmul.bf16.gmra.mxu0 %v896
        %v2336 = vpop.f32.mrf.mxu0
        %v2337 = vadd.f32 %v821, %v2336
        %v2338 = vpop.f32.mrf.mxu0
        %v2339 = vadd.f32 %v821, %v2338
        %2340 = vdwg.mxu0
        %2341 = vmatpush.bf16.msra.mxu0 %v1805
        %2342 = vmatpush.bf16.msra.mxu0 %v1797
        %2343 = vmatpush.bf16.msra.mxu0 %v1789
        %2344 = vmatpush.bf16.msra.mxu0 %v1781
        %2345 = vmatpush.bf16.msra.mxu0 %v1773
        %2346 = vmatpush.bf16.msra.mxu0 %v1765
        %2347 = vmatpush.bf16.msra.mxu0 %v1757
        %2348 = vmatpush.bf16.msra.mxu0 %v1749
        %2349 = vmatmul.bf16.gmra.mxu0 %v885
        %v2350 = vpop.f32.mrf.mxu0
        %v2351 = vadd.f32 %v2322, %v2350
        %v2352 = vpop.f32.mrf.mxu0
        %v2353 = vadd.f32 %v2324, %v2352
        %2354 = vmatmul.bf16.gmra.mxu0 %v889
        %v2355 = vpop.f32.mrf.mxu0
        %v2356 = vadd.f32 %v2327, %v2355
        %v2357 = vpop.f32.mrf.mxu0
        %v2358 = vadd.f32 %v2329, %v2357
        %2359 = vmatmul.bf16.gmra.mxu0 %v893
        %v2360 = vpop.f32.mrf.mxu0
        %v2361 = vadd.f32 %v2332, %v2360
        %v2362 = vpop.f32.mrf.mxu0
        %v2363 = vadd.f32 %v2334, %v2362
        %2364 = vmatmul.bf16.gmra.mxu0 %v897
        %v2365 = vpop.f32.mrf.mxu0
        %v2366 = vadd.f32 %v2337, %v2365
        %v2367 = vpop.f32.mrf.mxu0
        %v2368 = vadd.f32 %v2339, %v2367
        %2369 = vdwg.mxu0
        %2370 = vmatpush.bf16.msra.mxu0 %v1869
        %2371 = vmatpush.bf16.msra.mxu0 %v1861
        %2372 = vmatpush.bf16.msra.mxu0 %v1853
        %2373 = vmatpush.bf16.msra.mxu0 %v1845
        %2374 = vmatpush.bf16.msra.mxu0 %v1837
        %2375 = vmatpush.bf16.msra.mxu0 %v1829
        %2376 = vmatpush.bf16.msra.mxu0 %v1821
        %2377 = vmatpush.bf16.msra.mxu0 %v1813
        %2378 = vmatmul.bf16.gmra.mxu0 %v886
        %v2379 = vpop.f32.mrf.mxu0
        %v2380 = vadd.f32 %v2351, %v2379
        %v2381 = vpop.f32.mrf.mxu0
        %v2382 = vadd.f32 %v2353, %v2381
        %2383 = vmatmul.bf16.gmra.mxu0 %v890
        %v2384 = vpop.f32.mrf.mxu0
        %v2385 = vadd.f32 %v2356, %v2384
        %v2386 = vpop.f32.mrf.mxu0
        %v2387 = vadd.f32 %v2358, %v2386
        %2388 = vmatmul.bf16.gmra.mxu0 %v894
        %v2389 = vpop.f32.mrf.mxu0
        %v2390 = vadd.f32 %v2361, %v2389
        %v2391 = vpop.f32.mrf.mxu0
        %v2392 = vadd.f32 %v2363, %v2391
        %2393 = vmatmul.bf16.gmra.mxu0 %v898
        %v2394 = vpop.f32.mrf.mxu0
        %v2395 = vadd.f32 %v2366, %v2394
        %v2396 = vpop.f32.mrf.mxu0
        %v2397 = vadd.f32 %v2368, %v2396
        %2398 = vdwg.mxu0
        %2399 = vmatpush.bf16.msra.mxu0 %v1933
        %2400 = vmatpush.bf16.msra.mxu0 %v1925
        %2401 = vmatpush.bf16.msra.mxu0 %v1917
        %2402 = vmatpush.bf16.msra.mxu0 %v1909
        %2403 = vmatpush.bf16.msra.mxu0 %v1901
        %2404 = vmatpush.bf16.msra.mxu0 %v1893
        %2405 = vmatpush.bf16.msra.mxu0 %v1885
        %2406 = vmatpush.bf16.msra.mxu0 %v1877
        %2407 = vmatmul.bf16.gmra.mxu0 %v887
        %v2408 = vpop.f32.mrf.mxu0
        %v2409 = vadd.f32 %v2380, %v2408
        %v2410 = vpop.f32.mrf.mxu0
        %v2411 = vadd.f32 %v2382, %v2410
        %2412 = vmatmul.bf16.gmra.mxu0 %v891
        %v2413 = vpop.f32.mrf.mxu0
        %v2414 = vadd.f32 %v2385, %v2413
        %v2415 = vpop.f32.mrf.mxu0
        %v2416 = vadd.f32 %v2387, %v2415
        %2417 = vmatmul.bf16.gmra.mxu0 %v895
        %v2418 = vpop.f32.mrf.mxu0
        %v2419 = vadd.f32 %v2390, %v2418
        %v2420 = vpop.f32.mrf.mxu0
        %v2421 = vadd.f32 %v2392, %v2420
        %2422 = vmatmul.bf16.gmra.mxu0 %v899
        %v2423 = vpop.f32.mrf.mxu0
        %v2424 = vadd.f32 %v2395, %v2423
        %v2425 = vpop.f32.mrf.mxu0
        %v2426 = vadd.f32 %v2397, %v2425
        %2427 = vdwg.mxu0
        %2428 = vmatpush.bf16.msra.mxu0 %v1742
        %2429 = vmatpush.bf16.msra.mxu0 %v1734
        %2430 = vmatpush.bf16.msra.mxu0 %v1726
        %2431 = vmatpush.bf16.msra.mxu0 %v1718
        %2432 = vmatpush.bf16.msra.mxu0 %v1710
        %2433 = vmatpush.bf16.msra.mxu0 %v1702
        %2434 = vmatpush.bf16.msra.mxu0 %v1694
        %2435 = vmatpush.bf16.msra.mxu0 %v1686
        %2436 = vmatmul.bf16.gmra.mxu0 %v884
        %v2437 = vpop.f32.mrf.mxu0
        %v2438 = vadd.f32 %v822, %v2437
        %v2439 = vpop.f32.mrf.mxu0
        %v2440 = vadd.f32 %v822, %v2439
        %2441 = vmatmul.bf16.gmra.mxu0 %v888
        %v2442 = vpop.f32.mrf.mxu0
        %v2443 = vadd.f32 %v822, %v2442
        %v2444 = vpop.f32.mrf.mxu0
        %v2445 = vadd.f32 %v822, %v2444
        %2446 = vmatmul.bf16.gmra.mxu0 %v892
        %v2447 = vpop.f32.mrf.mxu0
        %v2448 = vadd.f32 %v822, %v2447
        %v2449 = vpop.f32.mrf.mxu0
        %v2450 = vadd.f32 %v822, %v2449
        %2451 = vmatmul.bf16.gmra.mxu0 %v896
        %v2452 = vpop.f32.mrf.mxu0
        %v2453 = vadd.f32 %v822, %v2452
        %v2454 = vpop.f32.mrf.mxu0
        %v2455 = vadd.f32 %v822, %v2454
        %2456 = vdwg.mxu0
        %2457 = vmatpush.bf16.msra.mxu0 %v1806
        %2458 = vmatpush.bf16.msra.mxu0 %v1798
        %2459 = vmatpush.bf16.msra.mxu0 %v1790
        %2460 = vmatpush.bf16.msra.mxu0 %v1782
        %2461 = vmatpush.bf16.msra.mxu0 %v1774
        %2462 = vmatpush.bf16.msra.mxu0 %v1766
        %2463 = vmatpush.bf16.msra.mxu0 %v1758
        %2464 = vmatpush.bf16.msra.mxu0 %v1750
        %2465 = vmatmul.bf16.gmra.mxu0 %v885
        %v2466 = vpop.f32.mrf.mxu0
        %v2467 = vadd.f32 %v2438, %v2466
        %v2468 = vpop.f32.mrf.mxu0
        %v2469 = vadd.f32 %v2440, %v2468
        %2470 = vmatmul.bf16.gmra.mxu0 %v889
        %v2471 = vpop.f32.mrf.mxu0
        %v2472 = vadd.f32 %v2443, %v2471
        %v2473 = vpop.f32.mrf.mxu0
        %v2474 = vadd.f32 %v2445, %v2473
        %2475 = vmatmul.bf16.gmra.mxu0 %v893
        %v2476 = vpop.f32.mrf.mxu0
        %v2477 = vadd.f32 %v2448, %v2476
        %v2478 = vpop.f32.mrf.mxu0
        %v2479 = vadd.f32 %v2450, %v2478
        %2480 = vmatmul.bf16.gmra.mxu0 %v897
        %v2481 = vpop.f32.mrf.mxu0
        %v2482 = vadd.f32 %v2453, %v2481
        %v2483 = vpop.f32.mrf.mxu0
        %v2484 = vadd.f32 %v2455, %v2483
        %2485 = vdwg.mxu0
        %2486 = vmatpush.bf16.msra.mxu0 %v1870
        %2487 = vmatpush.bf16.msra.mxu0 %v1862
        %2488 = vmatpush.bf16.msra.mxu0 %v1854
        %2489 = vmatpush.bf16.msra.mxu0 %v1846
        %2490 = vmatpush.bf16.msra.mxu0 %v1838
        %2491 = vmatpush.bf16.msra.mxu0 %v1830
        %2492 = vmatpush.bf16.msra.mxu0 %v1822
        %2493 = vmatpush.bf16.msra.mxu0 %v1814
        %2494 = vmatmul.bf16.gmra.mxu0 %v886
        %v2495 = vpop.f32.mrf.mxu0
        %v2496 = vadd.f32 %v2467, %v2495
        %v2497 = vpop.f32.mrf.mxu0
        %v2498 = vadd.f32 %v2469, %v2497
        %2499 = vmatmul.bf16.gmra.mxu0 %v890
        %v2500 = vpop.f32.mrf.mxu0
        %v2501 = vadd.f32 %v2472, %v2500
        %v2502 = vpop.f32.mrf.mxu0
        %v2503 = vadd.f32 %v2474, %v2502
        %2504 = vmatmul.bf16.gmra.mxu0 %v894
        %v2505 = vpop.f32.mrf.mxu0
        %v2506 = vadd.f32 %v2477, %v2505
        %v2507 = vpop.f32.mrf.mxu0
        %v2508 = vadd.f32 %v2479, %v2507
        %2509 = vmatmul.bf16.gmra.mxu0 %v898
        %v2510 = vpop.f32.mrf.mxu0
        %v2511 = vadd.f32 %v2482, %v2510
        %v2512 = vpop.f32.mrf.mxu0
        %v2513 = vadd.f32 %v2484, %v2512
        %2514 = vdwg.mxu0
        %2515 = vmatpush.bf16.msra.mxu0 %v1934
        %2516 = vmatpush.bf16.msra.mxu0 %v1926
        %2517 = vmatpush.bf16.msra.mxu0 %v1918
        %2518 = vmatpush.bf16.msra.mxu0 %v1910
        %2519 = vmatpush.bf16.msra.mxu0 %v1902
        %2520 = vmatpush.bf16.msra.mxu0 %v1894
        %2521 = vmatpush.bf16.msra.mxu0 %v1886
        %2522 = vmatpush.bf16.msra.mxu0 %v1878
        %2523 = vmatmul.bf16.gmra.mxu0 %v887
        %v2524 = vpop.f32.mrf.mxu0
        %v2525 = vadd.f32 %v2496, %v2524
        %v2526 = vpop.f32.mrf.mxu0
        %v2527 = vadd.f32 %v2498, %v2526
        %2528 = vmatmul.bf16.gmra.mxu0 %v891
        %v2529 = vpop.f32.mrf.mxu0
        %v2530 = vadd.f32 %v2501, %v2529
        %v2531 = vpop.f32.mrf.mxu0
        %v2532 = vadd.f32 %v2503, %v2531
        %2533 = vmatmul.bf16.gmra.mxu0 %v895
        %v2534 = vpop.f32.mrf.mxu0
        %v2535 = vadd.f32 %v2506, %v2534
        %v2536 = vpop.f32.mrf.mxu0
        %v2537 = vadd.f32 %v2508, %v2536
        %2538 = vmatmul.bf16.gmra.mxu0 %v899
        %v2539 = vpop.f32.mrf.mxu0
        %v2540 = vadd.f32 %v2511, %v2539
        %v2541 = vpop.f32.mrf.mxu0
        %v2542 = vadd.f32 %v2513, %v2541
        %2543 = vdwg.mxu0
        %2544 = vmatpush.bf16.msra.mxu0 %v1743
        %2545 = vmatpush.bf16.msra.mxu0 %v1735
        %2546 = vmatpush.bf16.msra.mxu0 %v1727
        %2547 = vmatpush.bf16.msra.mxu0 %v1719
        %2548 = vmatpush.bf16.msra.mxu0 %v1711
        %2549 = vmatpush.bf16.msra.mxu0 %v1703
        %2550 = vmatpush.bf16.msra.mxu0 %v1695
        %2551 = vmatpush.bf16.msra.mxu0 %v1687
        %2552 = vmatmul.bf16.gmra.mxu0 %v884
        %v2553 = vpop.f32.mrf.mxu0
        %v2554 = vadd.f32 %v823, %v2553
        %v2555 = vpop.f32.mrf.mxu0
        %v2556 = vadd.f32 %v823, %v2555
        %2557 = vmatmul.bf16.gmra.mxu0 %v888
        %v2558 = vpop.f32.mrf.mxu0
        %v2559 = vadd.f32 %v823, %v2558
        %v2560 = vpop.f32.mrf.mxu0
        %v2561 = vadd.f32 %v823, %v2560
        %2562 = vmatmul.bf16.gmra.mxu0 %v892
        %v2563 = vpop.f32.mrf.mxu0
        %v2564 = vadd.f32 %v823, %v2563
        %v2565 = vpop.f32.mrf.mxu0
        %v2566 = vadd.f32 %v823, %v2565
        %2567 = vmatmul.bf16.gmra.mxu0 %v896
        %v2568 = vpop.f32.mrf.mxu0
        %v2569 = vadd.f32 %v823, %v2568
        %v2570 = vpop.f32.mrf.mxu0
        %v2571 = vadd.f32 %v823, %v2570
        %2572 = vdwg.mxu0
        %2573 = vmatpush.bf16.msra.mxu0 %v1807
        %2574 = vmatpush.bf16.msra.mxu0 %v1799
        %2575 = vmatpush.bf16.msra.mxu0 %v1791
        %2576 = vmatpush.bf16.msra.mxu0 %v1783
        %2577 = vmatpush.bf16.msra.mxu0 %v1775
        %2578 = vmatpush.bf16.msra.mxu0 %v1767
        %2579 = vmatpush.bf16.msra.mxu0 %v1759
        %2580 = vmatpush.bf16.msra.mxu0 %v1751
        %2581 = vmatmul.bf16.gmra.mxu0 %v885
        %v2582 = vpop.f32.mrf.mxu0
        %v2583 = vadd.f32 %v2554, %v2582
        %v2584 = vpop.f32.mrf.mxu0
        %v2585 = vadd.f32 %v2556, %v2584
        %2586 = vmatmul.bf16.gmra.mxu0 %v889
        %v2587 = vpop.f32.mrf.mxu0
        %v2588 = vadd.f32 %v2559, %v2587
        %v2589 = vpop.f32.mrf.mxu0
        %v2590 = vadd.f32 %v2561, %v2589
        %2591 = vmatmul.bf16.gmra.mxu0 %v893
        %v2592 = vpop.f32.mrf.mxu0
        %v2593 = vadd.f32 %v2564, %v2592
        %v2594 = vpop.f32.mrf.mxu0
        %v2595 = vadd.f32 %v2566, %v2594
        %2596 = vmatmul.bf16.gmra.mxu0 %v897
        %v2597 = vpop.f32.mrf.mxu0
        %v2598 = vadd.f32 %v2569, %v2597
        %v2599 = vpop.f32.mrf.mxu0
        %v2600 = vadd.f32 %v2571, %v2599
        %2601 = vdwg.mxu0
        %2602 = vmatpush.bf16.msra.mxu0 %v1871
        %2603 = vmatpush.bf16.msra.mxu0 %v1863
        %2604 = vmatpush.bf16.msra.mxu0 %v1855
        %2605 = vmatpush.bf16.msra.mxu0 %v1847
        %2606 = vmatpush.bf16.msra.mxu0 %v1839
        %2607 = vmatpush.bf16.msra.mxu0 %v1831
        %2608 = vmatpush.bf16.msra.mxu0 %v1823
        %2609 = vmatpush.bf16.msra.mxu0 %v1815
        %2610 = vmatmul.bf16.gmra.mxu0 %v886
        %v2611 = vpop.f32.mrf.mxu0
        %v2612 = vadd.f32 %v2583, %v2611
        %v2613 = vpop.f32.mrf.mxu0
        %v2614 = vadd.f32 %v2585, %v2613
        %2615 = vmatmul.bf16.gmra.mxu0 %v890
        %v2616 = vpop.f32.mrf.mxu0
        %v2617 = vadd.f32 %v2588, %v2616
        %v2618 = vpop.f32.mrf.mxu0
        %v2619 = vadd.f32 %v2590, %v2618
        %2620 = vmatmul.bf16.gmra.mxu0 %v894
        %v2621 = vpop.f32.mrf.mxu0
        %v2622 = vadd.f32 %v2593, %v2621
        %v2623 = vpop.f32.mrf.mxu0
        %v2624 = vadd.f32 %v2595, %v2623
        %2625 = vmatmul.bf16.gmra.mxu0 %v898
        %v2626 = vpop.f32.mrf.mxu0
        %v2627 = vadd.f32 %v2598, %v2626
        %v2628 = vpop.f32.mrf.mxu0
        %v2629 = vadd.f32 %v2600, %v2628
        %2630 = vdwg.mxu0
        %2631 = vmatpush.bf16.msra.mxu0 %v1935
        %2632 = vmatpush.bf16.msra.mxu0 %v1927
        %2633 = vmatpush.bf16.msra.mxu0 %v1919
        %2634 = vmatpush.bf16.msra.mxu0 %v1911
        %2635 = vmatpush.bf16.msra.mxu0 %v1903
        %2636 = vmatpush.bf16.msra.mxu0 %v1895
        %2637 = vmatpush.bf16.msra.mxu0 %v1887
        %2638 = vmatpush.bf16.msra.mxu0 %v1879
        %2639 = vmatmul.bf16.gmra.mxu0 %v887
        %v2640 = vpop.f32.mrf.mxu0
        %v2641 = vadd.f32 %v2612, %v2640
        %v2642 = vpop.f32.mrf.mxu0
        %v2643 = vadd.f32 %v2614, %v2642
        %2644 = vmatmul.bf16.gmra.mxu0 %v891
        %v2645 = vpop.f32.mrf.mxu0
        %v2646 = vadd.f32 %v2617, %v2645
        %v2647 = vpop.f32.mrf.mxu0
        %v2648 = vadd.f32 %v2619, %v2647
        %2649 = vmatmul.bf16.gmra.mxu0 %v895
        %v2650 = vpop.f32.mrf.mxu0
        %v2651 = vadd.f32 %v2622, %v2650
        %v2652 = vpop.f32.mrf.mxu0
        %v2653 = vadd.f32 %v2624, %v2652
        %2654 = vmatmul.bf16.gmra.mxu0 %v899
        %v2655 = vpop.f32.mrf.mxu0
        %v2656 = vadd.f32 %v2627, %v2655
        %v2657 = vpop.f32.mrf.mxu0
        %v2658 = vadd.f32 %v2629, %v2657
        %2659 = vdwg.mxu0
        %2660 = vmatpush.bf16.msra.mxu0 %v1744
        %2661 = vmatpush.bf16.msra.mxu0 %v1736
        %2662 = vmatpush.bf16.msra.mxu0 %v1728
        %2663 = vmatpush.bf16.msra.mxu0 %v1720
        %2664 = vmatpush.bf16.msra.mxu0 %v1712
        %2665 = vmatpush.bf16.msra.mxu0 %v1704
        %2666 = vmatpush.bf16.msra.mxu0 %v1696
        %2667 = vmatpush.bf16.msra.mxu0 %v1688
        %2668 = vmatmul.bf16.gmra.mxu0 %v884
        %v2669 = vpop.f32.mrf.mxu0
        %v2670 = vadd.f32 %v824, %v2669
        %v2671 = vpop.f32.mrf.mxu0
        %v2672 = vadd.f32 %v824, %v2671
        %2673 = vmatmul.bf16.gmra.mxu0 %v888
        %v2674 = vpop.f32.mrf.mxu0
        %v2675 = vadd.f32 %v824, %v2674
        %v2676 = vpop.f32.mrf.mxu0
        %v2677 = vadd.f32 %v824, %v2676
        %2678 = vmatmul.bf16.gmra.mxu0 %v892
        %v2679 = vpop.f32.mrf.mxu0
        %v2680 = vadd.f32 %v824, %v2679
        %v2681 = vpop.f32.mrf.mxu0
        %v2682 = vadd.f32 %v824, %v2681
        %2683 = vmatmul.bf16.gmra.mxu0 %v896
        %v2684 = vpop.f32.mrf.mxu0
        %v2685 = vadd.f32 %v824, %v2684
        %v2686 = vpop.f32.mrf.mxu0
        %v2687 = vadd.f32 %v824, %v2686
        %2688 = vdwg.mxu0
        %2689 = vmatpush.bf16.msra.mxu0 %v1808
        %2690 = vmatpush.bf16.msra.mxu0 %v1800
        %2691 = vmatpush.bf16.msra.mxu0 %v1792
        %2692 = vmatpush.bf16.msra.mxu0 %v1784
        %2693 = vmatpush.bf16.msra.mxu0 %v1776
        %2694 = vmatpush.bf16.msra.mxu0 %v1768
        %2695 = vmatpush.bf16.msra.mxu0 %v1760
        %2696 = vmatpush.bf16.msra.mxu0 %v1752
        %2697 = vmatmul.bf16.gmra.mxu0 %v885
        %v2698 = vpop.f32.mrf.mxu0
        %v2699 = vadd.f32 %v2670, %v2698
        %v2700 = vpop.f32.mrf.mxu0
        %v2701 = vadd.f32 %v2672, %v2700
        %2702 = vmatmul.bf16.gmra.mxu0 %v889
        %v2703 = vpop.f32.mrf.mxu0
        %v2704 = vadd.f32 %v2675, %v2703
        %v2705 = vpop.f32.mrf.mxu0
        %v2706 = vadd.f32 %v2677, %v2705
        %2707 = vmatmul.bf16.gmra.mxu0 %v893
        %v2708 = vpop.f32.mrf.mxu0
        %v2709 = vadd.f32 %v2680, %v2708
        %v2710 = vpop.f32.mrf.mxu0
        %v2711 = vadd.f32 %v2682, %v2710
        %2712 = vmatmul.bf16.gmra.mxu0 %v897
        %v2713 = vpop.f32.mrf.mxu0
        %v2714 = vadd.f32 %v2685, %v2713
        %v2715 = vpop.f32.mrf.mxu0
        %v2716 = vadd.f32 %v2687, %v2715
        %2717 = vdwg.mxu0
        %2718 = vmatpush.bf16.msra.mxu0 %v1872
        %2719 = vmatpush.bf16.msra.mxu0 %v1864
        %2720 = vmatpush.bf16.msra.mxu0 %v1856
        %2721 = vmatpush.bf16.msra.mxu0 %v1848
        %2722 = vmatpush.bf16.msra.mxu0 %v1840
        %2723 = vmatpush.bf16.msra.mxu0 %v1832
        %2724 = vmatpush.bf16.msra.mxu0 %v1824
        %2725 = vmatpush.bf16.msra.mxu0 %v1816
        %2726 = vmatmul.bf16.gmra.mxu0 %v886
        %v2727 = vpop.f32.mrf.mxu0
        %v2728 = vadd.f32 %v2699, %v2727
        %v2729 = vpop.f32.mrf.mxu0
        %v2730 = vadd.f32 %v2701, %v2729
        %2731 = vmatmul.bf16.gmra.mxu0 %v890
        %v2732 = vpop.f32.mrf.mxu0
        %v2733 = vadd.f32 %v2704, %v2732
        %v2734 = vpop.f32.mrf.mxu0
        %v2735 = vadd.f32 %v2706, %v2734
        %2736 = vmatmul.bf16.gmra.mxu0 %v894
        %v2737 = vpop.f32.mrf.mxu0
        %v2738 = vadd.f32 %v2709, %v2737
        %v2739 = vpop.f32.mrf.mxu0
        %v2740 = vadd.f32 %v2711, %v2739
        %2741 = vmatmul.bf16.gmra.mxu0 %v898
        %v2742 = vpop.f32.mrf.mxu0
        %v2743 = vadd.f32 %v2714, %v2742
        %v2744 = vpop.f32.mrf.mxu0
        %v2745 = vadd.f32 %v2716, %v2744
        %2746 = vdwg.mxu0
        %2747 = vmatpush.bf16.msra.mxu0 %v1936
        %2748 = vmatpush.bf16.msra.mxu0 %v1928
        %2749 = vmatpush.bf16.msra.mxu0 %v1920
        %2750 = vmatpush.bf16.msra.mxu0 %v1912
        %2751 = vmatpush.bf16.msra.mxu0 %v1904
        %2752 = vmatpush.bf16.msra.mxu0 %v1896
        %2753 = vmatpush.bf16.msra.mxu0 %v1888
        %2754 = vmatpush.bf16.msra.mxu0 %v1880
        %2755 = vmatmul.bf16.gmra.mxu0 %v887
        %v2756 = vpop.f32.mrf.mxu0
        %v2757 = vadd.f32 %v2728, %v2756
        %v2758 = vpop.f32.mrf.mxu0
        %v2759 = vadd.f32 %v2730, %v2758
        %2760 = vmatmul.bf16.gmra.mxu0 %v891
        %v2761 = vpop.f32.mrf.mxu0
        %v2762 = vadd.f32 %v2733, %v2761
        %v2763 = vpop.f32.mrf.mxu0
        %v2764 = vadd.f32 %v2735, %v2763
        %2765 = vmatmul.bf16.gmra.mxu0 %v895
        %v2766 = vpop.f32.mrf.mxu0
        %v2767 = vadd.f32 %v2738, %v2766
        %v2768 = vpop.f32.mrf.mxu0
        %v2769 = vadd.f32 %v2740, %v2768
        %2770 = vmatmul.bf16.gmra.mxu0 %v899
        %v2771 = vpop.f32.mrf.mxu0
        %v2772 = vadd.f32 %v2743, %v2771
        %v2773 = vpop.f32.mrf.mxu0
        %v2774 = vadd.f32 %v2745, %v2773
        %2775 = vdwg.mxu0
        %2776 = vmatpush.bf16.msra.mxu0 %v1745
        %2777 = vmatpush.bf16.msra.mxu0 %v1737
        %2778 = vmatpush.bf16.msra.mxu0 %v1729
        %2779 = vmatpush.bf16.msra.mxu0 %v1721
        %2780 = vmatpush.bf16.msra.mxu0 %v1713
        %2781 = vmatpush.bf16.msra.mxu0 %v1705
        %2782 = vmatpush.bf16.msra.mxu0 %v1697
        %2783 = vmatpush.bf16.msra.mxu0 %v1689
        %2784 = vmatmul.bf16.gmra.mxu0 %v884
        %v2785 = vpop.f32.mrf.mxu0
        %v2786 = vadd.f32 %v825, %v2785
        %v2787 = vpop.f32.mrf.mxu0
        %v2788 = vadd.f32 %v825, %v2787
        %2789 = vmatmul.bf16.gmra.mxu0 %v888
        %v2790 = vpop.f32.mrf.mxu0
        %v2791 = vadd.f32 %v825, %v2790
        %v2792 = vpop.f32.mrf.mxu0
        %v2793 = vadd.f32 %v825, %v2792
        %2794 = vmatmul.bf16.gmra.mxu0 %v892
        %v2795 = vpop.f32.mrf.mxu0
        %v2796 = vadd.f32 %v825, %v2795
        %v2797 = vpop.f32.mrf.mxu0
        %v2798 = vadd.f32 %v825, %v2797
        %2799 = vmatmul.bf16.gmra.mxu0 %v896
        %v2800 = vpop.f32.mrf.mxu0
        %v2801 = vadd.f32 %v825, %v2800
        %v2802 = vpop.f32.mrf.mxu0
        %v2803 = vadd.f32 %v825, %v2802
        %2804 = vdwg.mxu0
        %2805 = vmatpush.bf16.msra.mxu0 %v1809
        %2806 = vmatpush.bf16.msra.mxu0 %v1801
        %2807 = vmatpush.bf16.msra.mxu0 %v1793
        %2808 = vmatpush.bf16.msra.mxu0 %v1785
        %2809 = vmatpush.bf16.msra.mxu0 %v1777
        %2810 = vmatpush.bf16.msra.mxu0 %v1769
        %2811 = vmatpush.bf16.msra.mxu0 %v1761
        %2812 = vmatpush.bf16.msra.mxu0 %v1753
        %2813 = vmatmul.bf16.gmra.mxu0 %v885
        %v2814 = vpop.f32.mrf.mxu0
        %v2815 = vadd.f32 %v2786, %v2814
        %v2816 = vpop.f32.mrf.mxu0
        %v2817 = vadd.f32 %v2788, %v2816
        %2818 = vmatmul.bf16.gmra.mxu0 %v889
        %v2819 = vpop.f32.mrf.mxu0
        %v2820 = vadd.f32 %v2791, %v2819
        %v2821 = vpop.f32.mrf.mxu0
        %v2822 = vadd.f32 %v2793, %v2821
        %2823 = vmatmul.bf16.gmra.mxu0 %v893
        %v2824 = vpop.f32.mrf.mxu0
        %v2825 = vadd.f32 %v2796, %v2824
        %v2826 = vpop.f32.mrf.mxu0
        %v2827 = vadd.f32 %v2798, %v2826
        %2828 = vmatmul.bf16.gmra.mxu0 %v897
        %v2829 = vpop.f32.mrf.mxu0
        %v2830 = vadd.f32 %v2801, %v2829
        %v2831 = vpop.f32.mrf.mxu0
        %v2832 = vadd.f32 %v2803, %v2831
        %2833 = vdwg.mxu0
        %2834 = vmatpush.bf16.msra.mxu0 %v1873
        %2835 = vmatpush.bf16.msra.mxu0 %v1865
        %2836 = vmatpush.bf16.msra.mxu0 %v1857
        %2837 = vmatpush.bf16.msra.mxu0 %v1849
        %2838 = vmatpush.bf16.msra.mxu0 %v1841
        %2839 = vmatpush.bf16.msra.mxu0 %v1833
        %2840 = vmatpush.bf16.msra.mxu0 %v1825
        %2841 = vmatpush.bf16.msra.mxu0 %v1817
        %2842 = vmatmul.bf16.gmra.mxu0 %v886
        %v2843 = vpop.f32.mrf.mxu0
        %v2844 = vadd.f32 %v2815, %v2843
        %v2845 = vpop.f32.mrf.mxu0
        %v2846 = vadd.f32 %v2817, %v2845
        %2847 = vmatmul.bf16.gmra.mxu0 %v890
        %v2848 = vpop.f32.mrf.mxu0
        %v2849 = vadd.f32 %v2820, %v2848
        %v2850 = vpop.f32.mrf.mxu0
        %v2851 = vadd.f32 %v2822, %v2850
        %2852 = vmatmul.bf16.gmra.mxu0 %v894
        %v2853 = vpop.f32.mrf.mxu0
        %v2854 = vadd.f32 %v2825, %v2853
        %v2855 = vpop.f32.mrf.mxu0
        %v2856 = vadd.f32 %v2827, %v2855
        %2857 = vmatmul.bf16.gmra.mxu0 %v898
        %v2858 = vpop.f32.mrf.mxu0
        %v2859 = vadd.f32 %v2830, %v2858
        %v2860 = vpop.f32.mrf.mxu0
        %v2861 = vadd.f32 %v2832, %v2860
        %2862 = vdwg.mxu0
        %2863 = vmatpush.bf16.msra.mxu0 %v1937
        %2864 = vmatpush.bf16.msra.mxu0 %v1929
        %2865 = vmatpush.bf16.msra.mxu0 %v1921
        %2866 = vmatpush.bf16.msra.mxu0 %v1913
        %2867 = vmatpush.bf16.msra.mxu0 %v1905
        %2868 = vmatpush.bf16.msra.mxu0 %v1897
        %2869 = vmatpush.bf16.msra.mxu0 %v1889
        %2870 = vmatpush.bf16.msra.mxu0 %v1881
        %2871 = vmatmul.bf16.gmra.mxu0 %v887
        %v2872 = vpop.f32.mrf.mxu0
        %v2873 = vadd.f32 %v2844, %v2872
        %v2874 = vpop.f32.mrf.mxu0
        %v2875 = vadd.f32 %v2846, %v2874
        %2876 = vmatmul.bf16.gmra.mxu0 %v891
        %v2877 = vpop.f32.mrf.mxu0
        %v2878 = vadd.f32 %v2849, %v2877
        %v2879 = vpop.f32.mrf.mxu0
        %v2880 = vadd.f32 %v2851, %v2879
        %2881 = vmatmul.bf16.gmra.mxu0 %v895
        %v2882 = vpop.f32.mrf.mxu0
        %v2883 = vadd.f32 %v2854, %v2882
        %v2884 = vpop.f32.mrf.mxu0
        %v2885 = vadd.f32 %v2856, %v2884
        %2886 = vmatmul.bf16.gmra.mxu0 %v899
        %v2887 = vpop.f32.mrf.mxu0
        %v2888 = vadd.f32 %v2859, %v2887
        %v2889 = vpop.f32.mrf.mxu0
        %v2890 = vadd.f32 %v2861, %v2889
        %2891 = vdwg.mxu0
        %2892 = vmatpush.bf16.msra.mxu0 %v1746
        %2893 = vmatpush.bf16.msra.mxu0 %v1738
        %2894 = vmatpush.bf16.msra.mxu0 %v1730
        %2895 = vmatpush.bf16.msra.mxu0 %v1722
        %2896 = vmatpush.bf16.msra.mxu0 %v1714
        %2897 = vmatpush.bf16.msra.mxu0 %v1706
        %2898 = vmatpush.bf16.msra.mxu0 %v1698
        %2899 = vmatpush.bf16.msra.mxu0 %v1690
        %2900 = vmatmul.bf16.gmra.mxu0 %v884
        %v2901 = vpop.f32.mrf.mxu0
        %v2902 = vadd.f32 %v826, %v2901
        %v2903 = vpop.f32.mrf.mxu0
        %v2904 = vadd.f32 %v826, %v2903
        %2905 = vmatmul.bf16.gmra.mxu0 %v888
        %v2906 = vpop.f32.mrf.mxu0
        %v2907 = vadd.f32 %v826, %v2906
        %v2908 = vpop.f32.mrf.mxu0
        %v2909 = vadd.f32 %v826, %v2908
        %2910 = vmatmul.bf16.gmra.mxu0 %v892
        %v2911 = vpop.f32.mrf.mxu0
        %v2912 = vadd.f32 %v826, %v2911
        %v2913 = vpop.f32.mrf.mxu0
        %v2914 = vadd.f32 %v826, %v2913
        %2915 = vmatmul.bf16.gmra.mxu0 %v896
        %v2916 = vpop.f32.mrf.mxu0
        %v2917 = vadd.f32 %v826, %v2916
        %v2918 = vpop.f32.mrf.mxu0
        %v2919 = vadd.f32 %v826, %v2918
        %2920 = vdwg.mxu0
        %2921 = vmatpush.bf16.msra.mxu0 %v1810
        %2922 = vmatpush.bf16.msra.mxu0 %v1802
        %2923 = vmatpush.bf16.msra.mxu0 %v1794
        %2924 = vmatpush.bf16.msra.mxu0 %v1786
        %2925 = vmatpush.bf16.msra.mxu0 %v1778
        %2926 = vmatpush.bf16.msra.mxu0 %v1770
        %2927 = vmatpush.bf16.msra.mxu0 %v1762
        %2928 = vmatpush.bf16.msra.mxu0 %v1754
        %2929 = vmatmul.bf16.gmra.mxu0 %v885
        %v2930 = vpop.f32.mrf.mxu0
        %v2931 = vadd.f32 %v2902, %v2930
        %v2932 = vpop.f32.mrf.mxu0
        %v2933 = vadd.f32 %v2904, %v2932
        %2934 = vmatmul.bf16.gmra.mxu0 %v889
        %v2935 = vpop.f32.mrf.mxu0
        %v2936 = vadd.f32 %v2907, %v2935
        %v2937 = vpop.f32.mrf.mxu0
        %v2938 = vadd.f32 %v2909, %v2937
        %2939 = vmatmul.bf16.gmra.mxu0 %v893
        %v2940 = vpop.f32.mrf.mxu0
        %v2941 = vadd.f32 %v2912, %v2940
        %v2942 = vpop.f32.mrf.mxu0
        %v2943 = vadd.f32 %v2914, %v2942
        %2944 = vmatmul.bf16.gmra.mxu0 %v897
        %v2945 = vpop.f32.mrf.mxu0
        %v2946 = vadd.f32 %v2917, %v2945
        %v2947 = vpop.f32.mrf.mxu0
        %v2948 = vadd.f32 %v2919, %v2947
        %2949 = vdwg.mxu0
        %2950 = vmatpush.bf16.msra.mxu0 %v1874
        %2951 = vmatpush.bf16.msra.mxu0 %v1866
        %2952 = vmatpush.bf16.msra.mxu0 %v1858
        %2953 = vmatpush.bf16.msra.mxu0 %v1850
        %2954 = vmatpush.bf16.msra.mxu0 %v1842
        %2955 = vmatpush.bf16.msra.mxu0 %v1834
        %2956 = vmatpush.bf16.msra.mxu0 %v1826
        %2957 = vmatpush.bf16.msra.mxu0 %v1818
        %2958 = vmatmul.bf16.gmra.mxu0 %v886
        %v2959 = vpop.f32.mrf.mxu0
        %v2960 = vadd.f32 %v2931, %v2959
        %v2961 = vpop.f32.mrf.mxu0
        %v2962 = vadd.f32 %v2933, %v2961
        %2963 = vmatmul.bf16.gmra.mxu0 %v890
        %v2964 = vpop.f32.mrf.mxu0
        %v2965 = vadd.f32 %v2936, %v2964
        %v2966 = vpop.f32.mrf.mxu0
        %v2967 = vadd.f32 %v2938, %v2966
        %2968 = vmatmul.bf16.gmra.mxu0 %v894
        %v2969 = vpop.f32.mrf.mxu0
        %v2970 = vadd.f32 %v2941, %v2969
        %v2971 = vpop.f32.mrf.mxu0
        %v2972 = vadd.f32 %v2943, %v2971
        %2973 = vmatmul.bf16.gmra.mxu0 %v898
        %v2974 = vpop.f32.mrf.mxu0
        %v2975 = vadd.f32 %v2946, %v2974
        %v2976 = vpop.f32.mrf.mxu0
        %v2977 = vadd.f32 %v2948, %v2976
        %2978 = vdwg.mxu0
        %2979 = vmatpush.bf16.msra.mxu0 %v1938
        %2980 = vmatpush.bf16.msra.mxu0 %v1930
        %2981 = vmatpush.bf16.msra.mxu0 %v1922
        %2982 = vmatpush.bf16.msra.mxu0 %v1914
        %2983 = vmatpush.bf16.msra.mxu0 %v1906
        %2984 = vmatpush.bf16.msra.mxu0 %v1898
        %2985 = vmatpush.bf16.msra.mxu0 %v1890
        %2986 = vmatpush.bf16.msra.mxu0 %v1882
        %2987 = vmatmul.bf16.gmra.mxu0 %v887
        %v2988 = vpop.f32.mrf.mxu0
        %v2989 = vadd.f32 %v2960, %v2988
        %v2990 = vpop.f32.mrf.mxu0
        %v2991 = vadd.f32 %v2962, %v2990
        %2992 = vmatmul.bf16.gmra.mxu0 %v891
        %v2993 = vpop.f32.mrf.mxu0
        %v2994 = vadd.f32 %v2965, %v2993
        %v2995 = vpop.f32.mrf.mxu0
        %v2996 = vadd.f32 %v2967, %v2995
        %2997 = vmatmul.bf16.gmra.mxu0 %v895
        %v2998 = vpop.f32.mrf.mxu0
        %v2999 = vadd.f32 %v2970, %v2998
        %v3000 = vpop.f32.mrf.mxu0
        %v3001 = vadd.f32 %v2972, %v3000
        %3002 = vmatmul.bf16.gmra.mxu0 %v899
        %v3003 = vpop.f32.mrf.mxu0
        %v3004 = vadd.f32 %v2975, %v3003
        %v3005 = vpop.f32.mrf.mxu0
        %v3006 = vadd.f32 %v2977, %v3005
        %3007 = vdwg.mxu0
        %3008 = vmatpush.bf16.msra.mxu0 %v1747
        %3009 = vmatpush.bf16.msra.mxu0 %v1739
        %3010 = vmatpush.bf16.msra.mxu0 %v1731
        %3011 = vmatpush.bf16.msra.mxu0 %v1723
        %3012 = vmatpush.bf16.msra.mxu0 %v1715
        %3013 = vmatpush.bf16.msra.mxu0 %v1707
        %3014 = vmatpush.bf16.msra.mxu0 %v1699
        %3015 = vmatpush.bf16.msra.mxu0 %v1691
        %3016 = vmatmul.bf16.gmra.mxu0 %v884
        %v3017 = vpop.f32.mrf.mxu0
        %v3018 = vadd.f32 %v827, %v3017
        %v3019 = vpop.f32.mrf.mxu0
        %v3020 = vadd.f32 %v827, %v3019
        %3021 = vmatmul.bf16.gmra.mxu0 %v888
        %v3022 = vpop.f32.mrf.mxu0
        %v3023 = vadd.f32 %v827, %v3022
        %v3024 = vpop.f32.mrf.mxu0
        %v3025 = vadd.f32 %v827, %v3024
        %3026 = vmatmul.bf16.gmra.mxu0 %v892
        %v3027 = vpop.f32.mrf.mxu0
        %v3028 = vadd.f32 %v827, %v3027
        %v3029 = vpop.f32.mrf.mxu0
        %v3030 = vadd.f32 %v827, %v3029
        %3031 = vmatmul.bf16.gmra.mxu0 %v896
        %v3032 = vpop.f32.mrf.mxu0
        %v3033 = vadd.f32 %v827, %v3032
        %v3034 = vpop.f32.mrf.mxu0
        %v3035 = vadd.f32 %v827, %v3034
        %3036 = vdwg.mxu0
        %3037 = vmatpush.bf16.msra.mxu0 %v1811
        %3038 = vmatpush.bf16.msra.mxu0 %v1803
        %3039 = vmatpush.bf16.msra.mxu0 %v1795
        %3040 = vmatpush.bf16.msra.mxu0 %v1787
        %3041 = vmatpush.bf16.msra.mxu0 %v1779
        %3042 = vmatpush.bf16.msra.mxu0 %v1771
        %3043 = vmatpush.bf16.msra.mxu0 %v1763
        %3044 = vmatpush.bf16.msra.mxu0 %v1755
        %3045 = vmatmul.bf16.gmra.mxu0 %v885
        %v3046 = vpop.f32.mrf.mxu0
        %v3047 = vadd.f32 %v3018, %v3046
        %v3048 = vpop.f32.mrf.mxu0
        %v3049 = vadd.f32 %v3020, %v3048
        %3050 = vmatmul.bf16.gmra.mxu0 %v889
        %v3051 = vpop.f32.mrf.mxu0
        %v3052 = vadd.f32 %v3023, %v3051
        %v3053 = vpop.f32.mrf.mxu0
        %v3054 = vadd.f32 %v3025, %v3053
        %3055 = vmatmul.bf16.gmra.mxu0 %v893
        %v3056 = vpop.f32.mrf.mxu0
        %v3057 = vadd.f32 %v3028, %v3056
        %v3058 = vpop.f32.mrf.mxu0
        %v3059 = vadd.f32 %v3030, %v3058
        %3060 = vmatmul.bf16.gmra.mxu0 %v897
        %v3061 = vpop.f32.mrf.mxu0
        %v3062 = vadd.f32 %v3033, %v3061
        %v3063 = vpop.f32.mrf.mxu0
        %v3064 = vadd.f32 %v3035, %v3063
        %3065 = vdwg.mxu0
        %3066 = vmatpush.bf16.msra.mxu0 %v1875
        %3067 = vmatpush.bf16.msra.mxu0 %v1867
        %3068 = vmatpush.bf16.msra.mxu0 %v1859
        %3069 = vmatpush.bf16.msra.mxu0 %v1851
        %3070 = vmatpush.bf16.msra.mxu0 %v1843
        %3071 = vmatpush.bf16.msra.mxu0 %v1835
        %3072 = vmatpush.bf16.msra.mxu0 %v1827
        %3073 = vmatpush.bf16.msra.mxu0 %v1819
        %3074 = vmatmul.bf16.gmra.mxu0 %v886
        %v3075 = vpop.f32.mrf.mxu0
        %v3076 = vadd.f32 %v3047, %v3075
        %v3077 = vpop.f32.mrf.mxu0
        %v3078 = vadd.f32 %v3049, %v3077
        %3079 = vmatmul.bf16.gmra.mxu0 %v890
        %v3080 = vpop.f32.mrf.mxu0
        %v3081 = vadd.f32 %v3052, %v3080
        %v3082 = vpop.f32.mrf.mxu0
        %v3083 = vadd.f32 %v3054, %v3082
        %3084 = vmatmul.bf16.gmra.mxu0 %v894
        %v3085 = vpop.f32.mrf.mxu0
        %v3086 = vadd.f32 %v3057, %v3085
        %v3087 = vpop.f32.mrf.mxu0
        %v3088 = vadd.f32 %v3059, %v3087
        %3089 = vmatmul.bf16.gmra.mxu0 %v898
        %v3090 = vpop.f32.mrf.mxu0
        %v3091 = vadd.f32 %v3062, %v3090
        %v3092 = vpop.f32.mrf.mxu0
        %v3093 = vadd.f32 %v3064, %v3092
        %3094 = vdwg.mxu0
        %3095 = vmatpush.bf16.msra.mxu0 %v1939
        %3096 = vmatpush.bf16.msra.mxu0 %v1931
        %3097 = vmatpush.bf16.msra.mxu0 %v1923
        %3098 = vmatpush.bf16.msra.mxu0 %v1915
        %3099 = vmatpush.bf16.msra.mxu0 %v1907
        %3100 = vmatpush.bf16.msra.mxu0 %v1899
        %3101 = vmatpush.bf16.msra.mxu0 %v1891
        %3102 = vmatpush.bf16.msra.mxu0 %v1883
        %3103 = vmatmul.bf16.gmra.mxu0 %v887
        %v3104 = vpop.f32.mrf.mxu0
        %v3105 = vadd.f32 %v3076, %v3104
        %v3106 = vpop.f32.mrf.mxu0
        %v3107 = vadd.f32 %v3078, %v3106
        %3108 = vmatmul.bf16.gmra.mxu0 %v891
        %v3109 = vpop.f32.mrf.mxu0
        %v3110 = vadd.f32 %v3081, %v3109
        %v3111 = vpop.f32.mrf.mxu0
        %v3112 = vadd.f32 %v3083, %v3111
        %3113 = vmatmul.bf16.gmra.mxu0 %v895
        %v3114 = vpop.f32.mrf.mxu0
        %v3115 = vadd.f32 %v3086, %v3114
        %v3116 = vpop.f32.mrf.mxu0
        %v3117 = vadd.f32 %v3088, %v3116
        %3118 = vmatmul.bf16.gmra.mxu0 %v899
        %v3119 = vpop.f32.mrf.mxu0
        %v3120 = vadd.f32 %v3091, %v3119
        %v3121 = vpop.f32.mrf.mxu0
        %v3122 = vadd.f32 %v3093, %v3121
        %3123 = vdwg.mxu0
        %v3124 = vld [vmem:[%s411] sm:$0xff]
        %v3125 = vld [vmem:[%s411 + $0x8] sm:$0xff]
        %v3126 = vld [vmem:[%s411 + $0x10] sm:$0xff]
        %v3127 = vld [vmem:[%s411 + $0x18] sm:$0xff]
        %v3128 = vld [vmem:[%s411 + $0x20] sm:$0xff]
        %v3129 = vld [vmem:[%s411 + $0x28] sm:$0xff]
        %v3130 = vld [vmem:[%s411 + $0x30] sm:$0xff]
        %v3131 = vld [vmem:[%s411 + $0x38] sm:$0xff]
        %v3132 = vld [vmem:[%s411 + $0x40] sm:$0xff]
        %v3133 = vld [vmem:[%s411 + $0x48] sm:$0xff]
        %v3134 = vld [vmem:[%s411 + $0x50] sm:$0xff]
        %v3135 = vld [vmem:[%s411 + $0x58] sm:$0xff]
        %v3136 = vld [vmem:[%s411 + $0x60] sm:$0xff]
        %v3137 = vld [vmem:[%s411 + $0x68] sm:$0xff]
        %v3138 = vld [vmem:[%s411 + $0x70] sm:$0xff]
        %v3139 = vld [vmem:[%s411 + $0x78] sm:$0xff]
        %v3140 = vld [vmem:[%s411 + $0x80] sm:$0xff]
        %v3141 = vld [vmem:[%s411 + $0x88] sm:$0xff]
        %v3142 = vld [vmem:[%s411 + $0x90] sm:$0xff]
        %v3143 = vld [vmem:[%s411 + $0x98] sm:$0xff]
        %v3144 = vld [vmem:[%s411 + $0xa0] sm:$0xff]
        %v3145 = vld [vmem:[%s411 + $0xa8] sm:$0xff]
        %v3146 = vld [vmem:[%s411 + $0xb0] sm:$0xff]
        %v3147 = vld [vmem:[%s411 + $0xb8] sm:$0xff]
        %v3148 = vld [vmem:[%s411 + $0xc0] sm:$0xff]
        %v3149 = vld [vmem:[%s411 + $0xc8] sm:$0xff]
        %v3150 = vld [vmem:[%s411 + $0xd0] sm:$0xff]
        %v3151 = vld [vmem:[%s411 + $0xd8] sm:$0xff]
        %v3152 = vld [vmem:[%s411 + $0xe0] sm:$0xff]
        %v3153 = vld [vmem:[%s411 + $0xe8] sm:$0xff]
        %v3154 = vld [vmem:[%s411 + $0xf0] sm:$0xff]
        %v3155 = vld [vmem:[%s411 + $0xf8] sm:$0xff]
        %v3156 = vunpack.c.l.bf16 %v3124
        %v3157 = vunpack.c.h.bf16 %v3124
        %v3158 = vunpack.c.l.bf16 %v3125
        %v3159 = vunpack.c.h.bf16 %v3125
        %v3160 = vunpack.c.l.bf16 %v3126
        %v3161 = vunpack.c.h.bf16 %v3126
        %v3162 = vunpack.c.l.bf16 %v3127
        %v3163 = vunpack.c.h.bf16 %v3127
        %v3164 = vunpack.c.l.bf16 %v3128
        %v3165 = vunpack.c.h.bf16 %v3128
        %v3166 = vunpack.c.l.bf16 %v3129
        %v3167 = vunpack.c.h.bf16 %v3129
        %v3168 = vunpack.c.l.bf16 %v3130
        %v3169 = vunpack.c.h.bf16 %v3130
        %v3170 = vunpack.c.l.bf16 %v3131
        %v3171 = vunpack.c.h.bf16 %v3131
        %v3172 = vunpack.c.l.bf16 %v3132
        %v3173 = vunpack.c.h.bf16 %v3132
        %v3174 = vunpack.c.l.bf16 %v3133
        %v3175 = vunpack.c.h.bf16 %v3133
        %v3176 = vunpack.c.l.bf16 %v3134
        %v3177 = vunpack.c.h.bf16 %v3134
        %v3178 = vunpack.c.l.bf16 %v3135
        %v3179 = vunpack.c.h.bf16 %v3135
        %v3180 = vunpack.c.l.bf16 %v3136
        %v3181 = vunpack.c.h.bf16 %v3136
        %v3182 = vunpack.c.l.bf16 %v3137
        %v3183 = vunpack.c.h.bf16 %v3137
        %v3184 = vunpack.c.l.bf16 %v3138
        %v3185 = vunpack.c.h.bf16 %v3138
        %v3186 = vunpack.c.l.bf16 %v3139
        %v3187 = vunpack.c.h.bf16 %v3139
        %v3188 = vunpack.c.l.bf16 %v3140
        %v3189 = vunpack.c.h.bf16 %v3140
        %v3190 = vunpack.c.l.bf16 %v3141
        %v3191 = vunpack.c.h.bf16 %v3141
        %v3192 = vunpack.c.l.bf16 %v3142
        %v3193 = vunpack.c.h.bf16 %v3142
        %v3194 = vunpack.c.l.bf16 %v3143
        %v3195 = vunpack.c.h.bf16 %v3143
        %v3196 = vunpack.c.l.bf16 %v3144
        %v3197 = vunpack.c.h.bf16 %v3144
        %v3198 = vunpack.c.l.bf16 %v3145
        %v3199 = vunpack.c.h.bf16 %v3145
        %v3200 = vunpack.c.l.bf16 %v3146
        %v3201 = vunpack.c.h.bf16 %v3146
        %v3202 = vunpack.c.l.bf16 %v3147
        %v3203 = vunpack.c.h.bf16 %v3147
        %v3204 = vunpack.c.l.bf16 %v3148
        %v3205 = vunpack.c.h.bf16 %v3148
        %v3206 = vunpack.c.l.bf16 %v3149
        %v3207 = vunpack.c.h.bf16 %v3149
        %v3208 = vunpack.c.l.bf16 %v3150
        %v3209 = vunpack.c.h.bf16 %v3150
        %v3210 = vunpack.c.l.bf16 %v3151
        %v3211 = vunpack.c.h.bf16 %v3151
        %v3212 = vunpack.c.l.bf16 %v3152
        %v3213 = vunpack.c.h.bf16 %v3152
        %v3214 = vunpack.c.l.bf16 %v3153
        %v3215 = vunpack.c.h.bf16 %v3153
        %v3216 = vunpack.c.l.bf16 %v3154
        %v3217 = vunpack.c.h.bf16 %v3154
        %v3218 = vunpack.c.l.bf16 %v3155
        %v3219 = vunpack.c.h.bf16 %v3155
        %v3220 = vadd.f32 %v2293, %v3156
        %v3221 = vadd.f32 %v2409, %v3157
        %v3222 = vadd.f32 %v2525, %v3158
        %v3223 = vadd.f32 %v2641, %v3159
        %v3224 = vadd.f32 %v2757, %v3160
        %v3225 = vadd.f32 %v2873, %v3161
        %v3226 = vadd.f32 %v2989, %v3162
        %v3227 = vadd.f32 %v3105, %v3163
        %v3228 = vadd.f32 %v2295, %v3164
        %v3229 = vadd.f32 %v2411, %v3165
        %v3230 = vadd.f32 %v2527, %v3166
        %v3231 = vadd.f32 %v2643, %v3167
        %v3232 = vadd.f32 %v2759, %v3168
        %v3233 = vadd.f32 %v2875, %v3169
        %v3234 = vadd.f32 %v2991, %v3170
        %v3235 = vadd.f32 %v3107, %v3171
        %v3236 = vadd.f32 %v2298, %v3172
        %v3237 = vadd.f32 %v2414, %v3173
        %v3238 = vadd.f32 %v2530, %v3174
        %v3239 = vadd.f32 %v2646, %v3175
        %v3240 = vadd.f32 %v2762, %v3176
        %v3241 = vadd.f32 %v2878, %v3177
        %v3242 = vadd.f32 %v2994, %v3178
        %v3243 = vadd.f32 %v3110, %v3179
        %v3244 = vadd.f32 %v2300, %v3180
        %v3245 = vadd.f32 %v2416, %v3181
        %v3246 = vadd.f32 %v2532, %v3182
        %v3247 = vadd.f32 %v2648, %v3183
        %v3248 = vadd.f32 %v2764, %v3184
        %v3249 = vadd.f32 %v2880, %v3185
        %v3250 = vadd.f32 %v2996, %v3186
        %v3251 = vadd.f32 %v3112, %v3187
        %v3252 = vadd.f32 %v2303, %v3188
        %v3253 = vadd.f32 %v2419, %v3189
        %v3254 = vadd.f32 %v2535, %v3190
        %v3255 = vadd.f32 %v2651, %v3191
        %v3256 = vadd.f32 %v2767, %v3192
        %v3257 = vadd.f32 %v2883, %v3193
        %v3258 = vadd.f32 %v2999, %v3194
        %v3259 = vadd.f32 %v3115, %v3195
        %v3260 = vadd.f32 %v2305, %v3196
        %v3261 = vadd.f32 %v2421, %v3197
        %v3262 = vadd.f32 %v2537, %v3198
        %v3263 = vadd.f32 %v2653, %v3199
        %v3264 = vadd.f32 %v2769, %v3200
        %v3265 = vadd.f32 %v2885, %v3201
        %v3266 = vadd.f32 %v3001, %v3202
        %v3267 = vadd.f32 %v3117, %v3203
        %v3268 = vadd.f32 %v2308, %v3204
        %v3269 = vadd.f32 %v2424, %v3205
        %v3270 = vadd.f32 %v2540, %v3206
        %v3271 = vadd.f32 %v2656, %v3207
        %v3272 = vadd.f32 %v2772, %v3208
        %v3273 = vadd.f32 %v2888, %v3209
        %v3274 = vadd.f32 %v3004, %v3210
        %v3275 = vadd.f32 %v3120, %v3211
        %v3276 = vadd.f32 %v2310, %v3212
        %v3277 = vadd.f32 %v2426, %v3213
        %v3278 = vadd.f32 %v2542, %v3214
        %v3279 = vadd.f32 %v2658, %v3215
        %v3280 = vadd.f32 %v2774, %v3216
        %v3281 = vadd.f32 %v2890, %v3217
        %v3282 = vadd.f32 %v3006, %v3218
        %v3283 = vadd.f32 %v3122, %v3219
        %v3284 = vmax.f32 %v3220, 0.0
        %v3285 = vmax.f32 %v3221, 0.0
        %v3286 = vmax.f32 %v3222, 0.0
        %v3287 = vmax.f32 %v3223, 0.0
        %v3288 = vmax.f32 %v3224, 0.0
        %v3289 = vmax.f32 %v3225, 0.0
        %v3290 = vmax.f32 %v3226, 0.0
        %v3291 = vmax.f32 %v3227, 0.0
        %v3292 = vmax.f32 %v3228, 0.0
        %v3293 = vmax.f32 %v3229, 0.0
        %v3294 = vmax.f32 %v3230, 0.0
        %v3295 = vmax.f32 %v3231, 0.0
        %v3296 = vmax.f32 %v3232, 0.0
        %v3297 = vmax.f32 %v3233, 0.0
        %v3298 = vmax.f32 %v3234, 0.0
        %v3299 = vmax.f32 %v3235, 0.0
        %v3300 = vmax.f32 %v3236, 0.0
        %v3301 = vmax.f32 %v3237, 0.0
        %v3302 = vmax.f32 %v3238, 0.0
        %v3303 = vmax.f32 %v3239, 0.0
        %v3304 = vmax.f32 %v3240, 0.0
        %v3305 = vmax.f32 %v3241, 0.0
        %v3306 = vmax.f32 %v3242, 0.0
        %v3307 = vmax.f32 %v3243, 0.0
        %v3308 = vmax.f32 %v3244, 0.0
        %v3309 = vmax.f32 %v3245, 0.0
        %v3310 = vmax.f32 %v3246, 0.0
        %v3311 = vmax.f32 %v3247, 0.0
        %v3312 = vmax.f32 %v3248, 0.0
        %v3313 = vmax.f32 %v3249, 0.0
        %v3314 = vmax.f32 %v3250, 0.0
        %v3315 = vmax.f32 %v3251, 0.0
        %v3316 = vmax.f32 %v3252, 0.0
        %v3317 = vmax.f32 %v3253, 0.0
        %v3318 = vmax.f32 %v3254, 0.0
        %v3319 = vmax.f32 %v3255, 0.0
        %v3320 = vmax.f32 %v3256, 0.0
        %v3321 = vmax.f32 %v3257, 0.0
        %v3322 = vmax.f32 %v3258, 0.0
        %v3323 = vmax.f32 %v3259, 0.0
        %v3324 = vmax.f32 %v3260, 0.0
        %v3325 = vmax.f32 %v3261, 0.0
        %v3326 = vmax.f32 %v3262, 0.0
        %v3327 = vmax.f32 %v3263, 0.0
        %v3328 = vmax.f32 %v3264, 0.0
        %v3329 = vmax.f32 %v3265, 0.0
        %v3330 = vmax.f32 %v3266, 0.0
        %v3331 = vmax.f32 %v3267, 0.0
        %v3332 = vmax.f32 %v3268, 0.0
        %v3333 = vmax.f32 %v3269, 0.0
        %v3334 = vmax.f32 %v3270, 0.0
        %v3335 = vmax.f32 %v3271, 0.0
        %v3336 = vmax.f32 %v3272, 0.0
        %v3337 = vmax.f32 %v3273, 0.0
        %v3338 = vmax.f32 %v3274, 0.0
        %v3339 = vmax.f32 %v3275, 0.0
        %v3340 = vmax.f32 %v3276, 0.0
        %v3341 = vmax.f32 %v3277, 0.0
        %v3342 = vmax.f32 %v3278, 0.0
        %v3343 = vmax.f32 %v3279, 0.0
        %v3344 = vmax.f32 %v3280, 0.0
        %v3345 = vmax.f32 %v3281, 0.0
        %v3346 = vmax.f32 %v3282, 0.0
        %v3347 = vmax.f32 %v3283, 0.0
        %v3348 = vld [vmem:[%s498] sm:$0xff]
        %v3349 = vld [vmem:[%s498 + $0x8] sm:$0xff]
        %v3350 = vld [vmem:[%s498 + $0x10] sm:$0xff]
        %v3351 = vld [vmem:[%s498 + $0x18] sm:$0xff]
        %v3352 = vld [vmem:[%s498 + $0x20] sm:$0xff]
        %v3353 = vld [vmem:[%s498 + $0x28] sm:$0xff]
        %v3354 = vld [vmem:[%s498 + $0x30] sm:$0xff]
        %v3355 = vld [vmem:[%s498 + $0x38] sm:$0xff]
        %v3356 = vld [vmem:[%s498 + $0x40] sm:$0xff]
        %v3357 = vld [vmem:[%s498 + $0x48] sm:$0xff]
        %v3358 = vld [vmem:[%s498 + $0x50] sm:$0xff]
        %v3359 = vld [vmem:[%s498 + $0x58] sm:$0xff]
        %v3360 = vld [vmem:[%s498 + $0x60] sm:$0xff]
        %v3361 = vld [vmem:[%s498 + $0x68] sm:$0xff]
        %v3362 = vld [vmem:[%s498 + $0x70] sm:$0xff]
        %v3363 = vld [vmem:[%s498 + $0x78] sm:$0xff]
        %v3364 = vld [vmem:[%s498 + $0x80] sm:$0xff]
        %v3365 = vld [vmem:[%s498 + $0x88] sm:$0xff]
        %v3366 = vld [vmem:[%s498 + $0x90] sm:$0xff]
        %v3367 = vld [vmem:[%s498 + $0x98] sm:$0xff]
        %v3368 = vld [vmem:[%s498 + $0xa0] sm:$0xff]
        %v3369 = vld [vmem:[%s498 + $0xa8] sm:$0xff]
        %v3370 = vld [vmem:[%s498 + $0xb0] sm:$0xff]
        %v3371 = vld [vmem:[%s498 + $0xb8] sm:$0xff]
        %v3372 = vld [vmem:[%s498 + $0xc0] sm:$0xff]
        %v3373 = vld [vmem:[%s498 + $0xc8] sm:$0xff]
        %v3374 = vld [vmem:[%s498 + $0xd0] sm:$0xff]
        %v3375 = vld [vmem:[%s498 + $0xd8] sm:$0xff]
        %v3376 = vld [vmem:[%s498 + $0xe0] sm:$0xff]
        %v3377 = vld [vmem:[%s498 + $0xe8] sm:$0xff]
        %v3378 = vld [vmem:[%s498 + $0xf0] sm:$0xff]
        %v3379 = vld [vmem:[%s498 + $0xf8] sm:$0xff]
        %v3380 = vpack.c.bf16 %v3292, %v3284
        %v3381 = vpack.c.bf16 %v3293, %v3285
        %v3382 = vpack.c.bf16 %v3294, %v3286
        %v3383 = vpack.c.bf16 %v3295, %v3287
        %v3384 = vpack.c.bf16 %v3296, %v3288
        %v3385 = vpack.c.bf16 %v3297, %v3289
        %v3386 = vpack.c.bf16 %v3298, %v3290
        %v3387 = vpack.c.bf16 %v3299, %v3291
        %v3388 = vpack.c.bf16 %v3308, %v3300
        %v3389 = vpack.c.bf16 %v3309, %v3301
        %v3390 = vpack.c.bf16 %v3310, %v3302
        %v3391 = vpack.c.bf16 %v3311, %v3303
        %v3392 = vpack.c.bf16 %v3312, %v3304
        %v3393 = vpack.c.bf16 %v3313, %v3305
        %v3394 = vpack.c.bf16 %v3314, %v3306
        %v3395 = vpack.c.bf16 %v3315, %v3307
        %v3396 = vpack.c.bf16 %v3324, %v3316
        %v3397 = vpack.c.bf16 %v3325, %v3317
        %v3398 = vpack.c.bf16 %v3326, %v3318
        %v3399 = vpack.c.bf16 %v3327, %v3319
        %v3400 = vpack.c.bf16 %v3328, %v3320
        %v3401 = vpack.c.bf16 %v3329, %v3321
        %v3402 = vpack.c.bf16 %v3330, %v3322
        %v3403 = vpack.c.bf16 %v3331, %v3323
        %v3404 = vpack.c.bf16 %v3340, %v3332
        %v3405 = vpack.c.bf16 %v3341, %v3333
        %v3406 = vpack.c.bf16 %v3342, %v3334
        %v3407 = vpack.c.bf16 %v3343, %v3335
        %v3408 = vpack.c.bf16 %v3344, %v3336
        %v3409 = vpack.c.bf16 %v3345, %v3337
        %v3410 = vpack.c.bf16 %v3346, %v3338
        %v3411 = vpack.c.bf16 %v3347, %v3339
        %v3412 = vld [vmem:[%s439] sm:$0xff]
        %v3413 = vld [vmem:[%s439 + $0x8] sm:$0xff]
        %v3414 = vld [vmem:[%s439 + $0x10] sm:$0xff]
        %v3415 = vld [vmem:[%s439 + $0x18] sm:$0xff]
        %v3416 = vld [vmem:[%s439 + $0x20] sm:$0xff]
        %v3417 = vld [vmem:[%s439 + $0x28] sm:$0xff]
        %v3418 = vld [vmem:[%s439 + $0x30] sm:$0xff]
        %v3419 = vld [vmem:[%s439 + $0x38] sm:$0xff]
        %v3420 = vld [vmem:[%s439 + $0x40] sm:$0xff]
        %v3421 = vld [vmem:[%s439 + $0x48] sm:$0xff]
        %v3422 = vld [vmem:[%s439 + $0x50] sm:$0xff]
        %v3423 = vld [vmem:[%s439 + $0x58] sm:$0xff]
        %v3424 = vld [vmem:[%s439 + $0x60] sm:$0xff]
        %v3425 = vld [vmem:[%s439 + $0x68] sm:$0xff]
        %v3426 = vld [vmem:[%s439 + $0x70] sm:$0xff]
        %v3427 = vld [vmem:[%s439 + $0x78] sm:$0xff]
        %v3428 = vld [vmem:[%s439 + $0x80] sm:$0xff]
        %v3429 = vld [vmem:[%s439 + $0x88] sm:$0xff]
        %v3430 = vld [vmem:[%s439 + $0x90] sm:$0xff]
        %v3431 = vld [vmem:[%s439 + $0x98] sm:$0xff]
        %v3432 = vld [vmem:[%s439 + $0xa0] sm:$0xff]
        %v3433 = vld [vmem:[%s439 + $0xa8] sm:$0xff]
        %v3434 = vld [vmem:[%s439 + $0xb0] sm:$0xff]
        %v3435 = vld [vmem:[%s439 + $0xb8] sm:$0xff]
        %v3436 = vld [vmem:[%s439 + $0xc0] sm:$0xff]
        %v3437 = vld [vmem:[%s439 + $0xc8] sm:$0xff]
        %v3438 = vld [vmem:[%s439 + $0xd0] sm:$0xff]
        %v3439 = vld [vmem:[%s439 + $0xd8] sm:$0xff]
        %v3440 = vld [vmem:[%s439 + $0xe0] sm:$0xff]
        %v3441 = vld [vmem:[%s439 + $0xe8] sm:$0xff]
        %v3442 = vld [vmem:[%s439 + $0xf0] sm:$0xff]
        %v3443 = vld [vmem:[%s439 + $0xf8] sm:$0xff]
        %v3444 = vld [vmem:[%s439 + $0x100] sm:$0xff]
        %v3445 = vld [vmem:[%s439 + $0x108] sm:$0xff]
        %v3446 = vld [vmem:[%s439 + $0x110] sm:$0xff]
        %v3447 = vld [vmem:[%s439 + $0x118] sm:$0xff]
        %v3448 = vld [vmem:[%s439 + $0x120] sm:$0xff]
        %v3449 = vld [vmem:[%s439 + $0x128] sm:$0xff]
        %v3450 = vld [vmem:[%s439 + $0x130] sm:$0xff]
        %v3451 = vld [vmem:[%s439 + $0x138] sm:$0xff]
        %v3452 = vld [vmem:[%s439 + $0x140] sm:$0xff]
        %v3453 = vld [vmem:[%s439 + $0x148] sm:$0xff]
        %v3454 = vld [vmem:[%s439 + $0x150] sm:$0xff]
        %v3455 = vld [vmem:[%s439 + $0x158] sm:$0xff]
        %v3456 = vld [vmem:[%s439 + $0x160] sm:$0xff]
        %v3457 = vld [vmem:[%s439 + $0x168] sm:$0xff]
        %v3458 = vld [vmem:[%s439 + $0x170] sm:$0xff]
        %v3459 = vld [vmem:[%s439 + $0x178] sm:$0xff]
        %v3460 = vld [vmem:[%s439 + $0x180] sm:$0xff]
        %v3461 = vld [vmem:[%s439 + $0x188] sm:$0xff]
        %v3462 = vld [vmem:[%s439 + $0x190] sm:$0xff]
        %v3463 = vld [vmem:[%s439 + $0x198] sm:$0xff]
        %v3464 = vld [vmem:[%s439 + $0x1a0] sm:$0xff]
        %v3465 = vld [vmem:[%s439 + $0x1a8] sm:$0xff]
        %v3466 = vld [vmem:[%s439 + $0x1b0] sm:$0xff]
        %v3467 = vld [vmem:[%s439 + $0x1b8] sm:$0xff]
        %v3468 = vld [vmem:[%s439 + $0x1c0] sm:$0xff]
        %v3469 = vld [vmem:[%s439 + $0x1c8] sm:$0xff]
        %v3470 = vld [vmem:[%s439 + $0x1d0] sm:$0xff]
        %v3471 = vld [vmem:[%s439 + $0x1d8] sm:$0xff]
        %v3472 = vld [vmem:[%s439 + $0x1e0] sm:$0xff]
        %v3473 = vld [vmem:[%s439 + $0x1e8] sm:$0xff]
        %v3474 = vld [vmem:[%s439 + $0x1f0] sm:$0xff]
        %v3475 = vld [vmem:[%s439 + $0x1f8] sm:$0xff]
        %v3476 = vld [vmem:[%s439 + $0x200] sm:$0xff]
        %v3477 = vld [vmem:[%s439 + $0x208] sm:$0xff]
        %v3478 = vld [vmem:[%s439 + $0x210] sm:$0xff]
        %v3479 = vld [vmem:[%s439 + $0x218] sm:$0xff]
        %v3480 = vld [vmem:[%s439 + $0x220] sm:$0xff]
        %v3481 = vld [vmem:[%s439 + $0x228] sm:$0xff]
        %v3482 = vld [vmem:[%s439 + $0x230] sm:$0xff]
        %v3483 = vld [vmem:[%s439 + $0x238] sm:$0xff]
        %v3484 = vld [vmem:[%s439 + $0x240] sm:$0xff]
        %v3485 = vld [vmem:[%s439 + $0x248] sm:$0xff]
        %v3486 = vld [vmem:[%s439 + $0x250] sm:$0xff]
        %v3487 = vld [vmem:[%s439 + $0x258] sm:$0xff]
        %v3488 = vld [vmem:[%s439 + $0x260] sm:$0xff]
        %v3489 = vld [vmem:[%s439 + $0x268] sm:$0xff]
        %v3490 = vld [vmem:[%s439 + $0x270] sm:$0xff]
        %v3491 = vld [vmem:[%s439 + $0x278] sm:$0xff]
        %v3492 = vld [vmem:[%s439 + $0x280] sm:$0xff]
        %v3493 = vld [vmem:[%s439 + $0x288] sm:$0xff]
        %v3494 = vld [vmem:[%s439 + $0x290] sm:$0xff]
        %v3495 = vld [vmem:[%s439 + $0x298] sm:$0xff]
        %v3496 = vld [vmem:[%s439 + $0x2a0] sm:$0xff]
        %v3497 = vld [vmem:[%s439 + $0x2a8] sm:$0xff]
        %v3498 = vld [vmem:[%s439 + $0x2b0] sm:$0xff]
        %v3499 = vld [vmem:[%s439 + $0x2b8] sm:$0xff]
        %v3500 = vld [vmem:[%s439 + $0x2c0] sm:$0xff]
        %v3501 = vld [vmem:[%s439 + $0x2c8] sm:$0xff]
        %v3502 = vld [vmem:[%s439 + $0x2d0] sm:$0xff]
        %v3503 = vld [vmem:[%s439 + $0x2d8] sm:$0xff]
        %v3504 = vld [vmem:[%s439 + $0x2e0] sm:$0xff]
        %v3505 = vld [vmem:[%s439 + $0x2e8] sm:$0xff]
        %v3506 = vld [vmem:[%s439 + $0x2f0] sm:$0xff]
        %v3507 = vld [vmem:[%s439 + $0x2f8] sm:$0xff]
        %v3508 = vld [vmem:[%s439 + $0x300] sm:$0xff]
        %v3509 = vld [vmem:[%s439 + $0x308] sm:$0xff]
        %v3510 = vld [vmem:[%s439 + $0x310] sm:$0xff]
        %v3511 = vld [vmem:[%s439 + $0x318] sm:$0xff]
        %v3512 = vld [vmem:[%s439 + $0x320] sm:$0xff]
        %v3513 = vld [vmem:[%s439 + $0x328] sm:$0xff]
        %v3514 = vld [vmem:[%s439 + $0x330] sm:$0xff]
        %v3515 = vld [vmem:[%s439 + $0x338] sm:$0xff]
        %v3516 = vld [vmem:[%s439 + $0x340] sm:$0xff]
        %v3517 = vld [vmem:[%s439 + $0x348] sm:$0xff]
        %v3518 = vld [vmem:[%s439 + $0x350] sm:$0xff]
        %v3519 = vld [vmem:[%s439 + $0x358] sm:$0xff]
        %v3520 = vld [vmem:[%s439 + $0x360] sm:$0xff]
        %v3521 = vld [vmem:[%s439 + $0x368] sm:$0xff]
        %v3522 = vld [vmem:[%s439 + $0x370] sm:$0xff]
        %v3523 = vld [vmem:[%s439 + $0x378] sm:$0xff]
        %v3524 = vld [vmem:[%s439 + $0x380] sm:$0xff]
        %v3525 = vld [vmem:[%s439 + $0x388] sm:$0xff]
        %v3526 = vld [vmem:[%s439 + $0x390] sm:$0xff]
        %v3527 = vld [vmem:[%s439 + $0x398] sm:$0xff]
        %v3528 = vld [vmem:[%s439 + $0x3a0] sm:$0xff]
        %v3529 = vld [vmem:[%s439 + $0x3a8] sm:$0xff]
        %v3530 = vld [vmem:[%s439 + $0x3b0] sm:$0xff]
        %v3531 = vld [vmem:[%s439 + $0x3b8] sm:$0xff]
        %v3532 = vld [vmem:[%s439 + $0x3c0] sm:$0xff]
        %v3533 = vld [vmem:[%s439 + $0x3c8] sm:$0xff]
        %v3534 = vld [vmem:[%s439 + $0x3d0] sm:$0xff]
        %v3535 = vld [vmem:[%s439 + $0x3d8] sm:$0xff]
        %v3536 = vld [vmem:[%s439 + $0x3e0] sm:$0xff]
        %v3537 = vld [vmem:[%s439 + $0x3e8] sm:$0xff]
        %v3538 = vld [vmem:[%s439 + $0x3f0] sm:$0xff]
        %v3539 = vld [vmem:[%s439 + $0x3f8] sm:$0xff]
        %v3540 = vld [vmem:[%s439 + $0x400] sm:$0xff]
        %v3541 = vld [vmem:[%s439 + $0x408] sm:$0xff]
        %v3542 = vld [vmem:[%s439 + $0x410] sm:$0xff]
        %v3543 = vld [vmem:[%s439 + $0x418] sm:$0xff]
        %v3544 = vld [vmem:[%s439 + $0x420] sm:$0xff]
        %v3545 = vld [vmem:[%s439 + $0x428] sm:$0xff]
        %v3546 = vld [vmem:[%s439 + $0x430] sm:$0xff]
        %v3547 = vld [vmem:[%s439 + $0x438] sm:$0xff]
        %v3548 = vld [vmem:[%s439 + $0x440] sm:$0xff]
        %v3549 = vld [vmem:[%s439 + $0x448] sm:$0xff]
        %v3550 = vld [vmem:[%s439 + $0x450] sm:$0xff]
        %v3551 = vld [vmem:[%s439 + $0x458] sm:$0xff]
        %v3552 = vld [vmem:[%s439 + $0x460] sm:$0xff]
        %v3553 = vld [vmem:[%s439 + $0x468] sm:$0xff]
        %v3554 = vld [vmem:[%s439 + $0x470] sm:$0xff]
        %v3555 = vld [vmem:[%s439 + $0x478] sm:$0xff]
        %v3556 = vld [vmem:[%s439 + $0x480] sm:$0xff]
        %v3557 = vld [vmem:[%s439 + $0x488] sm:$0xff]
        %v3558 = vld [vmem:[%s439 + $0x490] sm:$0xff]
        %v3559 = vld [vmem:[%s439 + $0x498] sm:$0xff]
        %v3560 = vld [vmem:[%s439 + $0x4a0] sm:$0xff]
        %v3561 = vld [vmem:[%s439 + $0x4a8] sm:$0xff]
        %v3562 = vld [vmem:[%s439 + $0x4b0] sm:$0xff]
        %v3563 = vld [vmem:[%s439 + $0x4b8] sm:$0xff]
        %v3564 = vld [vmem:[%s439 + $0x4c0] sm:$0xff]
        %v3565 = vld [vmem:[%s439 + $0x4c8] sm:$0xff]
        %v3566 = vld [vmem:[%s439 + $0x4d0] sm:$0xff]
        %v3567 = vld [vmem:[%s439 + $0x4d8] sm:$0xff]
        %v3568 = vld [vmem:[%s439 + $0x4e0] sm:$0xff]
        %v3569 = vld [vmem:[%s439 + $0x4e8] sm:$0xff]
        %v3570 = vld [vmem:[%s439 + $0x4f0] sm:$0xff]
        %v3571 = vld [vmem:[%s439 + $0x4f8] sm:$0xff]
        %v3572 = vld [vmem:[%s439 + $0x500] sm:$0xff]
        %v3573 = vld [vmem:[%s439 + $0x508] sm:$0xff]
        %v3574 = vld [vmem:[%s439 + $0x510] sm:$0xff]
        %v3575 = vld [vmem:[%s439 + $0x518] sm:$0xff]
        %v3576 = vld [vmem:[%s439 + $0x520] sm:$0xff]
        %v3577 = vld [vmem:[%s439 + $0x528] sm:$0xff]
        %v3578 = vld [vmem:[%s439 + $0x530] sm:$0xff]
        %v3579 = vld [vmem:[%s439 + $0x538] sm:$0xff]
        %v3580 = vld [vmem:[%s439 + $0x540] sm:$0xff]
        %v3581 = vld [vmem:[%s439 + $0x548] sm:$0xff]
        %v3582 = vld [vmem:[%s439 + $0x550] sm:$0xff]
        %v3583 = vld [vmem:[%s439 + $0x558] sm:$0xff]
        %v3584 = vld [vmem:[%s439 + $0x560] sm:$0xff]
        %v3585 = vld [vmem:[%s439 + $0x568] sm:$0xff]
        %v3586 = vld [vmem:[%s439 + $0x570] sm:$0xff]
        %v3587 = vld [vmem:[%s439 + $0x578] sm:$0xff]
        %v3588 = vld [vmem:[%s439 + $0x580] sm:$0xff]
        %v3589 = vld [vmem:[%s439 + $0x588] sm:$0xff]
        %v3590 = vld [vmem:[%s439 + $0x590] sm:$0xff]
        %v3591 = vld [vmem:[%s439 + $0x598] sm:$0xff]
        %v3592 = vld [vmem:[%s439 + $0x5a0] sm:$0xff]
        %v3593 = vld [vmem:[%s439 + $0x5a8] sm:$0xff]
        %v3594 = vld [vmem:[%s439 + $0x5b0] sm:$0xff]
        %v3595 = vld [vmem:[%s439 + $0x5b8] sm:$0xff]
        %v3596 = vld [vmem:[%s439 + $0x5c0] sm:$0xff]
        %v3597 = vld [vmem:[%s439 + $0x5c8] sm:$0xff]
        %v3598 = vld [vmem:[%s439 + $0x5d0] sm:$0xff]
        %v3599 = vld [vmem:[%s439 + $0x5d8] sm:$0xff]
        %v3600 = vld [vmem:[%s439 + $0x5e0] sm:$0xff]
        %v3601 = vld [vmem:[%s439 + $0x5e8] sm:$0xff]
        %v3602 = vld [vmem:[%s439 + $0x5f0] sm:$0xff]
        %v3603 = vld [vmem:[%s439 + $0x5f8] sm:$0xff]
        %v3604 = vld [vmem:[%s439 + $0x600] sm:$0xff]
        %v3605 = vld [vmem:[%s439 + $0x608] sm:$0xff]
        %v3606 = vld [vmem:[%s439 + $0x610] sm:$0xff]
        %v3607 = vld [vmem:[%s439 + $0x618] sm:$0xff]
        %v3608 = vld [vmem:[%s439 + $0x620] sm:$0xff]
        %v3609 = vld [vmem:[%s439 + $0x628] sm:$0xff]
        %v3610 = vld [vmem:[%s439 + $0x630] sm:$0xff]
        %v3611 = vld [vmem:[%s439 + $0x638] sm:$0xff]
        %v3612 = vld [vmem:[%s439 + $0x640] sm:$0xff]
        %v3613 = vld [vmem:[%s439 + $0x648] sm:$0xff]
        %v3614 = vld [vmem:[%s439 + $0x650] sm:$0xff]
        %v3615 = vld [vmem:[%s439 + $0x658] sm:$0xff]
        %v3616 = vld [vmem:[%s439 + $0x660] sm:$0xff]
        %v3617 = vld [vmem:[%s439 + $0x668] sm:$0xff]
        %v3618 = vld [vmem:[%s439 + $0x670] sm:$0xff]
        %v3619 = vld [vmem:[%s439 + $0x678] sm:$0xff]
        %v3620 = vld [vmem:[%s439 + $0x680] sm:$0xff]
        %v3621 = vld [vmem:[%s439 + $0x688] sm:$0xff]
        %v3622 = vld [vmem:[%s439 + $0x690] sm:$0xff]
        %v3623 = vld [vmem:[%s439 + $0x698] sm:$0xff]
        %v3624 = vld [vmem:[%s439 + $0x6a0] sm:$0xff]
        %v3625 = vld [vmem:[%s439 + $0x6a8] sm:$0xff]
        %v3626 = vld [vmem:[%s439 + $0x6b0] sm:$0xff]
        %v3627 = vld [vmem:[%s439 + $0x6b8] sm:$0xff]
        %v3628 = vld [vmem:[%s439 + $0x6c0] sm:$0xff]
        %v3629 = vld [vmem:[%s439 + $0x6c8] sm:$0xff]
        %v3630 = vld [vmem:[%s439 + $0x6d0] sm:$0xff]
        %v3631 = vld [vmem:[%s439 + $0x6d8] sm:$0xff]
        %v3632 = vld [vmem:[%s439 + $0x6e0] sm:$0xff]
        %v3633 = vld [vmem:[%s439 + $0x6e8] sm:$0xff]
        %v3634 = vld [vmem:[%s439 + $0x6f0] sm:$0xff]
        %v3635 = vld [vmem:[%s439 + $0x6f8] sm:$0xff]
        %v3636 = vld [vmem:[%s439 + $0x700] sm:$0xff]
        %v3637 = vld [vmem:[%s439 + $0x708] sm:$0xff]
        %v3638 = vld [vmem:[%s439 + $0x710] sm:$0xff]
        %v3639 = vld [vmem:[%s439 + $0x718] sm:$0xff]
        %v3640 = vld [vmem:[%s439 + $0x720] sm:$0xff]
        %v3641 = vld [vmem:[%s439 + $0x728] sm:$0xff]
        %v3642 = vld [vmem:[%s439 + $0x730] sm:$0xff]
        %v3643 = vld [vmem:[%s439 + $0x738] sm:$0xff]
        %v3644 = vld [vmem:[%s439 + $0x740] sm:$0xff]
        %v3645 = vld [vmem:[%s439 + $0x748] sm:$0xff]
        %v3646 = vld [vmem:[%s439 + $0x750] sm:$0xff]
        %v3647 = vld [vmem:[%s439 + $0x758] sm:$0xff]
        %v3648 = vld [vmem:[%s439 + $0x760] sm:$0xff]
        %v3649 = vld [vmem:[%s439 + $0x768] sm:$0xff]
        %v3650 = vld [vmem:[%s439 + $0x770] sm:$0xff]
        %v3651 = vld [vmem:[%s439 + $0x778] sm:$0xff]
        %v3652 = vld [vmem:[%s439 + $0x780] sm:$0xff]
        %v3653 = vld [vmem:[%s439 + $0x788] sm:$0xff]
        %v3654 = vld [vmem:[%s439 + $0x790] sm:$0xff]
        %v3655 = vld [vmem:[%s439 + $0x798] sm:$0xff]
        %v3656 = vld [vmem:[%s439 + $0x7a0] sm:$0xff]
        %v3657 = vld [vmem:[%s439 + $0x7a8] sm:$0xff]
        %v3658 = vld [vmem:[%s439 + $0x7b0] sm:$0xff]
        %v3659 = vld [vmem:[%s439 + $0x7b8] sm:$0xff]
        %v3660 = vld [vmem:[%s439 + $0x7c0] sm:$0xff]
        %v3661 = vld [vmem:[%s439 + $0x7c8] sm:$0xff]
        %v3662 = vld [vmem:[%s439 + $0x7d0] sm:$0xff]
        %v3663 = vld [vmem:[%s439 + $0x7d8] sm:$0xff]
        %v3664 = vld [vmem:[%s439 + $0x7e0] sm:$0xff]
        %v3665 = vld [vmem:[%s439 + $0x7e8] sm:$0xff]
        %v3666 = vld [vmem:[%s439 + $0x7f0] sm:$0xff]
        %v3667 = vld [vmem:[%s439 + $0x7f8] sm:$0xff]
        %v3924 = vunpack.c.l.b16 %v3412
        %v3925 = vunpack.c.h.b16 %v3412
        %v3926 = vunpack.c.l.b16 %v3413
        %v3927 = vunpack.c.h.b16 %v3413
        %v3928 = vunpack.c.l.b16 %v3414
        %v3929 = vunpack.c.h.b16 %v3414
        %v3930 = vunpack.c.l.b16 %v3415
        %v3931 = vunpack.c.h.b16 %v3415
        %v3932 = vunpack.c.l.b16 %v3416
        %v3933 = vunpack.c.h.b16 %v3416
        %v3934 = vunpack.c.l.b16 %v3417
        %v3935 = vunpack.c.h.b16 %v3417
        %v3936 = vunpack.c.l.b16 %v3418
        %v3937 = vunpack.c.h.b16 %v3418
        %v3938 = vunpack.c.l.b16 %v3419
        %v3939 = vunpack.c.h.b16 %v3419
        %v3940 = vunpack.c.l.b16 %v3420
        %v3941 = vunpack.c.h.b16 %v3420
        %v3942 = vunpack.c.l.b16 %v3421
        %v3943 = vunpack.c.h.b16 %v3421
        %v3944 = vunpack.c.l.b16 %v3422
        %v3945 = vunpack.c.h.b16 %v3422
        %v3946 = vunpack.c.l.b16 %v3423
        %v3947 = vunpack.c.h.b16 %v3423
        %v3948 = vunpack.c.l.b16 %v3424
        %v3949 = vunpack.c.h.b16 %v3424
        %v3950 = vunpack.c.l.b16 %v3425
        %v3951 = vunpack.c.h.b16 %v3425
        %v3952 = vunpack.c.l.b16 %v3426
        %v3953 = vunpack.c.h.b16 %v3426
        %v3954 = vunpack.c.l.b16 %v3427
        %v3955 = vunpack.c.h.b16 %v3427
        %v3956 = vunpack.c.l.b16 %v3428
        %v3957 = vunpack.c.h.b16 %v3428
        %v3958 = vunpack.c.l.b16 %v3429
        %v3959 = vunpack.c.h.b16 %v3429
        %v3960 = vunpack.c.l.b16 %v3430
        %v3961 = vunpack.c.h.b16 %v3430
        %v3962 = vunpack.c.l.b16 %v3431
        %v3963 = vunpack.c.h.b16 %v3431
        %v3964 = vunpack.c.l.b16 %v3432
        %v3965 = vunpack.c.h.b16 %v3432
        %v3966 = vunpack.c.l.b16 %v3433
        %v3967 = vunpack.c.h.b16 %v3433
        %v3968 = vunpack.c.l.b16 %v3434
        %v3969 = vunpack.c.h.b16 %v3434
        %v3970 = vunpack.c.l.b16 %v3435
        %v3971 = vunpack.c.h.b16 %v3435
        %v3972 = vunpack.c.l.b16 %v3436
        %v3973 = vunpack.c.h.b16 %v3436
        %v3974 = vunpack.c.l.b16 %v3437
        %v3975 = vunpack.c.h.b16 %v3437
        %v3976 = vunpack.c.l.b16 %v3438
        %v3977 = vunpack.c.h.b16 %v3438
        %v3978 = vunpack.c.l.b16 %v3439
        %v3979 = vunpack.c.h.b16 %v3439
        %v3980 = vunpack.c.l.b16 %v3440
        %v3981 = vunpack.c.h.b16 %v3440
        %v3982 = vunpack.c.l.b16 %v3441
        %v3983 = vunpack.c.h.b16 %v3441
        %v3984 = vunpack.c.l.b16 %v3442
        %v3985 = vunpack.c.h.b16 %v3442
        %v3986 = vunpack.c.l.b16 %v3443
        %v3987 = vunpack.c.h.b16 %v3443
        %v3988 = vunpack.c.l.b16 %v3444
        %v3989 = vunpack.c.h.b16 %v3444
        %v3990 = vunpack.c.l.b16 %v3445
        %v3991 = vunpack.c.h.b16 %v3445
        %v3992 = vunpack.c.l.b16 %v3446
        %v3993 = vunpack.c.h.b16 %v3446
        %v3994 = vunpack.c.l.b16 %v3447
        %v3995 = vunpack.c.h.b16 %v3447
        %v3996 = vunpack.c.l.b16 %v3448
        %v3997 = vunpack.c.h.b16 %v3448
        %v3998 = vunpack.c.l.b16 %v3449
        %v3999 = vunpack.c.h.b16 %v3449
        %v4000 = vunpack.c.l.b16 %v3450
        %v4001 = vunpack.c.h.b16 %v3450
        %v4002 = vunpack.c.l.b16 %v3451
        %v4003 = vunpack.c.h.b16 %v3451
        %v4004 = vunpack.c.l.b16 %v3452
        %v4005 = vunpack.c.h.b16 %v3452
        %v4006 = vunpack.c.l.b16 %v3453
        %v4007 = vunpack.c.h.b16 %v3453
        %v4008 = vunpack.c.l.b16 %v3454
        %v4009 = vunpack.c.h.b16 %v3454
        %v4010 = vunpack.c.l.b16 %v3455
        %v4011 = vunpack.c.h.b16 %v3455
        %v4012 = vunpack.c.l.b16 %v3456
        %v4013 = vunpack.c.h.b16 %v3456
        %v4014 = vunpack.c.l.b16 %v3457
        %v4015 = vunpack.c.h.b16 %v3457
        %v4016 = vunpack.c.l.b16 %v3458
        %v4017 = vunpack.c.h.b16 %v3458
        %v4018 = vunpack.c.l.b16 %v3459
        %v4019 = vunpack.c.h.b16 %v3459
        %v4020 = vunpack.c.l.b16 %v3460
        %v4021 = vunpack.c.h.b16 %v3460
        %v4022 = vunpack.c.l.b16 %v3461
        %v4023 = vunpack.c.h.b16 %v3461
        %v4024 = vunpack.c.l.b16 %v3462
        %v4025 = vunpack.c.h.b16 %v3462
        %v4026 = vunpack.c.l.b16 %v3463
        %v4027 = vunpack.c.h.b16 %v3463
        %v4028 = vunpack.c.l.b16 %v3464
        %v4029 = vunpack.c.h.b16 %v3464
        %v4030 = vunpack.c.l.b16 %v3465
        %v4031 = vunpack.c.h.b16 %v3465
        %v4032 = vunpack.c.l.b16 %v3466
        %v4033 = vunpack.c.h.b16 %v3466
        %v4034 = vunpack.c.l.b16 %v3467
        %v4035 = vunpack.c.h.b16 %v3467
        %v4036 = vunpack.c.l.b16 %v3468
        %v4037 = vunpack.c.h.b16 %v3468
        %v4038 = vunpack.c.l.b16 %v3469
        %v4039 = vunpack.c.h.b16 %v3469
        %v4040 = vunpack.c.l.b16 %v3470
        %v4041 = vunpack.c.h.b16 %v3470
        %v4042 = vunpack.c.l.b16 %v3471
        %v4043 = vunpack.c.h.b16 %v3471
        %v4044 = vunpack.c.l.b16 %v3472
        %v4045 = vunpack.c.h.b16 %v3472
        %v4046 = vunpack.c.l.b16 %v3473
        %v4047 = vunpack.c.h.b16 %v3473
        %v4048 = vunpack.c.l.b16 %v3474
        %v4049 = vunpack.c.h.b16 %v3474
        %v4050 = vunpack.c.l.b16 %v3475
        %v4051 = vunpack.c.h.b16 %v3475
        %v4052 = vunpack.c.l.b16 %v3476
        %v4053 = vunpack.c.h.b16 %v3476
        %v4054 = vunpack.c.l.b16 %v3477
        %v4055 = vunpack.c.h.b16 %v3477
        %v4056 = vunpack.c.l.b16 %v3478
        %v4057 = vunpack.c.h.b16 %v3478
        %v4058 = vunpack.c.l.b16 %v3479
        %v4059 = vunpack.c.h.b16 %v3479
        %v4060 = vunpack.c.l.b16 %v3480
        %v4061 = vunpack.c.h.b16 %v3480
        %v4062 = vunpack.c.l.b16 %v3481
        %v4063 = vunpack.c.h.b16 %v3481
        %v4064 = vunpack.c.l.b16 %v3482
        %v4065 = vunpack.c.h.b16 %v3482
        %v4066 = vunpack.c.l.b16 %v3483
        %v4067 = vunpack.c.h.b16 %v3483
        %v4068 = vunpack.c.l.b16 %v3484
        %v4069 = vunpack.c.h.b16 %v3484
        %v4070 = vunpack.c.l.b16 %v3485
        %v4071 = vunpack.c.h.b16 %v3485
        %v4072 = vunpack.c.l.b16 %v3486
        %v4073 = vunpack.c.h.b16 %v3486
        %v4074 = vunpack.c.l.b16 %v3487
        %v4075 = vunpack.c.h.b16 %v3487
        %v4076 = vunpack.c.l.b16 %v3488
        %v4077 = vunpack.c.h.b16 %v3488
        %v4078 = vunpack.c.l.b16 %v3489
        %v4079 = vunpack.c.h.b16 %v3489
        %v4080 = vunpack.c.l.b16 %v3490
        %v4081 = vunpack.c.h.b16 %v3490
        %v4082 = vunpack.c.l.b16 %v3491
        %v4083 = vunpack.c.h.b16 %v3491
        %v4084 = vunpack.c.l.b16 %v3492
        %v4085 = vunpack.c.h.b16 %v3492
        %v4086 = vunpack.c.l.b16 %v3493
        %v4087 = vunpack.c.h.b16 %v3493
        %v4088 = vunpack.c.l.b16 %v3494
        %v4089 = vunpack.c.h.b16 %v3494
        %v4090 = vunpack.c.l.b16 %v3495
        %v4091 = vunpack.c.h.b16 %v3495
        %v4092 = vunpack.c.l.b16 %v3496
        %v4093 = vunpack.c.h.b16 %v3496
        %v4094 = vunpack.c.l.b16 %v3497
        %v4095 = vunpack.c.h.b16 %v3497
        %v4096 = vunpack.c.l.b16 %v3498
        %v4097 = vunpack.c.h.b16 %v3498
        %v4098 = vunpack.c.l.b16 %v3499
        %v4099 = vunpack.c.h.b16 %v3499
        %v4100 = vunpack.c.l.b16 %v3500
        %v4101 = vunpack.c.h.b16 %v3500
        %v4102 = vunpack.c.l.b16 %v3501
        %v4103 = vunpack.c.h.b16 %v3501
        %v4104 = vunpack.c.l.b16 %v3502
        %v4105 = vunpack.c.h.b16 %v3502
        %v4106 = vunpack.c.l.b16 %v3503
        %v4107 = vunpack.c.h.b16 %v3503
        %v4108 = vunpack.c.l.b16 %v3504
        %v4109 = vunpack.c.h.b16 %v3504
        %v4110 = vunpack.c.l.b16 %v3505
        %v4111 = vunpack.c.h.b16 %v3505
        %v4112 = vunpack.c.l.b16 %v3506
        %v4113 = vunpack.c.h.b16 %v3506
        %v4114 = vunpack.c.l.b16 %v3507
        %v4115 = vunpack.c.h.b16 %v3507
        %v4116 = vunpack.c.l.b16 %v3508
        %v4117 = vunpack.c.h.b16 %v3508
        %v4118 = vunpack.c.l.b16 %v3509
        %v4119 = vunpack.c.h.b16 %v3509
        %v4120 = vunpack.c.l.b16 %v3510
        %v4121 = vunpack.c.h.b16 %v3510
        %v4122 = vunpack.c.l.b16 %v3511
        %v4123 = vunpack.c.h.b16 %v3511
        %v4124 = vunpack.c.l.b16 %v3512
        %v4125 = vunpack.c.h.b16 %v3512
        %v4126 = vunpack.c.l.b16 %v3513
        %v4127 = vunpack.c.h.b16 %v3513
        %v4128 = vunpack.c.l.b16 %v3514
        %v4129 = vunpack.c.h.b16 %v3514
        %v4130 = vunpack.c.l.b16 %v3515
        %v4131 = vunpack.c.h.b16 %v3515
        %v4132 = vunpack.c.l.b16 %v3516
        %v4133 = vunpack.c.h.b16 %v3516
        %v4134 = vunpack.c.l.b16 %v3517
        %v4135 = vunpack.c.h.b16 %v3517
        %v4136 = vunpack.c.l.b16 %v3518
        %v4137 = vunpack.c.h.b16 %v3518
        %v4138 = vunpack.c.l.b16 %v3519
        %v4139 = vunpack.c.h.b16 %v3519
        %v4140 = vunpack.c.l.b16 %v3520
        %v4141 = vunpack.c.h.b16 %v3520
        %v4142 = vunpack.c.l.b16 %v3521
        %v4143 = vunpack.c.h.b16 %v3521
        %v4144 = vunpack.c.l.b16 %v3522
        %v4145 = vunpack.c.h.b16 %v3522
        %v4146 = vunpack.c.l.b16 %v3523
        %v4147 = vunpack.c.h.b16 %v3523
        %v4148 = vunpack.c.l.b16 %v3524
        %v4149 = vunpack.c.h.b16 %v3524
        %v4150 = vunpack.c.l.b16 %v3525
        %v4151 = vunpack.c.h.b16 %v3525
        %v4152 = vunpack.c.l.b16 %v3526
        %v4153 = vunpack.c.h.b16 %v3526
        %v4154 = vunpack.c.l.b16 %v3527
        %v4155 = vunpack.c.h.b16 %v3527
        %v4156 = vunpack.c.l.b16 %v3528
        %v4157 = vunpack.c.h.b16 %v3528
        %v4158 = vunpack.c.l.b16 %v3529
        %v4159 = vunpack.c.h.b16 %v3529
        %v4160 = vunpack.c.l.b16 %v3530
        %v4161 = vunpack.c.h.b16 %v3530
        %v4162 = vunpack.c.l.b16 %v3531
        %v4163 = vunpack.c.h.b16 %v3531
        %v4164 = vunpack.c.l.b16 %v3532
        %v4165 = vunpack.c.h.b16 %v3532
        %v4166 = vunpack.c.l.b16 %v3533
        %v4167 = vunpack.c.h.b16 %v3533
        %v4168 = vunpack.c.l.b16 %v3534
        %v4169 = vunpack.c.h.b16 %v3534
        %v4170 = vunpack.c.l.b16 %v3535
        %v4171 = vunpack.c.h.b16 %v3535
        %v4172 = vunpack.c.l.b16 %v3536
        %v4173 = vunpack.c.h.b16 %v3536
        %v4174 = vunpack.c.l.b16 %v3537
        %v4175 = vunpack.c.h.b16 %v3537
        %v4176 = vunpack.c.l.b16 %v3538
        %v4177 = vunpack.c.h.b16 %v3538
        %v4178 = vunpack.c.l.b16 %v3539
        %v4179 = vunpack.c.h.b16 %v3539
        %v4180 = vunpack.c.l.b16 %v3540
        %v4181 = vunpack.c.h.b16 %v3540
        %v4182 = vunpack.c.l.b16 %v3541
        %v4183 = vunpack.c.h.b16 %v3541
        %v4184 = vunpack.c.l.b16 %v3542
        %v4185 = vunpack.c.h.b16 %v3542
        %v4186 = vunpack.c.l.b16 %v3543
        %v4187 = vunpack.c.h.b16 %v3543
        %v4188 = vunpack.c.l.b16 %v3544
        %v4189 = vunpack.c.h.b16 %v3544
        %v4190 = vunpack.c.l.b16 %v3545
        %v4191 = vunpack.c.h.b16 %v3545
        %v4192 = vunpack.c.l.b16 %v3546
        %v4193 = vunpack.c.h.b16 %v3546
        %v4194 = vunpack.c.l.b16 %v3547
        %v4195 = vunpack.c.h.b16 %v3547
        %v4196 = vunpack.c.l.b16 %v3548
        %v4197 = vunpack.c.h.b16 %v3548
        %v4198 = vunpack.c.l.b16 %v3549
        %v4199 = vunpack.c.h.b16 %v3549
        %v4200 = vunpack.c.l.b16 %v3550
        %v4201 = vunpack.c.h.b16 %v3550
        %v4202 = vunpack.c.l.b16 %v3551
        %v4203 = vunpack.c.h.b16 %v3551
        %v4204 = vunpack.c.l.b16 %v3552
        %v4205 = vunpack.c.h.b16 %v3552
        %v4206 = vunpack.c.l.b16 %v3553
        %v4207 = vunpack.c.h.b16 %v3553
        %v4208 = vunpack.c.l.b16 %v3554
        %v4209 = vunpack.c.h.b16 %v3554
        %v4210 = vunpack.c.l.b16 %v3555
        %v4211 = vunpack.c.h.b16 %v3555
        %v4212 = vunpack.c.l.b16 %v3556
        %v4213 = vunpack.c.h.b16 %v3556
        %v4214 = vunpack.c.l.b16 %v3557
        %v4215 = vunpack.c.h.b16 %v3557
        %v4216 = vunpack.c.l.b16 %v3558
        %v4217 = vunpack.c.h.b16 %v3558
        %v4218 = vunpack.c.l.b16 %v3559
        %v4219 = vunpack.c.h.b16 %v3559
        %v4220 = vunpack.c.l.b16 %v3560
        %v4221 = vunpack.c.h.b16 %v3560
        %v4222 = vunpack.c.l.b16 %v3561
        %v4223 = vunpack.c.h.b16 %v3561
        %v4224 = vunpack.c.l.b16 %v3562
        %v4225 = vunpack.c.h.b16 %v3562
        %v4226 = vunpack.c.l.b16 %v3563
        %v4227 = vunpack.c.h.b16 %v3563
        %v4228 = vunpack.c.l.b16 %v3564
        %v4229 = vunpack.c.h.b16 %v3564
        %v4230 = vunpack.c.l.b16 %v3565
        %v4231 = vunpack.c.h.b16 %v3565
        %v4232 = vunpack.c.l.b16 %v3566
        %v4233 = vunpack.c.h.b16 %v3566
        %v4234 = vunpack.c.l.b16 %v3567
        %v4235 = vunpack.c.h.b16 %v3567
        %v4236 = vunpack.c.l.b16 %v3568
        %v4237 = vunpack.c.h.b16 %v3568
        %v4238 = vunpack.c.l.b16 %v3569
        %v4239 = vunpack.c.h.b16 %v3569
        %v4240 = vunpack.c.l.b16 %v3570
        %v4241 = vunpack.c.h.b16 %v3570
        %v4242 = vunpack.c.l.b16 %v3571
        %v4243 = vunpack.c.h.b16 %v3571
        %v4244 = vunpack.c.l.b16 %v3572
        %v4245 = vunpack.c.h.b16 %v3572
        %v4246 = vunpack.c.l.b16 %v3573
        %v4247 = vunpack.c.h.b16 %v3573
        %v4248 = vunpack.c.l.b16 %v3574
        %v4249 = vunpack.c.h.b16 %v3574
        %v4250 = vunpack.c.l.b16 %v3575
        %v4251 = vunpack.c.h.b16 %v3575
        %v4252 = vunpack.c.l.b16 %v3576
        %v4253 = vunpack.c.h.b16 %v3576
        %v4254 = vunpack.c.l.b16 %v3577
        %v4255 = vunpack.c.h.b16 %v3577
        %v4256 = vunpack.c.l.b16 %v3578
        %v4257 = vunpack.c.h.b16 %v3578
        %v4258 = vunpack.c.l.b16 %v3579
        %v4259 = vunpack.c.h.b16 %v3579
        %v4260 = vunpack.c.l.b16 %v3580
        %v4261 = vunpack.c.h.b16 %v3580
        %v4262 = vunpack.c.l.b16 %v3581
        %v4263 = vunpack.c.h.b16 %v3581
        %v4264 = vunpack.c.l.b16 %v3582
        %v4265 = vunpack.c.h.b16 %v3582
        %v4266 = vunpack.c.l.b16 %v3583
        %v4267 = vunpack.c.h.b16 %v3583
        %v4268 = vunpack.c.l.b16 %v3584
        %v4269 = vunpack.c.h.b16 %v3584
        %v4270 = vunpack.c.l.b16 %v3585
        %v4271 = vunpack.c.h.b16 %v3585
        %v4272 = vunpack.c.l.b16 %v3586
        %v4273 = vunpack.c.h.b16 %v3586
        %v4274 = vunpack.c.l.b16 %v3587
        %v4275 = vunpack.c.h.b16 %v3587
        %v4276 = vunpack.c.l.b16 %v3588
        %v4277 = vunpack.c.h.b16 %v3588
        %v4278 = vunpack.c.l.b16 %v3589
        %v4279 = vunpack.c.h.b16 %v3589
        %v4280 = vunpack.c.l.b16 %v3590
        %v4281 = vunpack.c.h.b16 %v3590
        %v4282 = vunpack.c.l.b16 %v3591
        %v4283 = vunpack.c.h.b16 %v3591
        %v4284 = vunpack.c.l.b16 %v3592
        %v4285 = vunpack.c.h.b16 %v3592
        %v4286 = vunpack.c.l.b16 %v3593
        %v4287 = vunpack.c.h.b16 %v3593
        %v4288 = vunpack.c.l.b16 %v3594
        %v4289 = vunpack.c.h.b16 %v3594
        %v4290 = vunpack.c.l.b16 %v3595
        %v4291 = vunpack.c.h.b16 %v3595
        %v4292 = vunpack.c.l.b16 %v3596
        %v4293 = vunpack.c.h.b16 %v3596
        %v4294 = vunpack.c.l.b16 %v3597
        %v4295 = vunpack.c.h.b16 %v3597
        %v4296 = vunpack.c.l.b16 %v3598
        %v4297 = vunpack.c.h.b16 %v3598
        %v4298 = vunpack.c.l.b16 %v3599
        %v4299 = vunpack.c.h.b16 %v3599
        %v4300 = vunpack.c.l.b16 %v3600
        %v4301 = vunpack.c.h.b16 %v3600
        %v4302 = vunpack.c.l.b16 %v3601
        %v4303 = vunpack.c.h.b16 %v3601
        %v4304 = vunpack.c.l.b16 %v3602
        %v4305 = vunpack.c.h.b16 %v3602
        %v4306 = vunpack.c.l.b16 %v3603
        %v4307 = vunpack.c.h.b16 %v3603
        %v4308 = vunpack.c.l.b16 %v3604
        %v4309 = vunpack.c.h.b16 %v3604
        %v4310 = vunpack.c.l.b16 %v3605
        %v4311 = vunpack.c.h.b16 %v3605
        %v4312 = vunpack.c.l.b16 %v3606
        %v4313 = vunpack.c.h.b16 %v3606
        %v4314 = vunpack.c.l.b16 %v3607
        %v4315 = vunpack.c.h.b16 %v3607
        %v4316 = vunpack.c.l.b16 %v3608
        %v4317 = vunpack.c.h.b16 %v3608
        %v4318 = vunpack.c.l.b16 %v3609
        %v4319 = vunpack.c.h.b16 %v3609
        %v4320 = vunpack.c.l.b16 %v3610
        %v4321 = vunpack.c.h.b16 %v3610
        %v4322 = vunpack.c.l.b16 %v3611
        %v4323 = vunpack.c.h.b16 %v3611
        %v4324 = vunpack.c.l.b16 %v3612
        %v4325 = vunpack.c.h.b16 %v3612
        %v4326 = vunpack.c.l.b16 %v3613
        %v4327 = vunpack.c.h.b16 %v3613
        %v4328 = vunpack.c.l.b16 %v3614
        %v4329 = vunpack.c.h.b16 %v3614
        %v4330 = vunpack.c.l.b16 %v3615
        %v4331 = vunpack.c.h.b16 %v3615
        %v4332 = vunpack.c.l.b16 %v3616
        %v4333 = vunpack.c.h.b16 %v3616
        %v4334 = vunpack.c.l.b16 %v3617
        %v4335 = vunpack.c.h.b16 %v3617
        %v4336 = vunpack.c.l.b16 %v3618
        %v4337 = vunpack.c.h.b16 %v3618
        %v4338 = vunpack.c.l.b16 %v3619
        %v4339 = vunpack.c.h.b16 %v3619
        %v4340 = vunpack.c.l.b16 %v3620
        %v4341 = vunpack.c.h.b16 %v3620
        %v4342 = vunpack.c.l.b16 %v3621
        %v4343 = vunpack.c.h.b16 %v3621
        %v4344 = vunpack.c.l.b16 %v3622
        %v4345 = vunpack.c.h.b16 %v3622
        %v4346 = vunpack.c.l.b16 %v3623
        %v4347 = vunpack.c.h.b16 %v3623
        %v4348 = vunpack.c.l.b16 %v3624
        %v4349 = vunpack.c.h.b16 %v3624
        %v4350 = vunpack.c.l.b16 %v3625
        %v4351 = vunpack.c.h.b16 %v3625
        %v4352 = vunpack.c.l.b16 %v3626
        %v4353 = vunpack.c.h.b16 %v3626
        %v4354 = vunpack.c.l.b16 %v3627
        %v4355 = vunpack.c.h.b16 %v3627
        %v4356 = vunpack.c.l.b16 %v3628
        %v4357 = vunpack.c.h.b16 %v3628
        %v4358 = vunpack.c.l.b16 %v3629
        %v4359 = vunpack.c.h.b16 %v3629
        %v4360 = vunpack.c.l.b16 %v3630
        %v4361 = vunpack.c.h.b16 %v3630
        %v4362 = vunpack.c.l.b16 %v3631
        %v4363 = vunpack.c.h.b16 %v3631
        %v4364 = vunpack.c.l.b16 %v3632
        %v4365 = vunpack.c.h.b16 %v3632
        %v4366 = vunpack.c.l.b16 %v3633
        %v4367 = vunpack.c.h.b16 %v3633
        %v4368 = vunpack.c.l.b16 %v3634
        %v4369 = vunpack.c.h.b16 %v3634
        %v4370 = vunpack.c.l.b16 %v3635
        %v4371 = vunpack.c.h.b16 %v3635
        %v4372 = vunpack.c.l.b16 %v3636
        %v4373 = vunpack.c.h.b16 %v3636
        %v4374 = vunpack.c.l.b16 %v3637
        %v4375 = vunpack.c.h.b16 %v3637
        %v4376 = vunpack.c.l.b16 %v3638
        %v4377 = vunpack.c.h.b16 %v3638
        %v4378 = vunpack.c.l.b16 %v3639
        %v4379 = vunpack.c.h.b16 %v3639
        %v4380 = vunpack.c.l.b16 %v3640
        %v4381 = vunpack.c.h.b16 %v3640
        %v4382 = vunpack.c.l.b16 %v3641
        %v4383 = vunpack.c.h.b16 %v3641
        %v4384 = vunpack.c.l.b16 %v3642
        %v4385 = vunpack.c.h.b16 %v3642
        %v4386 = vunpack.c.l.b16 %v3643
        %v4387 = vunpack.c.h.b16 %v3643
        %v4388 = vunpack.c.l.b16 %v3644
        %v4389 = vunpack.c.h.b16 %v3644
        %v4390 = vunpack.c.l.b16 %v3645
        %v4391 = vunpack.c.h.b16 %v3645
        %v4392 = vunpack.c.l.b16 %v3646
        %v4393 = vunpack.c.h.b16 %v3646
        %v4394 = vunpack.c.l.b16 %v3647
        %v4395 = vunpack.c.h.b16 %v3647
        %v4396 = vunpack.c.l.b16 %v3648
        %v4397 = vunpack.c.h.b16 %v3648
        %v4398 = vunpack.c.l.b16 %v3649
        %v4399 = vunpack.c.h.b16 %v3649
        %v4400 = vunpack.c.l.b16 %v3650
        %v4401 = vunpack.c.h.b16 %v3650
        %v4402 = vunpack.c.l.b16 %v3651
        %v4403 = vunpack.c.h.b16 %v3651
        %v4404 = vunpack.c.l.b16 %v3652
        %v4405 = vunpack.c.h.b16 %v3652
        %v4406 = vunpack.c.l.b16 %v3653
        %v4407 = vunpack.c.h.b16 %v3653
        %v4408 = vunpack.c.l.b16 %v3654
        %v4409 = vunpack.c.h.b16 %v3654
        %v4410 = vunpack.c.l.b16 %v3655
        %v4411 = vunpack.c.h.b16 %v3655
        %v4412 = vunpack.c.l.b16 %v3656
        %v4413 = vunpack.c.h.b16 %v3656
        %v4414 = vunpack.c.l.b16 %v3657
        %v4415 = vunpack.c.h.b16 %v3657
        %v4416 = vunpack.c.l.b16 %v3658
        %v4417 = vunpack.c.h.b16 %v3658
        %v4418 = vunpack.c.l.b16 %v3659
        %v4419 = vunpack.c.h.b16 %v3659
        %v4420 = vunpack.c.l.b16 %v3660
        %v4421 = vunpack.c.h.b16 %v3660
        %v4422 = vunpack.c.l.b16 %v3661
        %v4423 = vunpack.c.h.b16 %v3661
        %v4424 = vunpack.c.l.b16 %v3662
        %v4425 = vunpack.c.h.b16 %v3662
        %v4426 = vunpack.c.l.b16 %v3663
        %v4427 = vunpack.c.h.b16 %v3663
        %v4428 = vunpack.c.l.b16 %v3664
        %v4429 = vunpack.c.h.b16 %v3664
        %v4430 = vunpack.c.l.b16 %v3665
        %v4431 = vunpack.c.h.b16 %v3665
        %v4432 = vunpack.c.l.b16 %v3666
        %v4433 = vunpack.c.h.b16 %v3666
        %v4434 = vunpack.c.l.b16 %v3667
        %v4435 = vunpack.c.h.b16 %v3667
        %v4436 = vpack.c.b16 %v3928, %v3924
        %v4437 = vpack.c.b16 %v3929, %v3925
        %v4438 = vpack.c.b16 %v3930, %v3926
        %v4439 = vpack.c.b16 %v3931, %v3927
        %v4440 = vpack.c.b16 %v3936, %v3932
        %v4441 = vpack.c.b16 %v3937, %v3933
        %v4442 = vpack.c.b16 %v3938, %v3934
        %v4443 = vpack.c.b16 %v3939, %v3935
        %v4444 = vpack.c.b16 %v3944, %v3940
        %v4445 = vpack.c.b16 %v3945, %v3941
        %v4446 = vpack.c.b16 %v3946, %v3942
        %v4447 = vpack.c.b16 %v3947, %v3943
        %v4448 = vpack.c.b16 %v3952, %v3948
        %v4449 = vpack.c.b16 %v3953, %v3949
        %v4450 = vpack.c.b16 %v3954, %v3950
        %v4451 = vpack.c.b16 %v3955, %v3951
        %v4452 = vpack.c.b16 %v3960, %v3956
        %v4453 = vpack.c.b16 %v3961, %v3957
        %v4454 = vpack.c.b16 %v3962, %v3958
        %v4455 = vpack.c.b16 %v3963, %v3959
        %v4456 = vpack.c.b16 %v3968, %v3964
        %v4457 = vpack.c.b16 %v3969, %v3965
        %v4458 = vpack.c.b16 %v3970, %v3966
        %v4459 = vpack.c.b16 %v3971, %v3967
        %v4460 = vpack.c.b16 %v3976, %v3972
        %v4461 = vpack.c.b16 %v3977, %v3973
        %v4462 = vpack.c.b16 %v3978, %v3974
        %v4463 = vpack.c.b16 %v3979, %v3975
        %v4464 = vpack.c.b16 %v3984, %v3980
        %v4465 = vpack.c.b16 %v3985, %v3981
        %v4466 = vpack.c.b16 %v3986, %v3982
        %v4467 = vpack.c.b16 %v3987, %v3983
        %v4468 = vpack.c.b16 %v3992, %v3988
        %v4469 = vpack.c.b16 %v3993, %v3989
        %v4470 = vpack.c.b16 %v3994, %v3990
        %v4471 = vpack.c.b16 %v3995, %v3991
        %v4472 = vpack.c.b16 %v4000, %v3996
        %v4473 = vpack.c.b16 %v4001, %v3997
        %v4474 = vpack.c.b16 %v4002, %v3998
        %v4475 = vpack.c.b16 %v4003, %v3999
        %v4476 = vpack.c.b16 %v4008, %v4004
        %v4477 = vpack.c.b16 %v4009, %v4005
        %v4478 = vpack.c.b16 %v4010, %v4006
        %v4479 = vpack.c.b16 %v4011, %v4007
        %v4480 = vpack.c.b16 %v4016, %v4012
        %v4481 = vpack.c.b16 %v4017, %v4013
        %v4482 = vpack.c.b16 %v4018, %v4014
        %v4483 = vpack.c.b16 %v4019, %v4015
        %v4484 = vpack.c.b16 %v4024, %v4020
        %v4485 = vpack.c.b16 %v4025, %v4021
        %v4486 = vpack.c.b16 %v4026, %v4022
        %v4487 = vpack.c.b16 %v4027, %v4023
        %v4488 = vpack.c.b16 %v4032, %v4028
        %v4489 = vpack.c.b16 %v4033, %v4029
        %v4490 = vpack.c.b16 %v4034, %v4030
        %v4491 = vpack.c.b16 %v4035, %v4031
        %v4492 = vpack.c.b16 %v4040, %v4036
        %v4493 = vpack.c.b16 %v4041, %v4037
        %v4494 = vpack.c.b16 %v4042, %v4038
        %v4495 = vpack.c.b16 %v4043, %v4039
        %v4496 = vpack.c.b16 %v4048, %v4044
        %v4497 = vpack.c.b16 %v4049, %v4045
        %v4498 = vpack.c.b16 %v4050, %v4046
        %v4499 = vpack.c.b16 %v4051, %v4047
        %v4500 = vpack.c.b16 %v4056, %v4052
        %v4501 = vpack.c.b16 %v4057, %v4053
        %v4502 = vpack.c.b16 %v4058, %v4054
        %v4503 = vpack.c.b16 %v4059, %v4055
        %v4504 = vpack.c.b16 %v4064, %v4060
        %v4505 = vpack.c.b16 %v4065, %v4061
        %v4506 = vpack.c.b16 %v4066, %v4062
        %v4507 = vpack.c.b16 %v4067, %v4063
        %v4508 = vpack.c.b16 %v4072, %v4068
        %v4509 = vpack.c.b16 %v4073, %v4069
        %v4510 = vpack.c.b16 %v4074, %v4070
        %v4511 = vpack.c.b16 %v4075, %v4071
        %v4512 = vpack.c.b16 %v4080, %v4076
        %v4513 = vpack.c.b16 %v4081, %v4077
        %v4514 = vpack.c.b16 %v4082, %v4078
        %v4515 = vpack.c.b16 %v4083, %v4079
        %v4516 = vpack.c.b16 %v4088, %v4084
        %v4517 = vpack.c.b16 %v4089, %v4085
        %v4518 = vpack.c.b16 %v4090, %v4086
        %v4519 = vpack.c.b16 %v4091, %v4087
        %v4520 = vpack.c.b16 %v4096, %v4092
        %v4521 = vpack.c.b16 %v4097, %v4093
        %v4522 = vpack.c.b16 %v4098, %v4094
        %v4523 = vpack.c.b16 %v4099, %v4095
        %v4524 = vpack.c.b16 %v4104, %v4100
        %v4525 = vpack.c.b16 %v4105, %v4101
        %v4526 = vpack.c.b16 %v4106, %v4102
        %v4527 = vpack.c.b16 %v4107, %v4103
        %v4528 = vpack.c.b16 %v4112, %v4108
        %v4529 = vpack.c.b16 %v4113, %v4109
        %v4530 = vpack.c.b16 %v4114, %v4110
        %v4531 = vpack.c.b16 %v4115, %v4111
        %v4532 = vpack.c.b16 %v4120, %v4116
        %v4533 = vpack.c.b16 %v4121, %v4117
        %v4534 = vpack.c.b16 %v4122, %v4118
        %v4535 = vpack.c.b16 %v4123, %v4119
        %v4536 = vpack.c.b16 %v4128, %v4124
        %v4537 = vpack.c.b16 %v4129, %v4125
        %v4538 = vpack.c.b16 %v4130, %v4126
        %v4539 = vpack.c.b16 %v4131, %v4127
        %v4540 = vpack.c.b16 %v4136, %v4132
        %v4541 = vpack.c.b16 %v4137, %v4133
        %v4542 = vpack.c.b16 %v4138, %v4134
        %v4543 = vpack.c.b16 %v4139, %v4135
        %v4544 = vpack.c.b16 %v4144, %v4140
        %v4545 = vpack.c.b16 %v4145, %v4141
        %v4546 = vpack.c.b16 %v4146, %v4142
        %v4547 = vpack.c.b16 %v4147, %v4143
        %v4548 = vpack.c.b16 %v4152, %v4148
        %v4549 = vpack.c.b16 %v4153, %v4149
        %v4550 = vpack.c.b16 %v4154, %v4150
        %v4551 = vpack.c.b16 %v4155, %v4151
        %v4552 = vpack.c.b16 %v4160, %v4156
        %v4553 = vpack.c.b16 %v4161, %v4157
        %v4554 = vpack.c.b16 %v4162, %v4158
        %v4555 = vpack.c.b16 %v4163, %v4159
        %v4556 = vpack.c.b16 %v4168, %v4164
        %v4557 = vpack.c.b16 %v4169, %v4165
        %v4558 = vpack.c.b16 %v4170, %v4166
        %v4559 = vpack.c.b16 %v4171, %v4167
        %v4560 = vpack.c.b16 %v4176, %v4172
        %v4561 = vpack.c.b16 %v4177, %v4173
        %v4562 = vpack.c.b16 %v4178, %v4174
        %v4563 = vpack.c.b16 %v4179, %v4175
        %v4564 = vpack.c.b16 %v4184, %v4180
        %v4565 = vpack.c.b16 %v4185, %v4181
        %v4566 = vpack.c.b16 %v4186, %v4182
        %v4567 = vpack.c.b16 %v4187, %v4183
        %v4568 = vpack.c.b16 %v4192, %v4188
        %v4569 = vpack.c.b16 %v4193, %v4189
        %v4570 = vpack.c.b16 %v4194, %v4190
        %v4571 = vpack.c.b16 %v4195, %v4191
        %v4572 = vpack.c.b16 %v4200, %v4196
        %v4573 = vpack.c.b16 %v4201, %v4197
        %v4574 = vpack.c.b16 %v4202, %v4198
        %v4575 = vpack.c.b16 %v4203, %v4199
        %v4576 = vpack.c.b16 %v4208, %v4204
        %v4577 = vpack.c.b16 %v4209, %v4205
        %v4578 = vpack.c.b16 %v4210, %v4206
        %v4579 = vpack.c.b16 %v4211, %v4207
        %v4580 = vpack.c.b16 %v4216, %v4212
        %v4581 = vpack.c.b16 %v4217, %v4213
        %v4582 = vpack.c.b16 %v4218, %v4214
        %v4583 = vpack.c.b16 %v4219, %v4215
        %v4584 = vpack.c.b16 %v4224, %v4220
        %v4585 = vpack.c.b16 %v4225, %v4221
        %v4586 = vpack.c.b16 %v4226, %v4222
        %v4587 = vpack.c.b16 %v4227, %v4223
        %v4588 = vpack.c.b16 %v4232, %v4228
        %v4589 = vpack.c.b16 %v4233, %v4229
        %v4590 = vpack.c.b16 %v4234, %v4230
        %v4591 = vpack.c.b16 %v4235, %v4231
        %v4592 = vpack.c.b16 %v4240, %v4236
        %v4593 = vpack.c.b16 %v4241, %v4237
        %v4594 = vpack.c.b16 %v4242, %v4238
        %v4595 = vpack.c.b16 %v4243, %v4239
        %v4596 = vpack.c.b16 %v4248, %v4244
        %v4597 = vpack.c.b16 %v4249, %v4245
        %v4598 = vpack.c.b16 %v4250, %v4246
        %v4599 = vpack.c.b16 %v4251, %v4247
        %v4600 = vpack.c.b16 %v4256, %v4252
        %v4601 = vpack.c.b16 %v4257, %v4253
        %v4602 = vpack.c.b16 %v4258, %v4254
        %v4603 = vpack.c.b16 %v4259, %v4255
        %v4604 = vpack.c.b16 %v4264, %v4260
        %v4605 = vpack.c.b16 %v4265, %v4261
        %v4606 = vpack.c.b16 %v4266, %v4262
        %v4607 = vpack.c.b16 %v4267, %v4263
        %v4608 = vpack.c.b16 %v4272, %v4268
        %v4609 = vpack.c.b16 %v4273, %v4269
        %v4610 = vpack.c.b16 %v4274, %v4270
        %v4611 = vpack.c.b16 %v4275, %v4271
        %v4612 = vpack.c.b16 %v4280, %v4276
        %v4613 = vpack.c.b16 %v4281, %v4277
        %v4614 = vpack.c.b16 %v4282, %v4278
        %v4615 = vpack.c.b16 %v4283, %v4279
        %v4616 = vpack.c.b16 %v4288, %v4284
        %v4617 = vpack.c.b16 %v4289, %v4285
        %v4618 = vpack.c.b16 %v4290, %v4286
        %v4619 = vpack.c.b16 %v4291, %v4287
        %v4620 = vpack.c.b16 %v4296, %v4292
        %v4621 = vpack.c.b16 %v4297, %v4293
        %v4622 = vpack.c.b16 %v4298, %v4294
        %v4623 = vpack.c.b16 %v4299, %v4295
        %v4624 = vpack.c.b16 %v4304, %v4300
        %v4625 = vpack.c.b16 %v4305, %v4301
        %v4626 = vpack.c.b16 %v4306, %v4302
        %v4627 = vpack.c.b16 %v4307, %v4303
        %v4628 = vpack.c.b16 %v4312, %v4308
        %v4629 = vpack.c.b16 %v4313, %v4309
        %v4630 = vpack.c.b16 %v4314, %v4310
        %v4631 = vpack.c.b16 %v4315, %v4311
        %v4632 = vpack.c.b16 %v4320, %v4316
        %v4633 = vpack.c.b16 %v4321, %v4317
        %v4634 = vpack.c.b16 %v4322, %v4318
        %v4635 = vpack.c.b16 %v4323, %v4319
        %v4636 = vpack.c.b16 %v4328, %v4324
        %v4637 = vpack.c.b16 %v4329, %v4325
        %v4638 = vpack.c.b16 %v4330, %v4326
        %v4639 = vpack.c.b16 %v4331, %v4327
        %v4640 = vpack.c.b16 %v4336, %v4332
        %v4641 = vpack.c.b16 %v4337, %v4333
        %v4642 = vpack.c.b16 %v4338, %v4334
        %v4643 = vpack.c.b16 %v4339, %v4335
        %v4644 = vpack.c.b16 %v4344, %v4340
        %v4645 = vpack.c.b16 %v4345, %v4341
        %v4646 = vpack.c.b16 %v4346, %v4342
        %v4647 = vpack.c.b16 %v4347, %v4343
        %v4648 = vpack.c.b16 %v4352, %v4348
        %v4649 = vpack.c.b16 %v4353, %v4349
        %v4650 = vpack.c.b16 %v4354, %v4350
        %v4651 = vpack.c.b16 %v4355, %v4351
        %v4652 = vpack.c.b16 %v4360, %v4356
        %v4653 = vpack.c.b16 %v4361, %v4357
        %v4654 = vpack.c.b16 %v4362, %v4358
        %v4655 = vpack.c.b16 %v4363, %v4359
        %v4656 = vpack.c.b16 %v4368, %v4364
        %v4657 = vpack.c.b16 %v4369, %v4365
        %v4658 = vpack.c.b16 %v4370, %v4366
        %v4659 = vpack.c.b16 %v4371, %v4367
        %v4660 = vpack.c.b16 %v4376, %v4372
        %v4661 = vpack.c.b16 %v4377, %v4373
        %v4662 = vpack.c.b16 %v4378, %v4374
        %v4663 = vpack.c.b16 %v4379, %v4375
        %v4664 = vpack.c.b16 %v4384, %v4380
        %v4665 = vpack.c.b16 %v4385, %v4381
        %v4666 = vpack.c.b16 %v4386, %v4382
        %v4667 = vpack.c.b16 %v4387, %v4383
        %v4668 = vpack.c.b16 %v4392, %v4388
        %v4669 = vpack.c.b16 %v4393, %v4389
        %v4670 = vpack.c.b16 %v4394, %v4390
        %v4671 = vpack.c.b16 %v4395, %v4391
        %v4672 = vpack.c.b16 %v4400, %v4396
        %v4673 = vpack.c.b16 %v4401, %v4397
        %v4674 = vpack.c.b16 %v4402, %v4398
        %v4675 = vpack.c.b16 %v4403, %v4399
        %v4676 = vpack.c.b16 %v4408, %v4404
        %v4677 = vpack.c.b16 %v4409, %v4405
        %v4678 = vpack.c.b16 %v4410, %v4406
        %v4679 = vpack.c.b16 %v4411, %v4407
        %v4680 = vpack.c.b16 %v4416, %v4412
        %v4681 = vpack.c.b16 %v4417, %v4413
        %v4682 = vpack.c.b16 %v4418, %v4414
        %v4683 = vpack.c.b16 %v4419, %v4415
        %v4684 = vpack.c.b16 %v4424, %v4420
        %v4685 = vpack.c.b16 %v4425, %v4421
        %v4686 = vpack.c.b16 %v4426, %v4422
        %v4687 = vpack.c.b16 %v4427, %v4423
        %v4688 = vpack.c.b16 %v4432, %v4428
        %v4689 = vpack.c.b16 %v4433, %v4429
        %v4690 = vpack.c.b16 %v4434, %v4430
        %v4691 = vpack.c.b16 %v4435, %v4431
        %4948 = vmatpush.bf16.msra.mxu0 %v4464
        %4949 = vmatpush.bf16.msra.mxu0 %v4460
        %4950 = vmatpush.bf16.msra.mxu0 %v4456
        %4951 = vmatpush.bf16.msra.mxu0 %v4452
        %4952 = vmatpush.bf16.msra.mxu0 %v4448
        %4953 = vmatpush.bf16.msra.mxu0 %v4444
        %4954 = vmatpush.bf16.msra.mxu0 %v4440
        %4955 = vmatpush.bf16.msra.mxu0 %v4436
        %4956 = vmatmul.bf16.gmra.mxu0 %v3380
        %v4957 = vpop.f32.mrf.mxu0
        %v4958 = vadd.f32 0.0, %v4957
        %v4959 = vpop.f32.mrf.mxu0
        %v4960 = vadd.f32 0.0, %v4959
        %4961 = vmatmul.bf16.gmra.mxu0 %v3388
        %v4962 = vpop.f32.mrf.mxu0
        %v4963 = vadd.f32 0.0, %v4962
        %v4964 = vpop.f32.mrf.mxu0
        %v4965 = vadd.f32 0.0, %v4964
        %4966 = vmatmul.bf16.gmra.mxu0 %v3396
        %v4967 = vpop.f32.mrf.mxu0
        %v4968 = vadd.f32 0.0, %v4967
        %v4969 = vpop.f32.mrf.mxu0
        %v4970 = vadd.f32 0.0, %v4969
        %4971 = vmatmul.bf16.gmra.mxu0 %v3404
        %v4972 = vpop.f32.mrf.mxu0
        %v4973 = vadd.f32 0.0, %v4972
        %v4974 = vpop.f32.mrf.mxu0
        %v4975 = vadd.f32 0.0, %v4974
        %4976 = vdwg.mxu0
        %4977 = vmatpush.bf16.msra.mxu0 %v4496
        %4978 = vmatpush.bf16.msra.mxu0 %v4492
        %4979 = vmatpush.bf16.msra.mxu0 %v4488
        %4980 = vmatpush.bf16.msra.mxu0 %v4484
        %4981 = vmatpush.bf16.msra.mxu0 %v4480
        %4982 = vmatpush.bf16.msra.mxu0 %v4476
        %4983 = vmatpush.bf16.msra.mxu0 %v4472
        %4984 = vmatpush.bf16.msra.mxu0 %v4468
        %4985 = vmatmul.bf16.gmra.mxu0 %v3381
        %v4986 = vpop.f32.mrf.mxu0
        %v4987 = vadd.f32 %v4958, %v4986
        %v4988 = vpop.f32.mrf.mxu0
        %v4989 = vadd.f32 %v4960, %v4988
        %4990 = vmatmul.bf16.gmra.mxu0 %v3389
        %v4991 = vpop.f32.mrf.mxu0
        %v4992 = vadd.f32 %v4963, %v4991
        %v4993 = vpop.f32.mrf.mxu0
        %v4994 = vadd.f32 %v4965, %v4993
        %4995 = vmatmul.bf16.gmra.mxu0 %v3397
        %v4996 = vpop.f32.mrf.mxu0
        %v4997 = vadd.f32 %v4968, %v4996
        %v4998 = vpop.f32.mrf.mxu0
        %v4999 = vadd.f32 %v4970, %v4998
        %5000 = vmatmul.bf16.gmra.mxu0 %v3405
        %v5001 = vpop.f32.mrf.mxu0
        %v5002 = vadd.f32 %v4973, %v5001
        %v5003 = vpop.f32.mrf.mxu0
        %v5004 = vadd.f32 %v4975, %v5003
        %5005 = vdwg.mxu0
        %5006 = vmatpush.bf16.msra.mxu0 %v4528
        %5007 = vmatpush.bf16.msra.mxu0 %v4524
        %5008 = vmatpush.bf16.msra.mxu0 %v4520
        %5009 = vmatpush.bf16.msra.mxu0 %v4516
        %5010 = vmatpush.bf16.msra.mxu0 %v4512
        %5011 = vmatpush.bf16.msra.mxu0 %v4508
        %5012 = vmatpush.bf16.msra.mxu0 %v4504
        %5013 = vmatpush.bf16.msra.mxu0 %v4500
        %5014 = vmatmul.bf16.gmra.mxu0 %v3382
        %v5015 = vpop.f32.mrf.mxu0
        %v5016 = vadd.f32 %v4987, %v5015
        %v5017 = vpop.f32.mrf.mxu0
        %v5018 = vadd.f32 %v4989, %v5017
        %5019 = vmatmul.bf16.gmra.mxu0 %v3390
        %v5020 = vpop.f32.mrf.mxu0
        %v5021 = vadd.f32 %v4992, %v5020
        %v5022 = vpop.f32.mrf.mxu0
        %v5023 = vadd.f32 %v4994, %v5022
        %5024 = vmatmul.bf16.gmra.mxu0 %v3398
        %v5025 = vpop.f32.mrf.mxu0
        %v5026 = vadd.f32 %v4997, %v5025
        %v5027 = vpop.f32.mrf.mxu0
        %v5028 = vadd.f32 %v4999, %v5027
        %5029 = vmatmul.bf16.gmra.mxu0 %v3406
        %v5030 = vpop.f32.mrf.mxu0
        %v5031 = vadd.f32 %v5002, %v5030
        %v5032 = vpop.f32.mrf.mxu0
        %v5033 = vadd.f32 %v5004, %v5032
        %5034 = vdwg.mxu0
        %5035 = vmatpush.bf16.msra.mxu0 %v4560
        %5036 = vmatpush.bf16.msra.mxu0 %v4556
        %5037 = vmatpush.bf16.msra.mxu0 %v4552
        %5038 = vmatpush.bf16.msra.mxu0 %v4548
        %5039 = vmatpush.bf16.msra.mxu0 %v4544
        %5040 = vmatpush.bf16.msra.mxu0 %v4540
        %5041 = vmatpush.bf16.msra.mxu0 %v4536
        %5042 = vmatpush.bf16.msra.mxu0 %v4532
        %5043 = vmatmul.bf16.gmra.mxu0 %v3383
        %v5044 = vpop.f32.mrf.mxu0
        %v5045 = vadd.f32 %v5016, %v5044
        %v5046 = vpop.f32.mrf.mxu0
        %v5047 = vadd.f32 %v5018, %v5046
        %5048 = vmatmul.bf16.gmra.mxu0 %v3391
        %v5049 = vpop.f32.mrf.mxu0
        %v5050 = vadd.f32 %v5021, %v5049
        %v5051 = vpop.f32.mrf.mxu0
        %v5052 = vadd.f32 %v5023, %v5051
        %5053 = vmatmul.bf16.gmra.mxu0 %v3399
        %v5054 = vpop.f32.mrf.mxu0
        %v5055 = vadd.f32 %v5026, %v5054
        %v5056 = vpop.f32.mrf.mxu0
        %v5057 = vadd.f32 %v5028, %v5056
        %5058 = vmatmul.bf16.gmra.mxu0 %v3407
        %v5059 = vpop.f32.mrf.mxu0
        %v5060 = vadd.f32 %v5031, %v5059
        %v5061 = vpop.f32.mrf.mxu0
        %v5062 = vadd.f32 %v5033, %v5061
        %5063 = vdwg.mxu0
        %5064 = vmatpush.bf16.msra.mxu0 %v4592
        %5065 = vmatpush.bf16.msra.mxu0 %v4588
        %5066 = vmatpush.bf16.msra.mxu0 %v4584
        %5067 = vmatpush.bf16.msra.mxu0 %v4580
        %5068 = vmatpush.bf16.msra.mxu0 %v4576
        %5069 = vmatpush.bf16.msra.mxu0 %v4572
        %5070 = vmatpush.bf16.msra.mxu0 %v4568
        %5071 = vmatpush.bf16.msra.mxu0 %v4564
        %5072 = vmatmul.bf16.gmra.mxu0 %v3384
        %v5073 = vpop.f32.mrf.mxu0
        %v5074 = vadd.f32 %v5045, %v5073
        %v5075 = vpop.f32.mrf.mxu0
        %v5076 = vadd.f32 %v5047, %v5075
        %5077 = vmatmul.bf16.gmra.mxu0 %v3392
        %v5078 = vpop.f32.mrf.mxu0
        %v5079 = vadd.f32 %v5050, %v5078
        %v5080 = vpop.f32.mrf.mxu0
        %v5081 = vadd.f32 %v5052, %v5080
        %5082 = vmatmul.bf16.gmra.mxu0 %v3400
        %v5083 = vpop.f32.mrf.mxu0
        %v5084 = vadd.f32 %v5055, %v5083
        %v5085 = vpop.f32.mrf.mxu0
        %v5086 = vadd.f32 %v5057, %v5085
        %5087 = vmatmul.bf16.gmra.mxu0 %v3408
        %v5088 = vpop.f32.mrf.mxu0
        %v5089 = vadd.f32 %v5060, %v5088
        %v5090 = vpop.f32.mrf.mxu0
        %v5091 = vadd.f32 %v5062, %v5090
        %5092 = vdwg.mxu0
        %5093 = vmatpush.bf16.msra.mxu0 %v4624
        %5094 = vmatpush.bf16.msra.mxu0 %v4620
        %5095 = vmatpush.bf16.msra.mxu0 %v4616
        %5096 = vmatpush.bf16.msra.mxu0 %v4612
        %5097 = vmatpush.bf16.msra.mxu0 %v4608
        %5098 = vmatpush.bf16.msra.mxu0 %v4604
        %5099 = vmatpush.bf16.msra.mxu0 %v4600
        %5100 = vmatpush.bf16.msra.mxu0 %v4596
        %5101 = vmatmul.bf16.gmra.mxu0 %v3385
        %v5102 = vpop.f32.mrf.mxu0
        %v5103 = vadd.f32 %v5074, %v5102
        %v5104 = vpop.f32.mrf.mxu0
        %v5105 = vadd.f32 %v5076, %v5104
        %5106 = vmatmul.bf16.gmra.mxu0 %v3393
        %v5107 = vpop.f32.mrf.mxu0
        %v5108 = vadd.f32 %v5079, %v5107
        %v5109 = vpop.f32.mrf.mxu0
        %v5110 = vadd.f32 %v5081, %v5109
        %5111 = vmatmul.bf16.gmra.mxu0 %v3401
        %v5112 = vpop.f32.mrf.mxu0
        %v5113 = vadd.f32 %v5084, %v5112
        %v5114 = vpop.f32.mrf.mxu0
        %v5115 = vadd.f32 %v5086, %v5114
        %5116 = vmatmul.bf16.gmra.mxu0 %v3409
        %v5117 = vpop.f32.mrf.mxu0
        %v5118 = vadd.f32 %v5089, %v5117
        %v5119 = vpop.f32.mrf.mxu0
        %v5120 = vadd.f32 %v5091, %v5119
        %5121 = vdwg.mxu0
        %5122 = vmatpush.bf16.msra.mxu0 %v4656
        %5123 = vmatpush.bf16.msra.mxu0 %v4652
        %5124 = vmatpush.bf16.msra.mxu0 %v4648
        %5125 = vmatpush.bf16.msra.mxu0 %v4644
        %5126 = vmatpush.bf16.msra.mxu0 %v4640
        %5127 = vmatpush.bf16.msra.mxu0 %v4636
        %5128 = vmatpush.bf16.msra.mxu0 %v4632
        %5129 = vmatpush.bf16.msra.mxu0 %v4628
        %5130 = vmatmul.bf16.gmra.mxu0 %v3386
        %v5131 = vpop.f32.mrf.mxu0
        %v5132 = vadd.f32 %v5103, %v5131
        %v5133 = vpop.f32.mrf.mxu0
        %v5134 = vadd.f32 %v5105, %v5133
        %5135 = vmatmul.bf16.gmra.mxu0 %v3394
        %v5136 = vpop.f32.mrf.mxu0
        %v5137 = vadd.f32 %v5108, %v5136
        %v5138 = vpop.f32.mrf.mxu0
        %v5139 = vadd.f32 %v5110, %v5138
        %5140 = vmatmul.bf16.gmra.mxu0 %v3402
        %v5141 = vpop.f32.mrf.mxu0
        %v5142 = vadd.f32 %v5113, %v5141
        %v5143 = vpop.f32.mrf.mxu0
        %v5144 = vadd.f32 %v5115, %v5143
        %5145 = vmatmul.bf16.gmra.mxu0 %v3410
        %v5146 = vpop.f32.mrf.mxu0
        %v5147 = vadd.f32 %v5118, %v5146
        %v5148 = vpop.f32.mrf.mxu0
        %v5149 = vadd.f32 %v5120, %v5148
        %5150 = vdwg.mxu0
        %5151 = vmatpush.bf16.msra.mxu0 %v4688
        %5152 = vmatpush.bf16.msra.mxu0 %v4684
        %5153 = vmatpush.bf16.msra.mxu0 %v4680
        %5154 = vmatpush.bf16.msra.mxu0 %v4676
        %5155 = vmatpush.bf16.msra.mxu0 %v4672
        %5156 = vmatpush.bf16.msra.mxu0 %v4668
        %5157 = vmatpush.bf16.msra.mxu0 %v4664
        %5158 = vmatpush.bf16.msra.mxu0 %v4660
        %5159 = vmatmul.bf16.gmra.mxu0 %v3387
        %v5160 = vpop.f32.mrf.mxu0
        %v5161 = vadd.f32 %v5132, %v5160
        %v5162 = vpop.f32.mrf.mxu0
        %v5163 = vadd.f32 %v5134, %v5162
        %5164 = vmatmul.bf16.gmra.mxu0 %v3395
        %v5165 = vpop.f32.mrf.mxu0
        %v5166 = vadd.f32 %v5137, %v5165
        %v5167 = vpop.f32.mrf.mxu0
        %v5168 = vadd.f32 %v5139, %v5167
        %5169 = vmatmul.bf16.gmra.mxu0 %v3403
        %v5170 = vpop.f32.mrf.mxu0
        %v5171 = vadd.f32 %v5142, %v5170
        %v5172 = vpop.f32.mrf.mxu0
        %v5173 = vadd.f32 %v5144, %v5172
        %5174 = vmatmul.bf16.gmra.mxu0 %v3411
        %v5175 = vpop.f32.mrf.mxu0
        %v5176 = vadd.f32 %v5147, %v5175
        %v5177 = vpop.f32.mrf.mxu0
        %v5178 = vadd.f32 %v5149, %v5177
        %5179 = vdwg.mxu0
        %5180 = vmatpush.bf16.msra.mxu0 %v4465
        %5181 = vmatpush.bf16.msra.mxu0 %v4461
        %5182 = vmatpush.bf16.msra.mxu0 %v4457
        %5183 = vmatpush.bf16.msra.mxu0 %v4453
        %5184 = vmatpush.bf16.msra.mxu0 %v4449
        %5185 = vmatpush.bf16.msra.mxu0 %v4445
        %5186 = vmatpush.bf16.msra.mxu0 %v4441
        %5187 = vmatpush.bf16.msra.mxu0 %v4437
        %5188 = vmatmul.bf16.gmra.mxu0 %v3380
        %v5189 = vpop.f32.mrf.mxu0
        %v5190 = vadd.f32 0.0, %v5189
        %v5191 = vpop.f32.mrf.mxu0
        %v5192 = vadd.f32 0.0, %v5191
        %5193 = vmatmul.bf16.gmra.mxu0 %v3388
        %v5194 = vpop.f32.mrf.mxu0
        %v5195 = vadd.f32 0.0, %v5194
        %v5196 = vpop.f32.mrf.mxu0
        %v5197 = vadd.f32 0.0, %v5196
        %5198 = vmatmul.bf16.gmra.mxu0 %v3396
        %v5199 = vpop.f32.mrf.mxu0
        %v5200 = vadd.f32 0.0, %v5199
        %v5201 = vpop.f32.mrf.mxu0
        %v5202 = vadd.f32 0.0, %v5201
        %5203 = vmatmul.bf16.gmra.mxu0 %v3404
        %v5204 = vpop.f32.mrf.mxu0
        %v5205 = vadd.f32 0.0, %v5204
        %v5206 = vpop.f32.mrf.mxu0
        %v5207 = vadd.f32 0.0, %v5206
        %5208 = vdwg.mxu0
        %5209 = vmatpush.bf16.msra.mxu0 %v4497
        %5210 = vmatpush.bf16.msra.mxu0 %v4493
        %5211 = vmatpush.bf16.msra.mxu0 %v4489
        %5212 = vmatpush.bf16.msra.mxu0 %v4485
        %5213 = vmatpush.bf16.msra.mxu0 %v4481
        %5214 = vmatpush.bf16.msra.mxu0 %v4477
        %5215 = vmatpush.bf16.msra.mxu0 %v4473
        %5216 = vmatpush.bf16.msra.mxu0 %v4469
        %5217 = vmatmul.bf16.gmra.mxu0 %v3381
        %v5218 = vpop.f32.mrf.mxu0
        %v5219 = vadd.f32 %v5190, %v5218
        %v5220 = vpop.f32.mrf.mxu0
        %v5221 = vadd.f32 %v5192, %v5220
        %5222 = vmatmul.bf16.gmra.mxu0 %v3389
        %v5223 = vpop.f32.mrf.mxu0
        %v5224 = vadd.f32 %v5195, %v5223
        %v5225 = vpop.f32.mrf.mxu0
        %v5226 = vadd.f32 %v5197, %v5225
        %5227 = vmatmul.bf16.gmra.mxu0 %v3397
        %v5228 = vpop.f32.mrf.mxu0
        %v5229 = vadd.f32 %v5200, %v5228
        %v5230 = vpop.f32.mrf.mxu0
        %v5231 = vadd.f32 %v5202, %v5230
        %5232 = vmatmul.bf16.gmra.mxu0 %v3405
        %v5233 = vpop.f32.mrf.mxu0
        %v5234 = vadd.f32 %v5205, %v5233
        %v5235 = vpop.f32.mrf.mxu0
        %v5236 = vadd.f32 %v5207, %v5235
        %5237 = vdwg.mxu0
        %5238 = vmatpush.bf16.msra.mxu0 %v4529
        %5239 = vmatpush.bf16.msra.mxu0 %v4525
        %5240 = vmatpush.bf16.msra.mxu0 %v4521
        %5241 = vmatpush.bf16.msra.mxu0 %v4517
        %5242 = vmatpush.bf16.msra.mxu0 %v4513
        %5243 = vmatpush.bf16.msra.mxu0 %v4509
        %5244 = vmatpush.bf16.msra.mxu0 %v4505
        %5245 = vmatpush.bf16.msra.mxu0 %v4501
        %5246 = vmatmul.bf16.gmra.mxu0 %v3382
        %v5247 = vpop.f32.mrf.mxu0
        %v5248 = vadd.f32 %v5219, %v5247
        %v5249 = vpop.f32.mrf.mxu0
        %v5250 = vadd.f32 %v5221, %v5249
        %5251 = vmatmul.bf16.gmra.mxu0 %v3390
        %v5252 = vpop.f32.mrf.mxu0
        %v5253 = vadd.f32 %v5224, %v5252
        %v5254 = vpop.f32.mrf.mxu0
        %v5255 = vadd.f32 %v5226, %v5254
        %5256 = vmatmul.bf16.gmra.mxu0 %v3398
        %v5257 = vpop.f32.mrf.mxu0
        %v5258 = vadd.f32 %v5229, %v5257
        %v5259 = vpop.f32.mrf.mxu0
        %v5260 = vadd.f32 %v5231, %v5259
        %5261 = vmatmul.bf16.gmra.mxu0 %v3406
        %v5262 = vpop.f32.mrf.mxu0
        %v5263 = vadd.f32 %v5234, %v5262
        %v5264 = vpop.f32.mrf.mxu0
        %v5265 = vadd.f32 %v5236, %v5264
        %5266 = vdwg.mxu0
        %5267 = vmatpush.bf16.msra.mxu0 %v4561
        %5268 = vmatpush.bf16.msra.mxu0 %v4557
        %5269 = vmatpush.bf16.msra.mxu0 %v4553
        %5270 = vmatpush.bf16.msra.mxu0 %v4549
        %5271 = vmatpush.bf16.msra.mxu0 %v4545
        %5272 = vmatpush.bf16.msra.mxu0 %v4541
        %5273 = vmatpush.bf16.msra.mxu0 %v4537
        %5274 = vmatpush.bf16.msra.mxu0 %v4533
        %5275 = vmatmul.bf16.gmra.mxu0 %v3383
        %v5276 = vpop.f32.mrf.mxu0
        %v5277 = vadd.f32 %v5248, %v5276
        %v5278 = vpop.f32.mrf.mxu0
        %v5279 = vadd.f32 %v5250, %v5278
        %5280 = vmatmul.bf16.gmra.mxu0 %v3391
        %v5281 = vpop.f32.mrf.mxu0
        %v5282 = vadd.f32 %v5253, %v5281
        %v5283 = vpop.f32.mrf.mxu0
        %v5284 = vadd.f32 %v5255, %v5283
        %5285 = vmatmul.bf16.gmra.mxu0 %v3399
        %v5286 = vpop.f32.mrf.mxu0
        %v5287 = vadd.f32 %v5258, %v5286
        %v5288 = vpop.f32.mrf.mxu0
        %v5289 = vadd.f32 %v5260, %v5288
        %5290 = vmatmul.bf16.gmra.mxu0 %v3407
        %v5291 = vpop.f32.mrf.mxu0
        %v5292 = vadd.f32 %v5263, %v5291
        %v5293 = vpop.f32.mrf.mxu0
        %v5294 = vadd.f32 %v5265, %v5293
        %5295 = vdwg.mxu0
        %5296 = vmatpush.bf16.msra.mxu0 %v4593
        %5297 = vmatpush.bf16.msra.mxu0 %v4589
        %5298 = vmatpush.bf16.msra.mxu0 %v4585
        %5299 = vmatpush.bf16.msra.mxu0 %v4581
        %5300 = vmatpush.bf16.msra.mxu0 %v4577
        %5301 = vmatpush.bf16.msra.mxu0 %v4573
        %5302 = vmatpush.bf16.msra.mxu0 %v4569
        %5303 = vmatpush.bf16.msra.mxu0 %v4565
        %5304 = vmatmul.bf16.gmra.mxu0 %v3384
        %v5305 = vpop.f32.mrf.mxu0
        %v5306 = vadd.f32 %v5277, %v5305
        %v5307 = vpop.f32.mrf.mxu0
        %v5308 = vadd.f32 %v5279, %v5307
        %5309 = vmatmul.bf16.gmra.mxu0 %v3392
        %v5310 = vpop.f32.mrf.mxu0
        %v5311 = vadd.f32 %v5282, %v5310
        %v5312 = vpop.f32.mrf.mxu0
        %v5313 = vadd.f32 %v5284, %v5312
        %5314 = vmatmul.bf16.gmra.mxu0 %v3400
        %v5315 = vpop.f32.mrf.mxu0
        %v5316 = vadd.f32 %v5287, %v5315
        %v5317 = vpop.f32.mrf.mxu0
        %v5318 = vadd.f32 %v5289, %v5317
        %5319 = vmatmul.bf16.gmra.mxu0 %v3408
        %v5320 = vpop.f32.mrf.mxu0
        %v5321 = vadd.f32 %v5292, %v5320
        %v5322 = vpop.f32.mrf.mxu0
        %v5323 = vadd.f32 %v5294, %v5322
        %5324 = vdwg.mxu0
        %5325 = vmatpush.bf16.msra.mxu0 %v4625
        %5326 = vmatpush.bf16.msra.mxu0 %v4621
        %5327 = vmatpush.bf16.msra.mxu0 %v4617
        %5328 = vmatpush.bf16.msra.mxu0 %v4613
        %5329 = vmatpush.bf16.msra.mxu0 %v4609
        %5330 = vmatpush.bf16.msra.mxu0 %v4605
        %5331 = vmatpush.bf16.msra.mxu0 %v4601
        %5332 = vmatpush.bf16.msra.mxu0 %v4597
        %5333 = vmatmul.bf16.gmra.mxu0 %v3385
        %v5334 = vpop.f32.mrf.mxu0
        %v5335 = vadd.f32 %v5306, %v5334
        %v5336 = vpop.f32.mrf.mxu0
        %v5337 = vadd.f32 %v5308, %v5336
        %5338 = vmatmul.bf16.gmra.mxu0 %v3393
        %v5339 = vpop.f32.mrf.mxu0
        %v5340 = vadd.f32 %v5311, %v5339
        %v5341 = vpop.f32.mrf.mxu0
        %v5342 = vadd.f32 %v5313, %v5341
        %5343 = vmatmul.bf16.gmra.mxu0 %v3401
        %v5344 = vpop.f32.mrf.mxu0
        %v5345 = vadd.f32 %v5316, %v5344
        %v5346 = vpop.f32.mrf.mxu0
        %v5347 = vadd.f32 %v5318, %v5346
        %5348 = vmatmul.bf16.gmra.mxu0 %v3409
        %v5349 = vpop.f32.mrf.mxu0
        %v5350 = vadd.f32 %v5321, %v5349
        %v5351 = vpop.f32.mrf.mxu0
        %v5352 = vadd.f32 %v5323, %v5351
        %5353 = vdwg.mxu0
        %5354 = vmatpush.bf16.msra.mxu0 %v4657
        %5355 = vmatpush.bf16.msra.mxu0 %v4653
        %5356 = vmatpush.bf16.msra.mxu0 %v4649
        %5357 = vmatpush.bf16.msra.mxu0 %v4645
        %5358 = vmatpush.bf16.msra.mxu0 %v4641
        %5359 = vmatpush.bf16.msra.mxu0 %v4637
        %5360 = vmatpush.bf16.msra.mxu0 %v4633
        %5361 = vmatpush.bf16.msra.mxu0 %v4629
        %5362 = vmatmul.bf16.gmra.mxu0 %v3386
        %v5363 = vpop.f32.mrf.mxu0
        %v5364 = vadd.f32 %v5335, %v5363
        %v5365 = vpop.f32.mrf.mxu0
        %v5366 = vadd.f32 %v5337, %v5365
        %5367 = vmatmul.bf16.gmra.mxu0 %v3394
        %v5368 = vpop.f32.mrf.mxu0
        %v5369 = vadd.f32 %v5340, %v5368
        %v5370 = vpop.f32.mrf.mxu0
        %v5371 = vadd.f32 %v5342, %v5370
        %5372 = vmatmul.bf16.gmra.mxu0 %v3402
        %v5373 = vpop.f32.mrf.mxu0
        %v5374 = vadd.f32 %v5345, %v5373
        %v5375 = vpop.f32.mrf.mxu0
        %v5376 = vadd.f32 %v5347, %v5375
        %5377 = vmatmul.bf16.gmra.mxu0 %v3410
        %v5378 = vpop.f32.mrf.mxu0
        %v5379 = vadd.f32 %v5350, %v5378
        %v5380 = vpop.f32.mrf.mxu0
        %v5381 = vadd.f32 %v5352, %v5380
        %5382 = vdwg.mxu0
        %5383 = vmatpush.bf16.msra.mxu0 %v4689
        %5384 = vmatpush.bf16.msra.mxu0 %v4685
        %5385 = vmatpush.bf16.msra.mxu0 %v4681
        %5386 = vmatpush.bf16.msra.mxu0 %v4677
        %5387 = vmatpush.bf16.msra.mxu0 %v4673
        %5388 = vmatpush.bf16.msra.mxu0 %v4669
        %5389 = vmatpush.bf16.msra.mxu0 %v4665
        %5390 = vmatpush.bf16.msra.mxu0 %v4661
        %5391 = vmatmul.bf16.gmra.mxu0 %v3387
        %v5392 = vpop.f32.mrf.mxu0
        %v5393 = vadd.f32 %v5364, %v5392
        %v5394 = vpop.f32.mrf.mxu0
        %v5395 = vadd.f32 %v5366, %v5394
        %5396 = vmatmul.bf16.gmra.mxu0 %v3395
        %v5397 = vpop.f32.mrf.mxu0
        %v5398 = vadd.f32 %v5369, %v5397
        %v5399 = vpop.f32.mrf.mxu0
        %v5400 = vadd.f32 %v5371, %v5399
        %5401 = vmatmul.bf16.gmra.mxu0 %v3403
        %v5402 = vpop.f32.mrf.mxu0
        %v5403 = vadd.f32 %v5374, %v5402
        %v5404 = vpop.f32.mrf.mxu0
        %v5405 = vadd.f32 %v5376, %v5404
        %5406 = vmatmul.bf16.gmra.mxu0 %v3411
        %v5407 = vpop.f32.mrf.mxu0
        %v5408 = vadd.f32 %v5379, %v5407
        %v5409 = vpop.f32.mrf.mxu0
        %v5410 = vadd.f32 %v5381, %v5409
        %5411 = vdwg.mxu0
        %5412 = vmatpush.bf16.msra.mxu0 %v4466
        %5413 = vmatpush.bf16.msra.mxu0 %v4462
        %5414 = vmatpush.bf16.msra.mxu0 %v4458
        %5415 = vmatpush.bf16.msra.mxu0 %v4454
        %5416 = vmatpush.bf16.msra.mxu0 %v4450
        %5417 = vmatpush.bf16.msra.mxu0 %v4446
        %5418 = vmatpush.bf16.msra.mxu0 %v4442
        %5419 = vmatpush.bf16.msra.mxu0 %v4438
        %5420 = vmatmul.bf16.gmra.mxu0 %v3380
        %v5421 = vpop.f32.mrf.mxu0
        %v5422 = vadd.f32 0.0, %v5421
        %v5423 = vpop.f32.mrf.mxu0
        %v5424 = vadd.f32 0.0, %v5423
        %5425 = vmatmul.bf16.gmra.mxu0 %v3388
        %v5426 = vpop.f32.mrf.mxu0
        %v5427 = vadd.f32 0.0, %v5426
        %v5428 = vpop.f32.mrf.mxu0
        %v5429 = vadd.f32 0.0, %v5428
        %5430 = vmatmul.bf16.gmra.mxu0 %v3396
        %v5431 = vpop.f32.mrf.mxu0
        %v5432 = vadd.f32 0.0, %v5431
        %v5433 = vpop.f32.mrf.mxu0
        %v5434 = vadd.f32 0.0, %v5433
        %5435 = vmatmul.bf16.gmra.mxu0 %v3404
        %v5436 = vpop.f32.mrf.mxu0
        %v5437 = vadd.f32 0.0, %v5436
        %v5438 = vpop.f32.mrf.mxu0
        %v5439 = vadd.f32 0.0, %v5438
        %5440 = vdwg.mxu0
        %5441 = vmatpush.bf16.msra.mxu0 %v4498
        %5442 = vmatpush.bf16.msra.mxu0 %v4494
        %5443 = vmatpush.bf16.msra.mxu0 %v4490
        %5444 = vmatpush.bf16.msra.mxu0 %v4486
        %5445 = vmatpush.bf16.msra.mxu0 %v4482
        %5446 = vmatpush.bf16.msra.mxu0 %v4478
        %5447 = vmatpush.bf16.msra.mxu0 %v4474
        %5448 = vmatpush.bf16.msra.mxu0 %v4470
        %5449 = vmatmul.bf16.gmra.mxu0 %v3381
        %v5450 = vpop.f32.mrf.mxu0
        %v5451 = vadd.f32 %v5422, %v5450
        %v5452 = vpop.f32.mrf.mxu0
        %v5453 = vadd.f32 %v5424, %v5452
        %5454 = vmatmul.bf16.gmra.mxu0 %v3389
        %v5455 = vpop.f32.mrf.mxu0
        %v5456 = vadd.f32 %v5427, %v5455
        %v5457 = vpop.f32.mrf.mxu0
        %v5458 = vadd.f32 %v5429, %v5457
        %5459 = vmatmul.bf16.gmra.mxu0 %v3397
        %v5460 = vpop.f32.mrf.mxu0
        %v5461 = vadd.f32 %v5432, %v5460
        %v5462 = vpop.f32.mrf.mxu0
        %v5463 = vadd.f32 %v5434, %v5462
        %5464 = vmatmul.bf16.gmra.mxu0 %v3405
        %v5465 = vpop.f32.mrf.mxu0
        %v5466 = vadd.f32 %v5437, %v5465
        %v5467 = vpop.f32.mrf.mxu0
        %v5468 = vadd.f32 %v5439, %v5467
        %5469 = vdwg.mxu0
        %5470 = vmatpush.bf16.msra.mxu0 %v4530
        %5471 = vmatpush.bf16.msra.mxu0 %v4526
        %5472 = vmatpush.bf16.msra.mxu0 %v4522
        %5473 = vmatpush.bf16.msra.mxu0 %v4518
        %5474 = vmatpush.bf16.msra.mxu0 %v4514
        %5475 = vmatpush.bf16.msra.mxu0 %v4510
        %5476 = vmatpush.bf16.msra.mxu0 %v4506
        %5477 = vmatpush.bf16.msra.mxu0 %v4502
        %5478 = vmatmul.bf16.gmra.mxu0 %v3382
        %v5479 = vpop.f32.mrf.mxu0
        %v5480 = vadd.f32 %v5451, %v5479
        %v5481 = vpop.f32.mrf.mxu0
        %v5482 = vadd.f32 %v5453, %v5481
        %5483 = vmatmul.bf16.gmra.mxu0 %v3390
        %v5484 = vpop.f32.mrf.mxu0
        %v5485 = vadd.f32 %v5456, %v5484
        %v5486 = vpop.f32.mrf.mxu0
        %v5487 = vadd.f32 %v5458, %v5486
        %5488 = vmatmul.bf16.gmra.mxu0 %v3398
        %v5489 = vpop.f32.mrf.mxu0
        %v5490 = vadd.f32 %v5461, %v5489
        %v5491 = vpop.f32.mrf.mxu0
        %v5492 = vadd.f32 %v5463, %v5491
        %5493 = vmatmul.bf16.gmra.mxu0 %v3406
        %v5494 = vpop.f32.mrf.mxu0
        %v5495 = vadd.f32 %v5466, %v5494
        %v5496 = vpop.f32.mrf.mxu0
        %v5497 = vadd.f32 %v5468, %v5496
        %5498 = vdwg.mxu0
        %5499 = vmatpush.bf16.msra.mxu0 %v4562
        %5500 = vmatpush.bf16.msra.mxu0 %v4558
        %5501 = vmatpush.bf16.msra.mxu0 %v4554
        %5502 = vmatpush.bf16.msra.mxu0 %v4550
        %5503 = vmatpush.bf16.msra.mxu0 %v4546
        %5504 = vmatpush.bf16.msra.mxu0 %v4542
        %5505 = vmatpush.bf16.msra.mxu0 %v4538
        %5506 = vmatpush.bf16.msra.mxu0 %v4534
        %5507 = vmatmul.bf16.gmra.mxu0 %v3383
        %v5508 = vpop.f32.mrf.mxu0
        %v5509 = vadd.f32 %v5480, %v5508
        %v5510 = vpop.f32.mrf.mxu0
        %v5511 = vadd.f32 %v5482, %v5510
        %5512 = vmatmul.bf16.gmra.mxu0 %v3391
        %v5513 = vpop.f32.mrf.mxu0
        %v5514 = vadd.f32 %v5485, %v5513
        %v5515 = vpop.f32.mrf.mxu0
        %v5516 = vadd.f32 %v5487, %v5515
        %5517 = vmatmul.bf16.gmra.mxu0 %v3399
        %v5518 = vpop.f32.mrf.mxu0
        %v5519 = vadd.f32 %v5490, %v5518
        %v5520 = vpop.f32.mrf.mxu0
        %v5521 = vadd.f32 %v5492, %v5520
        %5522 = vmatmul.bf16.gmra.mxu0 %v3407
        %v5523 = vpop.f32.mrf.mxu0
        %v5524 = vadd.f32 %v5495, %v5523
        %v5525 = vpop.f32.mrf.mxu0
        %v5526 = vadd.f32 %v5497, %v5525
        %5527 = vdwg.mxu0
        %5528 = vmatpush.bf16.msra.mxu0 %v4594
        %5529 = vmatpush.bf16.msra.mxu0 %v4590
        %5530 = vmatpush.bf16.msra.mxu0 %v4586
        %5531 = vmatpush.bf16.msra.mxu0 %v4582
        %5532 = vmatpush.bf16.msra.mxu0 %v4578
        %5533 = vmatpush.bf16.msra.mxu0 %v4574
        %5534 = vmatpush.bf16.msra.mxu0 %v4570
        %5535 = vmatpush.bf16.msra.mxu0 %v4566
        %5536 = vmatmul.bf16.gmra.mxu0 %v3384
        %v5537 = vpop.f32.mrf.mxu0
        %v5538 = vadd.f32 %v5509, %v5537
        %v5539 = vpop.f32.mrf.mxu0
        %v5540 = vadd.f32 %v5511, %v5539
        %5541 = vmatmul.bf16.gmra.mxu0 %v3392
        %v5542 = vpop.f32.mrf.mxu0
        %v5543 = vadd.f32 %v5514, %v5542
        %v5544 = vpop.f32.mrf.mxu0
        %v5545 = vadd.f32 %v5516, %v5544
        %5546 = vmatmul.bf16.gmra.mxu0 %v3400
        %v5547 = vpop.f32.mrf.mxu0
        %v5548 = vadd.f32 %v5519, %v5547
        %v5549 = vpop.f32.mrf.mxu0
        %v5550 = vadd.f32 %v5521, %v5549
        %5551 = vmatmul.bf16.gmra.mxu0 %v3408
        %v5552 = vpop.f32.mrf.mxu0
        %v5553 = vadd.f32 %v5524, %v5552
        %v5554 = vpop.f32.mrf.mxu0
        %v5555 = vadd.f32 %v5526, %v5554
        %5556 = vdwg.mxu0
        %5557 = vmatpush.bf16.msra.mxu0 %v4626
        %5558 = vmatpush.bf16.msra.mxu0 %v4622
        %5559 = vmatpush.bf16.msra.mxu0 %v4618
        %5560 = vmatpush.bf16.msra.mxu0 %v4614
        %5561 = vmatpush.bf16.msra.mxu0 %v4610
        %5562 = vmatpush.bf16.msra.mxu0 %v4606
        %5563 = vmatpush.bf16.msra.mxu0 %v4602
        %5564 = vmatpush.bf16.msra.mxu0 %v4598
        %5565 = vmatmul.bf16.gmra.mxu0 %v3385
        %v5566 = vpop.f32.mrf.mxu0
        %v5567 = vadd.f32 %v5538, %v5566
        %v5568 = vpop.f32.mrf.mxu0
        %v5569 = vadd.f32 %v5540, %v5568
        %5570 = vmatmul.bf16.gmra.mxu0 %v3393
        %v5571 = vpop.f32.mrf.mxu0
        %v5572 = vadd.f32 %v5543, %v5571
        %v5573 = vpop.f32.mrf.mxu0
        %v5574 = vadd.f32 %v5545, %v5573
        %5575 = vmatmul.bf16.gmra.mxu0 %v3401
        %v5576 = vpop.f32.mrf.mxu0
        %v5577 = vadd.f32 %v5548, %v5576
        %v5578 = vpop.f32.mrf.mxu0
        %v5579 = vadd.f32 %v5550, %v5578
        %5580 = vmatmul.bf16.gmra.mxu0 %v3409
        %v5581 = vpop.f32.mrf.mxu0
        %v5582 = vadd.f32 %v5553, %v5581
        %v5583 = vpop.f32.mrf.mxu0
        %v5584 = vadd.f32 %v5555, %v5583
        %5585 = vdwg.mxu0
        %5586 = vmatpush.bf16.msra.mxu0 %v4658
        %5587 = vmatpush.bf16.msra.mxu0 %v4654
        %5588 = vmatpush.bf16.msra.mxu0 %v4650
        %5589 = vmatpush.bf16.msra.mxu0 %v4646
        %5590 = vmatpush.bf16.msra.mxu0 %v4642
        %5591 = vmatpush.bf16.msra.mxu0 %v4638
        %5592 = vmatpush.bf16.msra.mxu0 %v4634
        %5593 = vmatpush.bf16.msra.mxu0 %v4630
        %5594 = vmatmul.bf16.gmra.mxu0 %v3386
        %v5595 = vpop.f32.mrf.mxu0
        %v5596 = vadd.f32 %v5567, %v5595
        %v5597 = vpop.f32.mrf.mxu0
        %v5598 = vadd.f32 %v5569, %v5597
        %5599 = vmatmul.bf16.gmra.mxu0 %v3394
        %v5600 = vpop.f32.mrf.mxu0
        %v5601 = vadd.f32 %v5572, %v5600
        %v5602 = vpop.f32.mrf.mxu0
        %v5603 = vadd.f32 %v5574, %v5602
        %5604 = vmatmul.bf16.gmra.mxu0 %v3402
        %v5605 = vpop.f32.mrf.mxu0
        %v5606 = vadd.f32 %v5577, %v5605
        %v5607 = vpop.f32.mrf.mxu0
        %v5608 = vadd.f32 %v5579, %v5607
        %5609 = vmatmul.bf16.gmra.mxu0 %v3410
        %v5610 = vpop.f32.mrf.mxu0
        %v5611 = vadd.f32 %v5582, %v5610
        %v5612 = vpop.f32.mrf.mxu0
        %v5613 = vadd.f32 %v5584, %v5612
        %5614 = vdwg.mxu0
        %5615 = vmatpush.bf16.msra.mxu0 %v4690
        %5616 = vmatpush.bf16.msra.mxu0 %v4686
        %5617 = vmatpush.bf16.msra.mxu0 %v4682
        %5618 = vmatpush.bf16.msra.mxu0 %v4678
        %5619 = vmatpush.bf16.msra.mxu0 %v4674
        %5620 = vmatpush.bf16.msra.mxu0 %v4670
        %5621 = vmatpush.bf16.msra.mxu0 %v4666
        %5622 = vmatpush.bf16.msra.mxu0 %v4662
        %5623 = vmatmul.bf16.gmra.mxu0 %v3387
        %v5624 = vpop.f32.mrf.mxu0
        %v5625 = vadd.f32 %v5596, %v5624
        %v5626 = vpop.f32.mrf.mxu0
        %v5627 = vadd.f32 %v5598, %v5626
        %5628 = vmatmul.bf16.gmra.mxu0 %v3395
        %v5629 = vpop.f32.mrf.mxu0
        %v5630 = vadd.f32 %v5601, %v5629
        %v5631 = vpop.f32.mrf.mxu0
        %v5632 = vadd.f32 %v5603, %v5631
        %5633 = vmatmul.bf16.gmra.mxu0 %v3403
        %v5634 = vpop.f32.mrf.mxu0
        %v5635 = vadd.f32 %v5606, %v5634
        %v5636 = vpop.f32.mrf.mxu0
        %v5637 = vadd.f32 %v5608, %v5636
        %5638 = vmatmul.bf16.gmra.mxu0 %v3411
        %v5639 = vpop.f32.mrf.mxu0
        %v5640 = vadd.f32 %v5611, %v5639
        %v5641 = vpop.f32.mrf.mxu0
        %v5642 = vadd.f32 %v5613, %v5641
        %5643 = vdwg.mxu0
        %5644 = vmatpush.bf16.msra.mxu0 %v4467
        %5645 = vmatpush.bf16.msra.mxu0 %v4463
        %5646 = vmatpush.bf16.msra.mxu0 %v4459
        %5647 = vmatpush.bf16.msra.mxu0 %v4455
        %5648 = vmatpush.bf16.msra.mxu0 %v4451
        %5649 = vmatpush.bf16.msra.mxu0 %v4447
        %5650 = vmatpush.bf16.msra.mxu0 %v4443
        %5651 = vmatpush.bf16.msra.mxu0 %v4439
        %5652 = vmatmul.bf16.gmra.mxu0 %v3380
        %v5653 = vpop.f32.mrf.mxu0
        %v5654 = vadd.f32 0.0, %v5653
        %v5655 = vpop.f32.mrf.mxu0
        %v5656 = vadd.f32 0.0, %v5655
        %5657 = vmatmul.bf16.gmra.mxu0 %v3388
        %v5658 = vpop.f32.mrf.mxu0
        %v5659 = vadd.f32 0.0, %v5658
        %v5660 = vpop.f32.mrf.mxu0
        %v5661 = vadd.f32 0.0, %v5660
        %5662 = vmatmul.bf16.gmra.mxu0 %v3396
        %v5663 = vpop.f32.mrf.mxu0
        %v5664 = vadd.f32 0.0, %v5663
        %v5665 = vpop.f32.mrf.mxu0
        %v5666 = vadd.f32 0.0, %v5665
        %5667 = vmatmul.bf16.gmra.mxu0 %v3404
        %v5668 = vpop.f32.mrf.mxu0
        %v5669 = vadd.f32 0.0, %v5668
        %v5670 = vpop.f32.mrf.mxu0
        %v5671 = vadd.f32 0.0, %v5670
        %5672 = vdwg.mxu0
        %5673 = vmatpush.bf16.msra.mxu0 %v4499
        %5674 = vmatpush.bf16.msra.mxu0 %v4495
        %5675 = vmatpush.bf16.msra.mxu0 %v4491
        %5676 = vmatpush.bf16.msra.mxu0 %v4487
        %5677 = vmatpush.bf16.msra.mxu0 %v4483
        %5678 = vmatpush.bf16.msra.mxu0 %v4479
        %5679 = vmatpush.bf16.msra.mxu0 %v4475
        %5680 = vmatpush.bf16.msra.mxu0 %v4471
        %5681 = vmatmul.bf16.gmra.mxu0 %v3381
        %v5682 = vpop.f32.mrf.mxu0
        %v5683 = vadd.f32 %v5654, %v5682
        %v5684 = vpop.f32.mrf.mxu0
        %v5685 = vadd.f32 %v5656, %v5684
        %5686 = vmatmul.bf16.gmra.mxu0 %v3389
        %v5687 = vpop.f32.mrf.mxu0
        %v5688 = vadd.f32 %v5659, %v5687
        %v5689 = vpop.f32.mrf.mxu0
        %v5690 = vadd.f32 %v5661, %v5689
        %5691 = vmatmul.bf16.gmra.mxu0 %v3397
        %v5692 = vpop.f32.mrf.mxu0
        %v5693 = vadd.f32 %v5664, %v5692
        %v5694 = vpop.f32.mrf.mxu0
        %v5695 = vadd.f32 %v5666, %v5694
        %5696 = vmatmul.bf16.gmra.mxu0 %v3405
        %v5697 = vpop.f32.mrf.mxu0
        %v5698 = vadd.f32 %v5669, %v5697
        %v5699 = vpop.f32.mrf.mxu0
        %v5700 = vadd.f32 %v5671, %v5699
        %5701 = vdwg.mxu0
        %5702 = vmatpush.bf16.msra.mxu0 %v4531
        %5703 = vmatpush.bf16.msra.mxu0 %v4527
        %5704 = vmatpush.bf16.msra.mxu0 %v4523
        %5705 = vmatpush.bf16.msra.mxu0 %v4519
        %5706 = vmatpush.bf16.msra.mxu0 %v4515
        %5707 = vmatpush.bf16.msra.mxu0 %v4511
        %5708 = vmatpush.bf16.msra.mxu0 %v4507
        %5709 = vmatpush.bf16.msra.mxu0 %v4503
        %5710 = vmatmul.bf16.gmra.mxu0 %v3382
        %v5711 = vpop.f32.mrf.mxu0
        %v5712 = vadd.f32 %v5683, %v5711
        %v5713 = vpop.f32.mrf.mxu0
        %v5714 = vadd.f32 %v5685, %v5713
        %5715 = vmatmul.bf16.gmra.mxu0 %v3390
        %v5716 = vpop.f32.mrf.mxu0
        %v5717 = vadd.f32 %v5688, %v5716
        %v5718 = vpop.f32.mrf.mxu0
        %v5719 = vadd.f32 %v5690, %v5718
        %5720 = vmatmul.bf16.gmra.mxu0 %v3398
        %v5721 = vpop.f32.mrf.mxu0
        %v5722 = vadd.f32 %v5693, %v5721
        %v5723 = vpop.f32.mrf.mxu0
        %v5724 = vadd.f32 %v5695, %v5723
        %5725 = vmatmul.bf16.gmra.mxu0 %v3406
        %v5726 = vpop.f32.mrf.mxu0
        %v5727 = vadd.f32 %v5698, %v5726
        %v5728 = vpop.f32.mrf.mxu0
        %v5729 = vadd.f32 %v5700, %v5728
        %5730 = vdwg.mxu0
        %5731 = vmatpush.bf16.msra.mxu0 %v4563
        %5732 = vmatpush.bf16.msra.mxu0 %v4559
        %5733 = vmatpush.bf16.msra.mxu0 %v4555
        %5734 = vmatpush.bf16.msra.mxu0 %v4551
        %5735 = vmatpush.bf16.msra.mxu0 %v4547
        %5736 = vmatpush.bf16.msra.mxu0 %v4543
        %5737 = vmatpush.bf16.msra.mxu0 %v4539
        %5738 = vmatpush.bf16.msra.mxu0 %v4535
        %5739 = vmatmul.bf16.gmra.mxu0 %v3383
        %v5740 = vpop.f32.mrf.mxu0
        %v5741 = vadd.f32 %v5712, %v5740
        %v5742 = vpop.f32.mrf.mxu0
        %v5743 = vadd.f32 %v5714, %v5742
        %5744 = vmatmul.bf16.gmra.mxu0 %v3391
        %v5745 = vpop.f32.mrf.mxu0
        %v5746 = vadd.f32 %v5717, %v5745
        %v5747 = vpop.f32.mrf.mxu0
        %v5748 = vadd.f32 %v5719, %v5747
        %5749 = vmatmul.bf16.gmra.mxu0 %v3399
        %v5750 = vpop.f32.mrf.mxu0
        %v5751 = vadd.f32 %v5722, %v5750
        %v5752 = vpop.f32.mrf.mxu0
        %v5753 = vadd.f32 %v5724, %v5752
        %5754 = vmatmul.bf16.gmra.mxu0 %v3407
        %v5755 = vpop.f32.mrf.mxu0
        %v5756 = vadd.f32 %v5727, %v5755
        %v5757 = vpop.f32.mrf.mxu0
        %v5758 = vadd.f32 %v5729, %v5757
        %5759 = vdwg.mxu0
        %5760 = vmatpush.bf16.msra.mxu0 %v4595
        %5761 = vmatpush.bf16.msra.mxu0 %v4591
        %5762 = vmatpush.bf16.msra.mxu0 %v4587
        %5763 = vmatpush.bf16.msra.mxu0 %v4583
        %5764 = vmatpush.bf16.msra.mxu0 %v4579
        %5765 = vmatpush.bf16.msra.mxu0 %v4575
        %5766 = vmatpush.bf16.msra.mxu0 %v4571
        %5767 = vmatpush.bf16.msra.mxu0 %v4567
        %5768 = vmatmul.bf16.gmra.mxu0 %v3384
        %v5769 = vpop.f32.mrf.mxu0
        %v5770 = vadd.f32 %v5741, %v5769
        %v5771 = vpop.f32.mrf.mxu0
        %v5772 = vadd.f32 %v5743, %v5771
        %5773 = vmatmul.bf16.gmra.mxu0 %v3392
        %v5774 = vpop.f32.mrf.mxu0
        %v5775 = vadd.f32 %v5746, %v5774
        %v5776 = vpop.f32.mrf.mxu0
        %v5777 = vadd.f32 %v5748, %v5776
        %5778 = vmatmul.bf16.gmra.mxu0 %v3400
        %v5779 = vpop.f32.mrf.mxu0
        %v5780 = vadd.f32 %v5751, %v5779
        %v5781 = vpop.f32.mrf.mxu0
        %v5782 = vadd.f32 %v5753, %v5781
        %5783 = vmatmul.bf16.gmra.mxu0 %v3408
        %v5784 = vpop.f32.mrf.mxu0
        %v5785 = vadd.f32 %v5756, %v5784
        %v5786 = vpop.f32.mrf.mxu0
        %v5787 = vadd.f32 %v5758, %v5786
        %5788 = vdwg.mxu0
        %5789 = vmatpush.bf16.msra.mxu0 %v4627
        %5790 = vmatpush.bf16.msra.mxu0 %v4623
        %5791 = vmatpush.bf16.msra.mxu0 %v4619
        %5792 = vmatpush.bf16.msra.mxu0 %v4615
        %5793 = vmatpush.bf16.msra.mxu0 %v4611
        %5794 = vmatpush.bf16.msra.mxu0 %v4607
        %5795 = vmatpush.bf16.msra.mxu0 %v4603
        %5796 = vmatpush.bf16.msra.mxu0 %v4599
        %5797 = vmatmul.bf16.gmra.mxu0 %v3385
        %v5798 = vpop.f32.mrf.mxu0
        %v5799 = vadd.f32 %v5770, %v5798
        %v5800 = vpop.f32.mrf.mxu0
        %v5801 = vadd.f32 %v5772, %v5800
        %5802 = vmatmul.bf16.gmra.mxu0 %v3393
        %v5803 = vpop.f32.mrf.mxu0
        %v5804 = vadd.f32 %v5775, %v5803
        %v5805 = vpop.f32.mrf.mxu0
        %v5806 = vadd.f32 %v5777, %v5805
        %5807 = vmatmul.bf16.gmra.mxu0 %v3401
        %v5808 = vpop.f32.mrf.mxu0
        %v5809 = vadd.f32 %v5780, %v5808
        %v5810 = vpop.f32.mrf.mxu0
        %v5811 = vadd.f32 %v5782, %v5810
        %5812 = vmatmul.bf16.gmra.mxu0 %v3409
        %v5813 = vpop.f32.mrf.mxu0
        %v5814 = vadd.f32 %v5785, %v5813
        %v5815 = vpop.f32.mrf.mxu0
        %v5816 = vadd.f32 %v5787, %v5815
        %5817 = vdwg.mxu0
        %5818 = vmatpush.bf16.msra.mxu0 %v4659
        %5819 = vmatpush.bf16.msra.mxu0 %v4655
        %5820 = vmatpush.bf16.msra.mxu0 %v4651
        %5821 = vmatpush.bf16.msra.mxu0 %v4647
        %5822 = vmatpush.bf16.msra.mxu0 %v4643
        %5823 = vmatpush.bf16.msra.mxu0 %v4639
        %5824 = vmatpush.bf16.msra.mxu0 %v4635
        %5825 = vmatpush.bf16.msra.mxu0 %v4631
        %5826 = vmatmul.bf16.gmra.mxu0 %v3386
        %v5827 = vpop.f32.mrf.mxu0
        %v5828 = vadd.f32 %v5799, %v5827
        %v5829 = vpop.f32.mrf.mxu0
        %v5830 = vadd.f32 %v5801, %v5829
        %5831 = vmatmul.bf16.gmra.mxu0 %v3394
        %v5832 = vpop.f32.mrf.mxu0
        %v5833 = vadd.f32 %v5804, %v5832
        %v5834 = vpop.f32.mrf.mxu0
        %v5835 = vadd.f32 %v5806, %v5834
        %5836 = vmatmul.bf16.gmra.mxu0 %v3402
        %v5837 = vpop.f32.mrf.mxu0
        %v5838 = vadd.f32 %v5809, %v5837
        %v5839 = vpop.f32.mrf.mxu0
        %v5840 = vadd.f32 %v5811, %v5839
        %5841 = vmatmul.bf16.gmra.mxu0 %v3410
        %v5842 = vpop.f32.mrf.mxu0
        %v5843 = vadd.f32 %v5814, %v5842
        %v5844 = vpop.f32.mrf.mxu0
        %v5845 = vadd.f32 %v5816, %v5844
        %5846 = vdwg.mxu0
        %5847 = vmatpush.bf16.msra.mxu0 %v4691
        %5848 = vmatpush.bf16.msra.mxu0 %v4687
        %5849 = vmatpush.bf16.msra.mxu0 %v4683
        %5850 = vmatpush.bf16.msra.mxu0 %v4679
        %5851 = vmatpush.bf16.msra.mxu0 %v4675
        %5852 = vmatpush.bf16.msra.mxu0 %v4671
        %5853 = vmatpush.bf16.msra.mxu0 %v4667
        %5854 = vmatpush.bf16.msra.mxu0 %v4663
        %5855 = vmatmul.bf16.gmra.mxu0 %v3387
        %v5856 = vpop.f32.mrf.mxu0
        %v5857 = vadd.f32 %v5828, %v5856
        %v5858 = vpop.f32.mrf.mxu0
        %v5859 = vadd.f32 %v5830, %v5858
        %5860 = vmatmul.bf16.gmra.mxu0 %v3395
        %v5861 = vpop.f32.mrf.mxu0
        %v5862 = vadd.f32 %v5833, %v5861
        %v5863 = vpop.f32.mrf.mxu0
        %v5864 = vadd.f32 %v5835, %v5863
        %5865 = vmatmul.bf16.gmra.mxu0 %v3403
        %v5866 = vpop.f32.mrf.mxu0
        %v5867 = vadd.f32 %v5838, %v5866
        %v5868 = vpop.f32.mrf.mxu0
        %v5869 = vadd.f32 %v5840, %v5868
        %5870 = vmatmul.bf16.gmra.mxu0 %v3411
        %v5871 = vpop.f32.mrf.mxu0
        %v5872 = vadd.f32 %v5843, %v5871
        %v5873 = vpop.f32.mrf.mxu0
        %v5874 = vadd.f32 %v5845, %v5873
        %5875 = vdwg.mxu0
        %v5876 = vadd.f32 %v3348, %v5161
        %v5877 = vadd.f32 %v3349, %v5393
        %v5878 = vadd.f32 %v3350, %v5625
        %v5879 = vadd.f32 %v3351, %v5857
        %v5880 = vadd.f32 %v3352, %v5163
        %v5881 = vadd.f32 %v3353, %v5395
        %v5882 = vadd.f32 %v3354, %v5627
        %v5883 = vadd.f32 %v3355, %v5859
        %v5884 = vadd.f32 %v3356, %v5166
        %v5885 = vadd.f32 %v3357, %v5398
        %v5886 = vadd.f32 %v3358, %v5630
        %v5887 = vadd.f32 %v3359, %v5862
        %v5888 = vadd.f32 %v3360, %v5168
        %v5889 = vadd.f32 %v3361, %v5400
        %v5890 = vadd.f32 %v3362, %v5632
        %v5891 = vadd.f32 %v3363, %v5864
        %v5892 = vadd.f32 %v3364, %v5171
        %v5893 = vadd.f32 %v3365, %v5403
        %v5894 = vadd.f32 %v3366, %v5635
        %v5895 = vadd.f32 %v3367, %v5867
        %v5896 = vadd.f32 %v3368, %v5173
        %v5897 = vadd.f32 %v3369, %v5405
        %v5898 = vadd.f32 %v3370, %v5637
        %v5899 = vadd.f32 %v3371, %v5869
        %v5900 = vadd.f32 %v3372, %v5176
        %v5901 = vadd.f32 %v3373, %v5408
        %v5902 = vadd.f32 %v3374, %v5640
        %v5903 = vadd.f32 %v3375, %v5872
        %v5904 = vadd.f32 %v3376, %v5178
        %v5905 = vadd.f32 %v3377, %v5410
        %v5906 = vadd.f32 %v3378, %v5642
        %v5907 = vadd.f32 %v3379, %v5874
        %5908 = vst [vmem:[%s498] sm:$0xff] %v5876
        %5909 = vst [vmem:[%s498 + $0x8] sm:$0xff] %v5877
        %5910 = vst [vmem:[%s498 + $0x10] sm:$0xff] %v5878
        %5911 = vst [vmem:[%s498 + $0x18] sm:$0xff] %v5879
        %5912 = vst [vmem:[%s498 + $0x20] sm:$0xff] %v5880
        %5913 = vst [vmem:[%s498 + $0x28] sm:$0xff] %v5881
        %5914 = vst [vmem:[%s498 + $0x30] sm:$0xff] %v5882
        %5915 = vst [vmem:[%s498 + $0x38] sm:$0xff] %v5883
        %5916 = vst [vmem:[%s498 + $0x40] sm:$0xff] %v5884
        %5917 = vst [vmem:[%s498 + $0x48] sm:$0xff] %v5885
        %5918 = vst [vmem:[%s498 + $0x50] sm:$0xff] %v5886
        %5919 = vst [vmem:[%s498 + $0x58] sm:$0xff] %v5887
        %5920 = vst [vmem:[%s498 + $0x60] sm:$0xff] %v5888
        %5921 = vst [vmem:[%s498 + $0x68] sm:$0xff] %v5889
        %5922 = vst [vmem:[%s498 + $0x70] sm:$0xff] %v5890
        %5923 = vst [vmem:[%s498 + $0x78] sm:$0xff] %v5891
        %5924 = vst [vmem:[%s498 + $0x80] sm:$0xff] %v5892
        %5925 = vst [vmem:[%s498 + $0x88] sm:$0xff] %v5893
        %5926 = vst [vmem:[%s498 + $0x90] sm:$0xff] %v5894
        %5927 = vst [vmem:[%s498 + $0x98] sm:$0xff] %v5895
        %5928 = vst [vmem:[%s498 + $0xa0] sm:$0xff] %v5896
        %5929 = vst [vmem:[%s498 + $0xa8] sm:$0xff] %v5897
        %5930 = vst [vmem:[%s498 + $0xb0] sm:$0xff] %v5898
        %5931 = vst [vmem:[%s498 + $0xb8] sm:$0xff] %v5899
        %5932 = vst [vmem:[%s498 + $0xc0] sm:$0xff] %v5900
        %5933 = vst [vmem:[%s498 + $0xc8] sm:$0xff] %v5901
        %5934 = vst [vmem:[%s498 + $0xd0] sm:$0xff] %v5902
        %5935 = vst [vmem:[%s498 + $0xd8] sm:$0xff] %v5903
        %5936 = vst [vmem:[%s498 + $0xe0] sm:$0xff] %v5904
        %5937 = vst [vmem:[%s498 + $0xe8] sm:$0xff] %v5905
        %5938 = vst [vmem:[%s498 + $0xf0] sm:$0xff] %v5906
        %5939 = vst [vmem:[%s498 + $0xf8] sm:$0xff] %v5907
        %s5940 = smul.u32 4, %s28
        %p5941 = scmp.lt.s32.totalorder %s5940, 3
        %s5942 = scalar_select %p5941, %s5940, 3
        %s5943 = smul.addr %s5942, 8
        %s5944 = scalar_lea.vmem %s6, %s5943
        // Predicated region
        $region88: #{fused_bottleneck_tail.1} parent=62 // pred_check
          %p5945 = pneg %p207
        $region89: #{fused_bottleneck_tail.1} parent=62 // pred_check_branch
          %5947 = sbr.rel (%p5945) target = $region91
        $region90: #{fused_bottleneck_tail.1} parent=62 // pred_region
          %s5948 = smul.u32 4, %s28
        $region91: #{fused_bottleneck_tail.1} parent=62 // pred_fallthru
          _
        // Predicated region
        $region92: #{fused_bottleneck_tail.1} parent=62 // pred_check
          %p5949 = pneg %p207
        $region93: #{fused_bottleneck_tail.1} parent=62 // pred_check_branch
          %5951 = sbr.rel (%p5949) target = $region95
        $region94: #{fused_bottleneck_tail.1} parent=62 // pred_region
          %s5952 = smul.u32 4, %s28
          %p5953 = scmp.lt.s32.totalorder %s5952, 3
          %s5954 = scalar_select %p5953, %s5952, 3
          %s5955 = smul.addr %s5954, 8
          %s5956 = scalar_lea.vmem %s6, %s5955
        $region95: #{fused_bottleneck_tail.1} parent=62 // pred_fallthru
          _
      $region63: #{fused_bottleneck_tail.1} parent=5 // pred_fallthru
        _
      %p5957 = scmp.le.s32.totalorder 2, %s19
      // Predicated region
      $region96: #{fused_bottleneck_tail.1} parent=5 // pred_check
        %p5958 = pneg %p5957
      $region97: #{fused_bottleneck_tail.1} parent=5 // pred_check_branch
        %5960 = sbr.rel (%p5958) target = $region99
      $region98: #{fused_bottleneck_tail.1} parent=5 // pred_region
        %s5961 = ssub.s32 %s19, 2
      $region99: #{fused_bottleneck_tail.1} parent=5 // pred_fallthru
        _
    $region6: #{fused_bottleneck_tail.1} parent=1 // loop_footer
      %s23 = sadd.s32 1, %s19
    $region7: #{fused_bottleneck_tail.1} parent=1 // loop_footer_branch
      %18 = sbr.rel target = $region3
    $region8: #{fused_bottleneck_tail.1} parent=1 // loop_exit
      _
    %5962 = vsyncpa [#allocation4], 1
    %s5963 = scalar_lea.sflag [#allocation4], 1
    %5964 = vsyncpa %s5963, 1
    %5965 = vsyncpa [#allocation6], 1
    %s5966 = scalar_lea.sflag [#allocation6], 1
    %5967 = vsyncpa %s5966, 1
    %5968 = vsyncpa [#allocation9], 1

</llo_original>
